<compile_context>
chip_gen: v7x
topology: tpu7x:2x2x1
jax: 0.10.0
libtpu: 0.0.40
codegen_flags: <defaults>
</compile_context>

<pallas_src>
import functools

import jax
import jax.numpy as jnp
from jax import lax
from jax.experimental import pallas as pl
from jax.experimental.pallas import tpu as pltpu

_VMEM_SPEC = pl.BlockSpec(memory_space=pltpu.MemorySpace.VMEM)
_LANE = 128
_SUBLANE = 8


def _round_up(x, m):
    return ((x + m - 1) // m) * m


# ----------------------------------------------------------------------------
# Fused kernel: all LSTM layers/directions + FC head in one pallas_call.
# ----------------------------------------------------------------------------
def _make_fused_kernel(*, num_layers, num_dirs, T, B_pad, H):
    GH = 4 * H                       # packed gate width per direction (i|f|g|o)
    ND = num_dirs
    n_w = num_layers * 3
    n_seq = min(2, max(num_layers - 1, 0))

    def kernel(*refs):
        x_ref = refs[0]                               # (T*B_pad, D_pad) bf16
        w_refs = refs[1:1 + n_w]                      # per layer: w_ih, w_hh_bd, b
        fc_w_ref = refs[1 + n_w]                      # (ND*H, C_pad) bf16
        fc_b_ref = refs[2 + n_w]                      # (1, C_pad) f32
        out_ref = refs[3 + n_w]                       # (B_pad, C_pad) f32
        seq_bufs = refs[4 + n_w:4 + n_w + n_seq]      # (T*B_pad, ND*H) bf16

        def lstm_cell(g, c_prev):
            # g: (B_pad, 4H) packed gates i|f|g|o.  c_prev=None means c_prev==0
            # (skips the forget-gate term and its sigmoid entirely).
            i_g = jax.nn.sigmoid(g[:, 0 * H:1 * H])
            g_g = jnp.tanh(g[:, 2 * H:3 * H])
            o_g = jax.nn.sigmoid(g[:, 3 * H:4 * H])
            c = i_g * g_g
            if c_prev is not None:
                c = c + jax.nn.sigmoid(g[:, 1 * H:2 * H]) * c_prev
            h = o_g * jnp.tanh(c)
            return h, c

        def run_layer_full(layer, xin, out_buf):
            w_ih = w_refs[3 * layer][...]             # (IN, ND*GH) bf16
            w_hh = w_refs[3 * layer + 1][...]         # block-diag (ND*H, ND*GH)
            b = w_refs[3 * layer + 2][...]            # (1, ND*GH) f32
            # Hoisted input projection, both directions fused in one matmul.
            pre = jnp.dot(xin, w_ih, preferred_element_type=jnp.float32) + b
            h = None                                  # (B_pad, ND*H) f32 carry
            c = None
            for s in range(T):                        # unrolled static time loop
                g_rec = None
                if s > 0:
                    # Both directions in one block-diagonal recurrent matmul.
                    g_rec = jnp.dot(h.astype(w_hh.dtype), w_hh,
                                    preferred_element_type=jnp.float32)
                h_parts, c_parts = [], []
                for d in range(ND):
                    t = s if d == 0 else T - 1 - s
                    g = pre[t * B_pad:(t + 1) * B_pad, d * GH:(d + 1) * GH]
                    if g_rec is not None:
                        g = g + g_rec[:, d * GH:(d + 1) * GH]
                    c_prev = None if c is None else c[:, d * H:(d + 1) * H]
                    h_d, c_d = lstm_cell(g, c_prev)
                    out_buf[t * B_pad:(t + 1) * B_pad,
                            d * H:(d + 1) * H] = h_d.astype(out_buf.dtype)
                    h_parts.append(h_d)
                    c_parts.append(c_d)
                h = jnp.concatenate(h_parts, axis=1) if ND > 1 else h_parts[0]
                c = jnp.concatenate(c_parts, axis=1) if ND > 1 else c_parts[0]

        def run_layer_last(layer, xin):
            # Head only needs out[:, -1, :] = [h_fwd(T-1) | h_bwd(T-1)];
            # h_bwd(T-1) is the backward direction's FIRST step, so run bwd
            # for one step (no recurrent matmul: h0=c0=0), fwd for T steps,
            # and skip all scratch-buffer writes for this layer.
            w_ih = w_refs[3 * layer][...]
            b = w_refs[3 * layer + 2][...]
            pre = jnp.dot(xin, w_ih, preferred_element_type=jnp.float32) + b
            h_bwd = None
            if ND == 2:
                g_b = pre[(T - 1) * B_pad:T * B_pad, GH:2 * GH]
                h_bwd, _ = lstm_cell(g_b, None)
            w_hh_f = w_refs[3 * layer + 1][0:H, 0:GH]  # fwd block of block-diag
            h = None
            c = None
            for s in range(T):
                g = pre[s * B_pad:(s + 1) * B_pad, 0:GH]
                if s > 0:
                    g = g + jnp.dot(h.astype(w_hh_f.dtype), w_hh_f,
                                    preferred_element_type=jnp.float32)
                h, c = lstm_cell(g, c)
            if ND == 2:
                return jnp.concatenate([h, h_bwd], axis=1)
            return h

        xin = x_ref[...]
        for layer in range(num_layers - 1):
            run_layer_full(layer, xin, seq_bufs[layer % 2])
            xin = seq_bufs[layer % 2][...]            # bf16 -> next layer MXU op
        last = run_layer_last(num_layers - 1, xin)    # (B_pad, ND*H) f32
        logits = jnp.dot(last.astype(fc_w_ref.dtype), fc_w_ref[...],
                         preferred_element_type=jnp.float32) + fc_b_ref[...]
        out_ref[...] = logits                         # lane-dense (8,128) store

    return kernel


# ----------------------------------------------------------------------------
# One-time parameter preparation: transpose, gate packing (contiguous 4H
# lanes), direction fusion along N, block-diagonal recurrent weights, bias
# summing, bf16 casting of MXU operands.
# ----------------------------------------------------------------------------
def prepare_params(raw, *, input_size, hidden_size, num_layers, num_classes,
                   num_directions):
    H = hidden_size
    ND = num_directions
    GH = 4 * H
    D_pad = _round_up(input_size, _LANE)
    C_pad = _round_up(num_classes, _LANE)

    flat = []
    for layer in range(num_layers):
        in_src = input_size if layer == 0 else ND * H
        in_dim = D_pad if layer == 0 else ND * H
        w_ih = jnp.zeros((in_dim, ND * GH), jnp.float32)
        w_hh = jnp.zeros((ND * H, ND * GH), jnp.float32)
        b = jnp.zeros((1, ND * GH), jnp.float32)
        for d in range(ND):
            p = raw["lstm"][layer][d]
            # PyTorch (4H, IN) with gates stacked i|f|g|o along rows ->
            # transpose gives the packed (IN, 4H) layout directly.
            w_ih = w_ih.at[:in_src, d * GH:(d + 1) * GH].set(p["w_ih"].T)
            w_hh = w_hh.at[d * H:(d + 1) * H,
                           d * GH:(d + 1) * GH].set(p["w_hh"].T)
            b = b.at[0, d * GH:(d + 1) * GH].set(p["b_ih"] + p["b_hh"])
        flat += [w_ih.astype(jnp.bfloat16), w_hh.astype(jnp.bfloat16), b]

    fc_w = raw["fc_w"]                                 # (C, ND*H)
    fc_w_pad = jnp.zeros((ND * H, C_pad), jnp.float32)
    fc_w_pad = fc_w_pad.at[:, :num_classes].set(fc_w.T)
    fc_b_pad = jnp.zeros((1, C_pad), jnp.float32).at[0, :num_classes].set(
        raw["fc_b"])
    return {"lstm": flat,
            "fc_w": fc_w_pad.astype(jnp.bfloat16),
            "fc_b": fc_b_pad}


# ----------------------------------------------------------------------------
# Forward wrapper (single pallas_call).
# ----------------------------------------------------------------------------
def gait_classifier_lstm_forward(x, prepared, *, num_layers, num_directions,
                                 num_classes, hidden_size):
    """x: (B, T, input_size) f32 -> logits (B, num_classes) f32."""
    lstm_flat = prepared["lstm"]
    fc_w, fc_b = prepared["fc_w"], prepared["fc_b"]
    B, T, D = x.shape
    H = hidden_size
    D_pad = lstm_flat[0].shape[0]
    C_pad = fc_w.shape[1]
    B_pad = _round_up(B, _SUBLANE)

    xt = jnp.transpose(x, (1, 0, 2))                   # time-major (T, B, D)
    xt = jnp.pad(xt, ((0, 0), (0, B_pad - B), (0, D_pad - D)))
    x2d = xt.reshape(T * B_pad, D_pad).astype(jnp.bfloat16)

    kernel = _make_fused_kernel(num_layers=num_layers, num_dirs=num_directions,
                                T=T, B_pad=B_pad, H=H)
    n_in = 1 + len(lstm_flat) + 2
    n_seq = min(2, max(num_layers - 1, 0))
    seq_shape = (T * B_pad, num_directions * H)
    out_pad = pl.pallas_call(
        kernel,
        out_shape=jax.ShapeDtypeStruct((B_pad, C_pad), jnp.float32),
        in_specs=[_VMEM_SPEC] * n_in,
        out_specs=_VMEM_SPEC,
        scratch_shapes=[pltpu.VMEM(seq_shape, jnp.bfloat16)] * n_seq,
    )(x2d, *lstm_flat, fc_w, fc_b)
    return out_pad[:B, :num_classes]


# ----------------------------------------------------------------------------
# Deterministic parameter init (PyTorch-style U(-1/sqrt(H), 1/sqrt(H)))
# ----------------------------------------------------------------------------
def init_params(key, *, input_size, hidden_size, num_layers, num_classes,
                num_directions):
    params = {"lstm": []}
    k = 1.0 / jnp.sqrt(hidden_size)
    for layer in range(num_layers):
        d_in = input_size if layer == 0 else hidden_size * num_directions
        dirs = []
        for _ in range(num_directions):
            key, k1, k2, k3, k4 = jax.random.split(key, 5)
            dirs.append({
                "w_ih": jax.random.uniform(k1, (4 * hidden_size, d_in),
                                           jnp.float32, -k, k),
                "w_hh": jax.random.uniform(k2, (4 * hidden_size, hidden_size),
                                           jnp.float32, -k, k),
                "b_ih": jax.random.uniform(k3, (4 * hidden_size,),
                                           jnp.float32, -k, k),
                "b_hh": jax.random.uniform(k4, (4 * hidden_size,),
                                           jnp.float32, -k, k),
            })
        params["lstm"].append(dirs)
    fc_in = hidden_size * num_directions
    k_fc = 1.0 / jnp.sqrt(fc_in)
    key, k1, k2 = jax.random.split(key, 3)
    params["fc_w"] = jax.random.uniform(k1, (num_classes, fc_in),
                                        jnp.float32, -k_fc, k_fc)
    params["fc_b"] = jax.random.uniform(k2, (num_classes,),
                                        jnp.float32, -k_fc, k_fc)
    return params


# ----------------------------------------------------------------------------
# Pure-JAX f32 reference (for correctness check)
# ----------------------------------------------------------------------------
def _ref_forward(x, params, *, num_layers, num_directions):
    def cell_seq(seq_tbd, p, reverse):
        H = p["w_hh"].shape[1]
        B = seq_tbd.shape[1]
        xs = seq_tbd[::-1] if reverse else seq_tbd

        def step(carry, x_t):
            h, c = carry
            g = x_t @ p["w_ih"].T + h @ p["w_hh"].T + p["b_ih"] + p["b_hh"]
            i = jax.nn.sigmoid(g[:, 0 * H:1 * H])
            f = jax.nn.sigmoid(g[:, 1 * H:2 * H])
            gg = jnp.tanh(g[:, 2 * H:3 * H])
            o = jax.nn.sigmoid(g[:, 3 * H:4 * H])
            c = f * c + i * gg
            h = o * jnp.tanh(c)
            return (h, c), h

        init = (jnp.zeros((B, H), jnp.float32), jnp.zeros((B, H), jnp.float32))
        _, ys = lax.scan(step, init, xs)
        return ys[::-1] if reverse else ys

    layer_in = jnp.transpose(x, (1, 0, 2))
    for layer in range(num_layers):
        outs = [cell_seq(layer_in, params["lstm"][layer][d], d == 1)
                for d in range(num_directions)]
        layer_in = jnp.concatenate(outs, axis=-1)
    last = layer_in[-1]
    return last @ params["fc_w"].T + params["fc_b"]


# ----------------------------------------------------------------------------
if __name__ == "__main__":
    INPUT_SIZE = 16
    HIDDEN_SIZE = 32
    NUM_LAYERS = 2
    NUM_CLASSES = 8
    NUM_DIRECTIONS = 2          # use_bidirectional=True
    BATCH = 2
    SEQ = 8

    root = jax.random.PRNGKey(0)
    k_param, k_x = jax.random.split(root)
    raw = init_params(k_param, input_size=INPUT_SIZE, hidden_size=HIDDEN_SIZE,
                      num_layers=NUM_LAYERS, num_classes=NUM_CLASSES,
                      num_directions=NUM_DIRECTIONS)
    prepared = prepare_params(raw, input_size=INPUT_SIZE,
                              hidden_size=HIDDEN_SIZE, num_layers=NUM_LAYERS,
                              num_classes=NUM_CLASSES,
                              num_directions=NUM_DIRECTIONS)
    x = jax.random.normal(k_x, (BATCH, SEQ, INPUT_SIZE), jnp.float32)

    fwd = jax.jit(functools.partial(gait_classifier_lstm_forward,
                                    num_layers=NUM_LAYERS,
                                    num_directions=NUM_DIRECTIONS,
                                    num_classes=NUM_CLASSES,
                                    hidden_size=HIDDEN_SIZE))
    logits = jax.block_until_ready(fwd(x, prepared))

    ref = jax.block_until_ready(
        _ref_forward(x, raw, num_layers=NUM_LAYERS,
                     num_directions=NUM_DIRECTIONS))

    assert logits.shape == (BATCH, NUM_CLASSES), logits.shape
    err = float(jnp.max(jnp.abs(logits - ref)))
    # bf16 MXU operands with f32 accumulation / f32 h,c state -> small drift.
    assert err < 5e-2, f"max abs err {err}"

    print("KERNEL_OK")
</pallas_src>

<mosaic_0001>
module attributes {stable_mosaic.version = 11 : i64} {
  func.func @kernel(%arg0: memref<64x128xbf16, #tpu.memory_space<vmem>>, %arg1: memref<128x256xbf16, #tpu.memory_space<vmem>>, %arg2: memref<64x256xbf16, #tpu.memory_space<vmem>>, %arg3: memref<1x256xf32, #tpu.memory_space<vmem>>, %arg4: memref<64x256xbf16, #tpu.memory_space<vmem>>, %arg5: memref<64x256xbf16, #tpu.memory_space<vmem>>, %arg6: memref<1x256xf32, #tpu.memory_space<vmem>>, %arg7: memref<64x128xbf16, #tpu.memory_space<vmem>>, %arg8: memref<1x128xf32, #tpu.memory_space<vmem>>, %arg9: memref<8x128xf32, #tpu.memory_space<vmem>>, %arg10: memref<64x64xbf16, #tpu.memory_space<vmem>>) attributes {dimension_semantics = [], scalar_prefetch = 0 : i64, scratch_operands = 1 : i64, tpu.core_type = #tpu.core_type<tc>} {
    %c0 = arith.constant 0 : index
    %c0_0 = arith.constant 0 : index
    %0 = vector.load %arg0[%c0, %c0_0] : memref<64x128xbf16, #tpu.memory_space<vmem>>, vector<64x128xbf16>
    %c0_1 = arith.constant 0 : index
    %c0_2 = arith.constant 0 : index
    %1 = vector.load %arg1[%c0_1, %c0_2] : memref<128x256xbf16, #tpu.memory_space<vmem>>, vector<128x256xbf16>
    %c0_3 = arith.constant 0 : index
    %c0_4 = arith.constant 0 : index
    %2 = vector.load %arg2[%c0_3, %c0_4] : memref<64x256xbf16, #tpu.memory_space<vmem>>, vector<64x256xbf16>
    %c0_5 = arith.constant 0 : index
    %c0_6 = arith.constant 0 : index
    %3 = vector.load %arg3[%c0_5, %c0_6] : memref<1x256xf32, #tpu.memory_space<vmem>>, vector<1x256xf32>
    %cst = arith.constant dense<0.000000e+00> : vector<64x256xf32>
    %4 = tpu.matmul %0, %1, %cst {dimension_numbers = #tpu.dot_dimension_numbers<[1], [0], [0], [1], [0, 0, 1, 1], [], []>} : vector<64x128xbf16>, vector<128x256xbf16>, vector<64x256xf32> -> vector<64x256xf32>
    %5 = vector.broadcast %3 : vector<1x256xf32> to vector<64x256xf32>
    %6 = arith.addf %4, %5 : vector<64x256xf32>
    %7 = vector.extract_strided_slice %6 {offsets = [0, 0], sizes = [8, 128], strides = [1, 1]} : vector<64x256xf32> to vector<8x128xf32>
    %8 = vector.extract_strided_slice %7 {offsets = [0, 0], sizes = [8, 32], strides = [1, 1]} : vector<8x128xf32> to vector<8x32xf32>
    %9 = arith.negf %8 : vector<8x32xf32>
    %10 = math.exp %9 : vector<8x32xf32>
    %cst_7 = arith.constant 1.000000e+00 : f32
    %11 = vector.broadcast %cst_7 : f32 to vector<8x32xf32>
    %12 = arith.addf %11, %10 : vector<8x32xf32>
    %13 = arith.divf %11, %12 : vector<8x32xf32>
    %14 = vector.extract_strided_slice %7 {offsets = [0, 64], sizes = [8, 32], strides = [1, 1]} : vector<8x128xf32> to vector<8x32xf32>
    %15 = math.tanh %14 : vector<8x32xf32>
    %16 = vector.extract_strided_slice %7 {offsets = [0, 96], sizes = [8, 32], strides = [1, 1]} : vector<8x128xf32> to vector<8x32xf32>
    %17 = arith.negf %16 : vector<8x32xf32>
    %18 = math.exp %17 : vector<8x32xf32>
    %cst_8 = arith.constant 1.000000e+00 : f32
    %19 = vector.broadcast %cst_8 : f32 to vector<8x32xf32>
    %20 = arith.addf %19, %18 : vector<8x32xf32>
    %21 = arith.divf %19, %20 : vector<8x32xf32>
    %22 = arith.mulf %13, %15 : vector<8x32xf32>
    %23 = math.tanh %22 : vector<8x32xf32>
    %24 = arith.mulf %21, %23 : vector<8x32xf32>
    %25 = arith.truncf %24 : vector<8x32xf32> to vector<8x32xbf16>
    %c0_9 = arith.constant 0 : index
    %c0_10 = arith.constant 0 : index
    %26 = vector.load %arg10[%c0_9, %c0_10] : memref<64x64xbf16, #tpu.memory_space<vmem>>, vector<8x32xbf16>
    tpu.vector_store %arg10[%c0_9, %c0_10], %25 {strides = array<i32>} : memref<64x64xbf16, #tpu.memory_space<vmem>>, vector<8x32xbf16>,
    %27 = vector.extract_strided_slice %6 {offsets = [56, 128], sizes = [8, 128], strides = [1, 1]} : vector<64x256xf32> to vector<8x128xf32>
    %28 = vector.extract_strided_slice %27 {offsets = [0, 0], sizes = [8, 32], strides = [1, 1]} : vector<8x128xf32> to vector<8x32xf32>
    %29 = arith.negf %28 : vector<8x32xf32>
    %30 = math.exp %29 : vector<8x32xf32>
    %cst_11 = arith.constant 1.000000e+00 : f32
    %31 = vector.broadcast %cst_11 : f32 to vector<8x32xf32>
    %32 = arith.addf %31, %30 : vector<8x32xf32>
    %33 = arith.divf %31, %32 : vector<8x32xf32>
    %34 = vector.extract_strided_slice %27 {offsets = [0, 64], sizes = [8, 32], strides = [1, 1]} : vector<8x128xf32> to vector<8x32xf32>
    %35 = math.tanh %34 : vector<8x32xf32>
    %36 = vector.extract_strided_slice %27 {offsets = [0, 96], sizes = [8, 32], strides = [1, 1]} : vector<8x128xf32> to vector<8x32xf32>
    %37 = arith.negf %36 : vector<8x32xf32>
    %38 = math.exp %37 : vector<8x32xf32>
    %cst_12 = arith.constant 1.000000e+00 : f32
    %39 = vector.broadcast %cst_12 : f32 to vector<8x32xf32>
    %40 = arith.addf %39, %38 : vector<8x32xf32>
    %41 = arith.divf %39, %40 : vector<8x32xf32>
    %42 = arith.mulf %33, %35 : vector<8x32xf32>
    %43 = math.tanh %42 : vector<8x32xf32>
    %44 = arith.mulf %41, %43 : vector<8x32xf32>
    %45 = arith.truncf %44 : vector<8x32xf32> to vector<8x32xbf16>
    %c56 = arith.constant 56 : index
    %c32 = arith.constant 32 : index
    %46 = vector.load %arg10[%c56, %c32] : memref<64x64xbf16, #tpu.memory_space<vmem>>, vector<8x32xbf16>
    tpu.vector_store %arg10[%c56, %c32], %45 {strides = array<i32>} : memref<64x64xbf16, #tpu.memory_space<vmem>>, vector<8x32xbf16>,
    %47 = tpu.concatenate %24, %44 in 1 : vector<8x32xf32>, vector<8x32xf32> -> vector<8x64xf32>
    %48 = tpu.concatenate %22, %42 in 1 : vector<8x32xf32>, vector<8x32xf32> -> vector<8x64xf32>
    %49 = arith.truncf %47 : vector<8x64xf32> to vector<8x64xbf16>
    %cst_13 = arith.constant dense<0.000000e+00> : vector<8x256xf32>
    %50 = tpu.matmul %49, %2, %cst_13 {dimension_numbers = #tpu.dot_dimension_numbers<[1], [0], [0], [1], [0, 0, 1, 1], [], []>} : vector<8x64xbf16>, vector<64x256xbf16>, vector<8x256xf32> -> vector<8x256xf32>
    %51 = vector.extract_strided_slice %6 {offsets = [8, 0], sizes = [8, 128], strides = [1, 1]} : vector<64x256xf32> to vector<8x128xf32>
    %52 = vector.extract_strided_slice %50 {offsets = [0, 0], sizes = [8, 128], strides = [1, 1]} : vector<8x256xf32> to vector<8x128xf32>
    %53 = arith.addf %51, %52 : vector<8x128xf32>
    %54 = vector.extract_strided_slice %48 {offsets = [0, 0], sizes = [8, 32], strides = [1, 1]} : vector<8x64xf32> to vector<8x32xf32>
    %55 = vector.extract_strided_slice %53 {offsets = [0, 0], sizes = [8, 32], strides = [1, 1]} : vector<8x128xf32> to vector<8x32xf32>
    %56 = arith.negf %55 : vector<8x32xf32>
    %57 = math.exp %56 : vector<8x32xf32>
    %cst_14 = arith.constant 1.000000e+00 : f32
    %58 = vector.broadcast %cst_14 : f32 to vector<8x32xf32>
    %59 = arith.addf %58, %57 : vector<8x32xf32>
    %60 = arith.divf %58, %59 : vector<8x32xf32>
    %61 = vector.extract_strided_slice %53 {offsets = [0, 64], sizes = [8, 32], strides = [1, 1]} : vector<8x128xf32> to vector<8x32xf32>
    %62 = math.tanh %61 : vector<8x32xf32>
    %63 = vector.extract_strided_slice %53 {offsets = [0, 96], sizes = [8, 32], strides = [1, 1]} : vector<8x128xf32> to vector<8x32xf32>
    %64 = arith.negf %63 : vector<8x32xf32>
    %65 = math.exp %64 : vector<8x32xf32>
    %cst_15 = arith.constant 1.000000e+00 : f32
    %66 = vector.broadcast %cst_15 : f32 to vector<8x32xf32>
    %67 = arith.addf %66, %65 : vector<8x32xf32>
    %68 = arith.divf %66, %67 : vector<8x32xf32>
    %69 = arith.mulf %60, %62 : vector<8x32xf32>
    %70 = vector.extract_strided_slice %53 {offsets = [0, 32], sizes = [8, 32], strides = [1, 1]} : vector<8x128xf32> to vector<8x32xf32>
    %71 = arith.negf %70 : vector<8x32xf32>
    %72 = math.exp %71 : vector<8x32xf32>
    %cst_16 = arith.constant 1.000000e+00 : f32
    %73 = vector.broadcast %cst_16 : f32 to vector<8x32xf32>
    %74 = arith.addf %73, %72 : vector<8x32xf32>
    %75 = arith.divf %73, %74 : vector<8x32xf32>
    %76 = arith.mulf %75, %54 : vector<8x32xf32>
    %77 = arith.addf %69, %76 : vector<8x32xf32>
    %78 = math.tanh %77 : vector<8x32xf32>
    %79 = arith.mulf %68, %78 : vector<8x32xf32>
    %80 = arith.truncf %79 : vector<8x32xf32> to vector<8x32xbf16>
    %c8 = arith.constant 8 : index
    %c0_17 = arith.constant 0 : index
    %81 = vector.load %arg10[%c8, %c0_17] : memref<64x64xbf16, #tpu.memory_space<vmem>>, vector<8x32xbf16>
    tpu.vector_store %arg10[%c8, %c0_17], %80 {strides = array<i32>} : memref<64x64xbf16, #tpu.memory_space<vmem>>, vector<8x32xbf16>,
    %82 = vector.extract_strided_slice %6 {offsets = [48, 128], sizes = [8, 128], strides = [1, 1]} : vector<64x256xf32> to vector<8x128xf32>
    %83 = vector.extract_strided_slice %50 {offsets = [0, 128], sizes = [8, 128], strides = [1, 1]} : vector<8x256xf32> to vector<8x128xf32>
    %84 = arith.addf %82, %83 : vector<8x128xf32>
    %85 = vector.extract_strided_slice %48 {offsets = [0, 32], sizes = [8, 32], strides = [1, 1]} : vector<8x64xf32> to vector<8x32xf32>
    %86 = vector.extract_strided_slice %84 {offsets = [0, 0], sizes = [8, 32], strides = [1, 1]} : vector<8x128xf32> to vector<8x32xf32>
    %87 = arith.negf %86 : vector<8x32xf32>
    %88 = math.exp %87 : vector<8x32xf32>
    %cst_18 = arith.constant 1.000000e+00 : f32
    %89 = vector.broadcast %cst_18 : f32 to vector<8x32xf32>
    %90 = arith.addf %89, %88 : vector<8x32xf32>
    %91 = arith.divf %89, %90 : vector<8x32xf32>
    %92 = vector.extract_strided_slice %84 {offsets = [0, 64], sizes = [8, 32], strides = [1, 1]} : vector<8x128xf32> to vector<8x32xf32>
    %93 = math.tanh %92 : vector<8x32xf32>
    %94 = vector.extract_strided_slice %84 {offsets = [0, 96], sizes = [8, 32], strides = [1, 1]} : vector<8x128xf32> to vector<8x32xf32>
    %95 = arith.negf %94 : vector<8x32xf32>
    %96 = math.exp %95 : vector<8x32xf32>
    %cst_19 = arith.constant 1.000000e+00 : f32
    %97 = vector.broadcast %cst_19 : f32 to vector<8x32xf32>
    %98 = arith.addf %97, %96 : vector<8x32xf32>
    %99 = arith.divf %97, %98 : vector<8x32xf32>
    %100 = arith.mulf %91, %93 : vector<8x32xf32>
    %101 = vector.extract_strided_slice %84 {offsets = [0, 32], sizes = [8, 32], strides = [1, 1]} : vector<8x128xf32> to vector<8x32xf32>
    %102 = arith.negf %101 : vector<8x32xf32>
    %103 = math.exp %102 : vector<8x32xf32>
    %cst_20 = arith.constant 1.000000e+00 : f32
    %104 = vector.broadcast %cst_20 : f32 to vector<8x32xf32>
    %105 = arith.addf %104, %103 : vector<8x32xf32>
    %106 = arith.divf %104, %105 : vector<8x32xf32>
    %107 = arith.mulf %106, %85 : vector<8x32xf32>
    %108 = arith.addf %100, %107 : vector<8x32xf32>
    %109 = math.tanh %108 : vector<8x32xf32>
    %110 = arith.mulf %99, %109 : vector<8x32xf32>
    %111 = arith.truncf %110 : vector<8x32xf32> to vector<8x32xbf16>
    %c48 = arith.constant 48 : index
    %c32_21 = arith.constant 32 : index
    %112 = vector.load %arg10[%c48, %c32_21] : memref<64x64xbf16, #tpu.memory_space<vmem>>, vector<8x32xbf16>
    tpu.vector_store %arg10[%c48, %c32_21], %111 {strides = array<i32>} : memref<64x64xbf16, #tpu.memory_space<vmem>>, vector<8x32xbf16>,
    %113 = tpu.concatenate %79, %110 in 1 : vector<8x32xf32>, vector<8x32xf32> -> vector<8x64xf32>
    %114 = tpu.concatenate %77, %108 in 1 : vector<8x32xf32>, vector<8x32xf32> -> vector<8x64xf32>
    %115 = arith.truncf %113 : vector<8x64xf32> to vector<8x64xbf16>
    %cst_22 = arith.constant dense<0.000000e+00> : vector<8x256xf32>
    %116 = tpu.matmul %115, %2, %cst_22 {dimension_numbers = #tpu.dot_dimension_numbers<[1], [0], [0], [1], [0, 0, 1, 1], [], []>} : vector<8x64xbf16>, vector<64x256xbf16>, vector<8x256xf32> -> vector<8x256xf32>
    %117 = vector.extract_strided_slice %6 {offsets = [16, 0], sizes = [8, 128], strides = [1, 1]} : vector<64x256xf32> to vector<8x128xf32>
    %118 = vector.extract_strided_slice %116 {offsets = [0, 0], sizes = [8, 128], strides = [1, 1]} : vector<8x256xf32> to vector<8x128xf32>
    %119 = arith.addf %117, %118 : vector<8x128xf32>
    %120 = vector.extract_strided_slice %114 {offsets = [0, 0], sizes = [8, 32], strides = [1, 1]} : vector<8x64xf32> to vector<8x32xf32>
    %121 = vector.extract_strided_slice %119 {offsets = [0, 0], sizes = [8, 32], strides = [1, 1]} : vector<8x128xf32> to vector<8x32xf32>
    %122 = arith.negf %121 : vector<8x32xf32>
    %123 = math.exp %122 : vector<8x32xf32>
    %cst_23 = arith.constant 1.000000e+00 : f32
    %124 = vector.broadcast %cst_23 : f32 to vector<8x32xf32>
    %125 = arith.addf %124, %123 : vector<8x32xf32>
    %126 = arith.divf %124, %125 : vector<8x32xf32>
    %127 = vector.extract_strided_slice %119 {offsets = [0, 64], sizes = [8, 32], strides = [1, 1]} : vector<8x128xf32> to vector<8x32xf32>
    %128 = math.tanh %127 : vector<8x32xf32>
    %129 = vector.extract_strided_slice %119 {offsets = [0, 96], sizes = [8, 32], strides = [1, 1]} : vector<8x128xf32> to vector<8x32xf32>
    %130 = arith.negf %129 : vector<8x32xf32>
    %131 = math.exp %130 : vector<8x32xf32>
    %cst_24 = arith.constant 1.000000e+00 : f32
    %132 = vector.broadcast %cst_24 : f32 to vector<8x32xf32>
    %133 = arith.addf %132, %131 : vector<8x32xf32>
    %134 = arith.divf %132, %133 : vector<8x32xf32>
    %135 = arith.mulf %126, %128 : vector<8x32xf32>
    %136 = vector.extract_strided_slice %119 {offsets = [0, 32], sizes = [8, 32], strides = [1, 1]} : vector<8x128xf32> to vector<8x32xf32>
    %137 = arith.negf %136 : vector<8x32xf32>
    %138 = math.exp %137 : vector<8x32xf32>
    %cst_25 = arith.constant 1.000000e+00 : f32
    %139 = vector.broadcast %cst_25 : f32 to vector<8x32xf32>
    %140 = arith.addf %139, %138 : vector<8x32xf32>
    %141 = arith.divf %139, %140 : vector<8x32xf32>
    %142 = arith.mulf %141, %120 : vector<8x32xf32>
    %143 = arith.addf %135, %142 : vector<8x32xf32>
    %144 = math.tanh %143 : vector<8x32xf32>
    %145 = arith.mulf %134, %144 : vector<8x32xf32>
    %146 = arith.truncf %145 : vector<8x32xf32> to vector<8x32xbf16>
    %c16 = arith.constant 16 : index
    %c0_26 = arith.constant 0 : index
    %147 = vector.load %arg10[%c16, %c0_26] : memref<64x64xbf16, #tpu.memory_space<vmem>>, vector<8x32xbf16>
    tpu.vector_store %arg10[%c16, %c0_26], %146 {strides = array<i32>} : memref<64x64xbf16, #tpu.memory_space<vmem>>, vector<8x32xbf16>,
    %148 = vector.extract_strided_slice %6 {offsets = [40, 128], sizes = [8, 128], strides = [1, 1]} : vector<64x256xf32> to vector<8x128xf32>
    %149 = vector.extract_strided_slice %116 {offsets = [0, 128], sizes = [8, 128], strides = [1, 1]} : vector<8x256xf32> to vector<8x128xf32>
    %150 = arith.addf %148, %149 : vector<8x128xf32>
    %151 = vector.extract_strided_slice %114 {offsets = [0, 32], sizes = [8, 32], strides = [1, 1]} : vector<8x64xf32> to vector<8x32xf32>
    %152 = vector.extract_strided_slice %150 {offsets = [0, 0], sizes = [8, 32], strides = [1, 1]} : vector<8x128xf32> to vector<8x32xf32>
    %153 = arith.negf %152 : vector<8x32xf32>
    %154 = math.exp %153 : vector<8x32xf32>
    %cst_27 = arith.constant 1.000000e+00 : f32
    %155 = vector.broadcast %cst_27 : f32 to vector<8x32xf32>
    %156 = arith.addf %155, %154 : vector<8x32xf32>
    %157 = arith.divf %155, %156 : vector<8x32xf32>
    %158 = vector.extract_strided_slice %150 {offsets = [0, 64], sizes = [8, 32], strides = [1, 1]} : vector<8x128xf32> to vector<8x32xf32>
    %159 = math.tanh %158 : vector<8x32xf32>
    %160 = vector.extract_strided_slice %150 {offsets = [0, 96], sizes = [8, 32], strides = [1, 1]} : vector<8x128xf32> to vector<8x32xf32>
    %161 = arith.negf %160 : vector<8x32xf32>
    %162 = math.exp %161 : vector<8x32xf32>
    %cst_28 = arith.constant 1.000000e+00 : f32
    %163 = vector.broadcast %cst_28 : f32 to vector<8x32xf32>
    %164 = arith.addf %163, %162 : vector<8x32xf32>
    %165 = arith.divf %163, %164 : vector<8x32xf32>
    %166 = arith.mulf %157, %159 : vector<8x32xf32>
    %167 = vector.extract_strided_slice %150 {offsets = [0, 32], sizes = [8, 32], strides = [1, 1]} : vector<8x128xf32> to vector<8x32xf32>
    %168 = arith.negf %167 : vector<8x32xf32>
    %169 = math.exp %168 : vector<8x32xf32>
    %cst_29 = arith.constant 1.000000e+00 : f32
    %170 = vector.broadcast %cst_29 : f32 to vector<8x32xf32>
    %171 = arith.addf %170, %169 : vector<8x32xf32>
    %172 = arith.divf %170, %171 : vector<8x32xf32>
    %173 = arith.mulf %172, %151 : vector<8x32xf32>
    %174 = arith.addf %166, %173 : vector<8x32xf32>
    %175 = math.tanh %174 : vector<8x32xf32>
    %176 = arith.mulf %165, %175 : vector<8x32xf32>
    %177 = arith.truncf %176 : vector<8x32xf32> to vector<8x32xbf16>
    %c40 = arith.constant 40 : index
    %c32_30 = arith.constant 32 : index
    %178 = vector.load %arg10[%c40, %c32_30] : memref<64x64xbf16, #tpu.memory_space<vmem>>, vector<8x32xbf16>
    tpu.vector_store %arg10[%c40, %c32_30], %177 {strides = array<i32>} : memref<64x64xbf16, #tpu.memory_space<vmem>>, vector<8x32xbf16>,
    %179 = tpu.concatenate %145, %176 in 1 : vector<8x32xf32>, vector<8x32xf32> -> vector<8x64xf32>
    %180 = tpu.concatenate %143, %174 in 1 : vector<8x32xf32>, vector<8x32xf32> -> vector<8x64xf32>
    %181 = arith.truncf %179 : vector<8x64xf32> to vector<8x64xbf16>
    %cst_31 = arith.constant dense<0.000000e+00> : vector<8x256xf32>
    %182 = tpu.matmul %181, %2, %cst_31 {dimension_numbers = #tpu.dot_dimension_numbers<[1], [0], [0], [1], [0, 0, 1, 1], [], []>} : vector<8x64xbf16>, vector<64x256xbf16>, vector<8x256xf32> -> vector<8x256xf32>
    %183 = vector.extract_strided_slice %6 {offsets = [24, 0], sizes = [8, 128], strides = [1, 1]} : vector<64x256xf32> to vector<8x128xf32>
    %184 = vector.extract_strided_slice %182 {offsets = [0, 0], sizes = [8, 128], strides = [1, 1]} : vector<8x256xf32> to vector<8x128xf32>
    %185 = arith.addf %183, %184 : vector<8x128xf32>
    %186 = vector.extract_strided_slice %180 {offsets = [0, 0], sizes = [8, 32], strides = [1, 1]} : vector<8x64xf32> to vector<8x32xf32>
    %187 = vector.extract_strided_slice %185 {offsets = [0, 0], sizes = [8, 32], strides = [1, 1]} : vector<8x128xf32> to vector<8x32xf32>
    %188 = arith.negf %187 : vector<8x32xf32>
    %189 = math.exp %188 : vector<8x32xf32>
    %cst_32 = arith.constant 1.000000e+00 : f32
    %190 = vector.broadcast %cst_32 : f32 to vector<8x32xf32>
    %191 = arith.addf %190, %189 : vector<8x32xf32>
    %192 = arith.divf %190, %191 : vector<8x32xf32>
    %193 = vector.extract_strided_slice %185 {offsets = [0, 64], sizes = [8, 32], strides = [1, 1]} : vector<8x128xf32> to vector<8x32xf32>
    %194 = math.tanh %193 : vector<8x32xf32>
    %195 = vector.extract_strided_slice %185 {offsets = [0, 96], sizes = [8, 32], strides = [1, 1]} : vector<8x128xf32> to vector<8x32xf32>
    %196 = arith.negf %195 : vector<8x32xf32>
    %197 = math.exp %196 : vector<8x32xf32>
    %cst_33 = arith.constant 1.000000e+00 : f32
    %198 = vector.broadcast %cst_33 : f32 to vector<8x32xf32>
    %199 = arith.addf %198, %197 : vector<8x32xf32>
    %200 = arith.divf %198, %199 : vector<8x32xf32>
    %201 = arith.mulf %192, %194 : vector<8x32xf32>
    %202 = vector.extract_strided_slice %185 {offsets = [0, 32], sizes = [8, 32], strides = [1, 1]} : vector<8x128xf32> to vector<8x32xf32>
    %203 = arith.negf %202 : vector<8x32xf32>
    %204 = math.exp %203 : vector<8x32xf32>
    %cst_34 = arith.constant 1.000000e+00 : f32
    %205 = vector.broadcast %cst_34 : f32 to vector<8x32xf32>
    %206 = arith.addf %205, %204 : vector<8x32xf32>
    %207 = arith.divf %205, %206 : vector<8x32xf32>
    %208 = arith.mulf %207, %186 : vector<8x32xf32>
    %209 = arith.addf %201, %208 : vector<8x32xf32>
    %210 = math.tanh %209 : vector<8x32xf32>
    %211 = arith.mulf %200, %210 : vector<8x32xf32>
    %212 = arith.truncf %211 : vector<8x32xf32> to vector<8x32xbf16>
    %c24 = arith.constant 24 : index
    %c0_35 = arith.constant 0 : index
    %213 = vector.load %arg10[%c24, %c0_35] : memref<64x64xbf16, #tpu.memory_space<vmem>>, vector<8x32xbf16>
    tpu.vector_store %arg10[%c24, %c0_35], %212 {strides = array<i32>} : memref<64x64xbf16, #tpu.memory_space<vmem>>, vector<8x32xbf16>,
    %214 = vector.extract_strided_slice %6 {offsets = [32, 128], sizes = [8, 128], strides = [1, 1]} : vector<64x256xf32> to vector<8x128xf32>
    %215 = vector.extract_strided_slice %182 {offsets = [0, 128], sizes = [8, 128], strides = [1, 1]} : vector<8x256xf32> to vector<8x128xf32>
    %216 = arith.addf %214, %215 : vector<8x128xf32>
    %217 = vector.extract_strided_slice %180 {offsets = [0, 32], sizes = [8, 32], strides = [1, 1]} : vector<8x64xf32> to vector<8x32xf32>
    %218 = vector.extract_strided_slice %216 {offsets = [0, 0], sizes = [8, 32], strides = [1, 1]} : vector<8x128xf32> to vector<8x32xf32>
    %219 = arith.negf %218 : vector<8x32xf32>
    %220 = math.exp %219 : vector<8x32xf32>
    %cst_36 = arith.constant 1.000000e+00 : f32
    %221 = vector.broadcast %cst_36 : f32 to vector<8x32xf32>
    %222 = arith.addf %221, %220 : vector<8x32xf32>
    %223 = arith.divf %221, %222 : vector<8x32xf32>
    %224 = vector.extract_strided_slice %216 {offsets = [0, 64], sizes = [8, 32], strides = [1, 1]} : vector<8x128xf32> to vector<8x32xf32>
    %225 = math.tanh %224 : vector<8x32xf32>
    %226 = vector.extract_strided_slice %216 {offsets = [0, 96], sizes = [8, 32], strides = [1, 1]} : vector<8x128xf32> to vector<8x32xf32>
    %227 = arith.negf %226 : vector<8x32xf32>
    %228 = math.exp %227 : vector<8x32xf32>
    %cst_37 = arith.constant 1.000000e+00 : f32
    %229 = vector.broadcast %cst_37 : f32 to vector<8x32xf32>
    %230 = arith.addf %229, %228 : vector<8x32xf32>
    %231 = arith.divf %229, %230 : vector<8x32xf32>
    %232 = arith.mulf %223, %225 : vector<8x32xf32>
    %233 = vector.extract_strided_slice %216 {offsets = [0, 32], sizes = [8, 32], strides = [1, 1]} : vector<8x128xf32> to vector<8x32xf32>
    %234 = arith.negf %233 : vector<8x32xf32>
    %235 = math.exp %234 : vector<8x32xf32>
    %cst_38 = arith.constant 1.000000e+00 : f32
    %236 = vector.broadcast %cst_38 : f32 to vector<8x32xf32>
    %237 = arith.addf %236, %235 : vector<8x32xf32>
    %238 = arith.divf %236, %237 : vector<8x32xf32>
    %239 = arith.mulf %238, %217 : vector<8x32xf32>
    %240 = arith.addf %232, %239 : vector<8x32xf32>
    %241 = math.tanh %240 : vector<8x32xf32>
    %242 = arith.mulf %231, %241 : vector<8x32xf32>
    %243 = arith.truncf %242 : vector<8x32xf32> to vector<8x32xbf16>
    %c32_39 = arith.constant 32 : index
    %c32_40 = arith.constant 32 : index
    %244 = vector.load %arg10[%c32_39, %c32_40] : memref<64x64xbf16, #tpu.memory_space<vmem>>, vector<8x32xbf16>
    tpu.vector_store %arg10[%c32_39, %c32_40], %243 {strides = array<i32>} : memref<64x64xbf16, #tpu.memory_space<vmem>>, vector<8x32xbf16>,
    %245 = tpu.concatenate %211, %242 in 1 : vector<8x32xf32>, vector<8x32xf32> -> vector<8x64xf32>
    %246 = tpu.concatenate %209, %240 in 1 : vector<8x32xf32>, vector<8x32xf32> -> vector<8x64xf32>
    %247 = arith.truncf %245 : vector<8x64xf32> to vector<8x64xbf16>
    %cst_41 = arith.constant dense<0.000000e+00> : vector<8x256xf32>
    %248 = tpu.matmul %247, %2, %cst_41 {dimension_numbers = #tpu.dot_dimension_numbers<[1], [0], [0], [1], [0, 0, 1, 1], [], []>} : vector<8x64xbf16>, vector<64x256xbf16>, vector<8x256xf32> -> vector<8x256xf32>
    %249 = vector.extract_strided_slice %6 {offsets = [32, 0], sizes = [8, 128], strides = [1, 1]} : vector<64x256xf32> to vector<8x128xf32>
    %250 = vector.extract_strided_slice %248 {offsets = [0, 0], sizes = [8, 128], strides = [1, 1]} : vector<8x256xf32> to vector<8x128xf32>
    %251 = arith.addf %249, %250 : vector<8x128xf32>
    %252 = vector.extract_strided_slice %246 {offsets = [0, 0], sizes = [8, 32], strides = [1, 1]} : vector<8x64xf32> to vector<8x32xf32>
    %253 = vector.extract_strided_slice %251 {offsets = [0, 0], sizes = [8, 32], strides = [1, 1]} : vector<8x128xf32> to vector<8x32xf32>
    %254 = arith.negf %253 : vector<8x32xf32>
    %255 = math.exp %254 : vector<8x32xf32>
    %cst_42 = arith.constant 1.000000e+00 : f32
    %256 = vector.broadcast %cst_42 : f32 to vector<8x32xf32>
    %257 = arith.addf %256, %255 : vector<8x32xf32>
    %258 = arith.divf %256, %257 : vector<8x32xf32>
    %259 = vector.extract_strided_slice %251 {offsets = [0, 64], sizes = [8, 32], strides = [1, 1]} : vector<8x128xf32> to vector<8x32xf32>
    %260 = math.tanh %259 : vector<8x32xf32>
    %261 = vector.extract_strided_slice %251 {offsets = [0, 96], sizes = [8, 32], strides = [1, 1]} : vector<8x128xf32> to vector<8x32xf32>
    %262 = arith.negf %261 : vector<8x32xf32>
    %263 = math.exp %262 : vector<8x32xf32>
    %cst_43 = arith.constant 1.000000e+00 : f32
    %264 = vector.broadcast %cst_43 : f32 to vector<8x32xf32>
    %265 = arith.addf %264, %263 : vector<8x32xf32>
    %266 = arith.divf %264, %265 : vector<8x32xf32>
    %267 = arith.mulf %258, %260 : vector<8x32xf32>
    %268 = vector.extract_strided_slice %251 {offsets = [0, 32], sizes = [8, 32], strides = [1, 1]} : vector<8x128xf32> to vector<8x32xf32>
    %269 = arith.negf %268 : vector<8x32xf32>
    %270 = math.exp %269 : vector<8x32xf32>
    %cst_44 = arith.constant 1.000000e+00 : f32
    %271 = vector.broadcast %cst_44 : f32 to vector<8x32xf32>
    %272 = arith.addf %271, %270 : vector<8x32xf32>
    %273 = arith.divf %271, %272 : vector<8x32xf32>
    %274 = arith.mulf %273, %252 : vector<8x32xf32>
    %275 = arith.addf %267, %274 : vector<8x32xf32>
    %276 = math.tanh %275 : vector<8x32xf32>
    %277 = arith.mulf %266, %276 : vector<8x32xf32>
    %278 = arith.truncf %277 : vector<8x32xf32> to vector<8x32xbf16>
    %c32_45 = arith.constant 32 : index
    %c0_46 = arith.constant 0 : index
    %279 = vector.load %arg10[%c32_45, %c0_46] : memref<64x64xbf16, #tpu.memory_space<vmem>>, vector<8x32xbf16>
    tpu.vector_store %arg10[%c32_45, %c0_46], %278 {strides = array<i32>} : memref<64x64xbf16, #tpu.memory_space<vmem>>, vector<8x32xbf16>,
    %280 = vector.extract_strided_slice %6 {offsets = [24, 128], sizes = [8, 128], strides = [1, 1]} : vector<64x256xf32> to vector<8x128xf32>
    %281 = vector.extract_strided_slice %248 {offsets = [0, 128], sizes = [8, 128], strides = [1, 1]} : vector<8x256xf32> to vector<8x128xf32>
    %282 = arith.addf %280, %281 : vector<8x128xf32>
    %283 = vector.extract_strided_slice %246 {offsets = [0, 32], sizes = [8, 32], strides = [1, 1]} : vector<8x64xf32> to vector<8x32xf32>
    %284 = vector.extract_strided_slice %282 {offsets = [0, 0], sizes = [8, 32], strides = [1, 1]} : vector<8x128xf32> to vector<8x32xf32>
    %285 = arith.negf %284 : vector<8x32xf32>
    %286 = math.exp %285 : vector<8x32xf32>
    %cst_47 = arith.constant 1.000000e+00 : f32
    %287 = vector.broadcast %cst_47 : f32 to vector<8x32xf32>
    %288 = arith.addf %287, %286 : vector<8x32xf32>
    %289 = arith.divf %287, %288 : vector<8x32xf32>
    %290 = vector.extract_strided_slice %282 {offsets = [0, 64], sizes = [8, 32], strides = [1, 1]} : vector<8x128xf32> to vector<8x32xf32>
    %291 = math.tanh %290 : vector<8x32xf32>
    %292 = vector.extract_strided_slice %282 {offsets = [0, 96], sizes = [8, 32], strides = [1, 1]} : vector<8x128xf32> to vector<8x32xf32>
    %293 = arith.negf %292 : vector<8x32xf32>
    %294 = math.exp %293 : vector<8x32xf32>
    %cst_48 = arith.constant 1.000000e+00 : f32
    %295 = vector.broadcast %cst_48 : f32 to vector<8x32xf32>
    %296 = arith.addf %295, %294 : vector<8x32xf32>
    %297 = arith.divf %295, %296 : vector<8x32xf32>
    %298 = arith.mulf %289, %291 : vector<8x32xf32>
    %299 = vector.extract_strided_slice %282 {offsets = [0, 32], sizes = [8, 32], strides = [1, 1]} : vector<8x128xf32> to vector<8x32xf32>
    %300 = arith.negf %299 : vector<8x32xf32>
    %301 = math.exp %300 : vector<8x32xf32>
    %cst_49 = arith.constant 1.000000e+00 : f32
    %302 = vector.broadcast %cst_49 : f32 to vector<8x32xf32>
    %303 = arith.addf %302, %301 : vector<8x32xf32>
    %304 = arith.divf %302, %303 : vector<8x32xf32>
    %305 = arith.mulf %304, %283 : vector<8x32xf32>
    %306 = arith.addf %298, %305 : vector<8x32xf32>
    %307 = math.tanh %306 : vector<8x32xf32>
    %308 = arith.mulf %297, %307 : vector<8x32xf32>
    %309 = arith.truncf %308 : vector<8x32xf32> to vector<8x32xbf16>
    %c24_50 = arith.constant 24 : index
    %c32_51 = arith.constant 32 : index
    %310 = vector.load %arg10[%c24_50, %c32_51] : memref<64x64xbf16, #tpu.memory_space<vmem>>, vector<8x32xbf16>
    tpu.vector_store %arg10[%c24_50, %c32_51], %309 {strides = array<i32>} : memref<64x64xbf16, #tpu.memory_space<vmem>>, vector<8x32xbf16>,
    %311 = tpu.concatenate %277, %308 in 1 : vector<8x32xf32>, vector<8x32xf32> -> vector<8x64xf32>
    %312 = tpu.concatenate %275, %306 in 1 : vector<8x32xf32>, vector<8x32xf32> -> vector<8x64xf32>
    %313 = arith.truncf %311 : vector<8x64xf32> to vector<8x64xbf16>
    %cst_52 = arith.constant dense<0.000000e+00> : vector<8x256xf32>
    %314 = tpu.matmul %313, %2, %cst_52 {dimension_numbers = #tpu.dot_dimension_numbers<[1], [0], [0], [1], [0, 0, 1, 1], [], []>} : vector<8x64xbf16>, vector<64x256xbf16>, vector<8x256xf32> -> vector<8x256xf32>
    %315 = vector.extract_strided_slice %6 {offsets = [40, 0], sizes = [8, 128], strides = [1, 1]} : vector<64x256xf32> to vector<8x128xf32>
    %316 = vector.extract_strided_slice %314 {offsets = [0, 0], sizes = [8, 128], strides = [1, 1]} : vector<8x256xf32> to vector<8x128xf32>
    %317 = arith.addf %315, %316 : vector<8x128xf32>
    %318 = vector.extract_strided_slice %312 {offsets = [0, 0], sizes = [8, 32], strides = [1, 1]} : vector<8x64xf32> to vector<8x32xf32>
    %319 = vector.extract_strided_slice %317 {offsets = [0, 0], sizes = [8, 32], strides = [1, 1]} : vector<8x128xf32> to vector<8x32xf32>
    %320 = arith.negf %319 : vector<8x32xf32>
    %321 = math.exp %320 : vector<8x32xf32>
    %cst_53 = arith.constant 1.000000e+00 : f32
    %322 = vector.broadcast %cst_53 : f32 to vector<8x32xf32>
    %323 = arith.addf %322, %321 : vector<8x32xf32>
    %324 = arith.divf %322, %323 : vector<8x32xf32>
    %325 = vector.extract_strided_slice %317 {offsets = [0, 64], sizes = [8, 32], strides = [1, 1]} : vector<8x128xf32> to vector<8x32xf32>
    %326 = math.tanh %325 : vector<8x32xf32>
    %327 = vector.extract_strided_slice %317 {offsets = [0, 96], sizes = [8, 32], strides = [1, 1]} : vector<8x128xf32> to vector<8x32xf32>
    %328 = arith.negf %327 : vector<8x32xf32>
    %329 = math.exp %328 : vector<8x32xf32>
    %cst_54 = arith.constant 1.000000e+00 : f32
    %330 = vector.broadcast %cst_54 : f32 to vector<8x32xf32>
    %331 = arith.addf %330, %329 : vector<8x32xf32>
    %332 = arith.divf %330, %331 : vector<8x32xf32>
    %333 = arith.mulf %324, %326 : vector<8x32xf32>
    %334 = vector.extract_strided_slice %317 {offsets = [0, 32], sizes = [8, 32], strides = [1, 1]} : vector<8x128xf32> to vector<8x32xf32>
    %335 = arith.negf %334 : vector<8x32xf32>
    %336 = math.exp %335 : vector<8x32xf32>
    %cst_55 = arith.constant 1.000000e+00 : f32
    %337 = vector.broadcast %cst_55 : f32 to vector<8x32xf32>
    %338 = arith.addf %337, %336 : vector<8x32xf32>
    %339 = arith.divf %337, %338 : vector<8x32xf32>
    %340 = arith.mulf %339, %318 : vector<8x32xf32>
    %341 = arith.addf %333, %340 : vector<8x32xf32>
    %342 = math.tanh %341 : vector<8x32xf32>
    %343 = arith.mulf %332, %342 : vector<8x32xf32>
    %344 = arith.truncf %343 : vector<8x32xf32> to vector<8x32xbf16>
    %c40_56 = arith.constant 40 : index
    %c0_57 = arith.constant 0 : index
    %345 = vector.load %arg10[%c40_56, %c0_57] : memref<64x64xbf16, #tpu.memory_space<vmem>>, vector<8x32xbf16>
    tpu.vector_store %arg10[%c40_56, %c0_57], %344 {strides = array<i32>} : memref<64x64xbf16, #tpu.memory_space<vmem>>, vector<8x32xbf16>,
    %346 = vector.extract_strided_slice %6 {offsets = [16, 128], sizes = [8, 128], strides = [1, 1]} : vector<64x256xf32> to vector<8x128xf32>
    %347 = vector.extract_strided_slice %314 {offsets = [0, 128], sizes = [8, 128], strides = [1, 1]} : vector<8x256xf32> to vector<8x128xf32>
    %348 = arith.addf %346, %347 : vector<8x128xf32>
    %349 = vector.extract_strided_slice %312 {offsets = [0, 32], sizes = [8, 32], strides = [1, 1]} : vector<8x64xf32> to vector<8x32xf32>
    %350 = vector.extract_strided_slice %348 {offsets = [0, 0], sizes = [8, 32], strides = [1, 1]} : vector<8x128xf32> to vector<8x32xf32>
    %351 = arith.negf %350 : vector<8x32xf32>
    %352 = math.exp %351 : vector<8x32xf32>
    %cst_58 = arith.constant 1.000000e+00 : f32
    %353 = vector.broadcast %cst_58 : f32 to vector<8x32xf32>
    %354 = arith.addf %353, %352 : vector<8x32xf32>
    %355 = arith.divf %353, %354 : vector<8x32xf32>
    %356 = vector.extract_strided_slice %348 {offsets = [0, 64], sizes = [8, 32], strides = [1, 1]} : vector<8x128xf32> to vector<8x32xf32>
    %357 = math.tanh %356 : vector<8x32xf32>
    %358 = vector.extract_strided_slice %348 {offsets = [0, 96], sizes = [8, 32], strides = [1, 1]} : vector<8x128xf32> to vector<8x32xf32>
    %359 = arith.negf %358 : vector<8x32xf32>
    %360 = math.exp %359 : vector<8x32xf32>
    %cst_59 = arith.constant 1.000000e+00 : f32
    %361 = vector.broadcast %cst_59 : f32 to vector<8x32xf32>
    %362 = arith.addf %361, %360 : vector<8x32xf32>
    %363 = arith.divf %361, %362 : vector<8x32xf32>
    %364 = arith.mulf %355, %357 : vector<8x32xf32>
    %365 = vector.extract_strided_slice %348 {offsets = [0, 32], sizes = [8, 32], strides = [1, 1]} : vector<8x128xf32> to vector<8x32xf32>
    %366 = arith.negf %365 : vector<8x32xf32>
    %367 = math.exp %366 : vector<8x32xf32>
    %cst_60 = arith.constant 1.000000e+00 : f32
    %368 = vector.broadcast %cst_60 : f32 to vector<8x32xf32>
    %369 = arith.addf %368, %367 : vector<8x32xf32>
    %370 = arith.divf %368, %369 : vector<8x32xf32>
    %371 = arith.mulf %370, %349 : vector<8x32xf32>
    %372 = arith.addf %364, %371 : vector<8x32xf32>
    %373 = math.tanh %372 : vector<8x32xf32>
    %374 = arith.mulf %363, %373 : vector<8x32xf32>
    %375 = arith.truncf %374 : vector<8x32xf32> to vector<8x32xbf16>
    %c16_61 = arith.constant 16 : index
    %c32_62 = arith.constant 32 : index
    %376 = vector.load %arg10[%c16_61, %c32_62] : memref<64x64xbf16, #tpu.memory_space<vmem>>, vector<8x32xbf16>
    tpu.vector_store %arg10[%c16_61, %c32_62], %375 {strides = array<i32>} : memref<64x64xbf16, #tpu.memory_space<vmem>>, vector<8x32xbf16>,
    %377 = tpu.concatenate %343, %374 in 1 : vector<8x32xf32>, vector<8x32xf32> -> vector<8x64xf32>
    %378 = tpu.concatenate %341, %372 in 1 : vector<8x32xf32>, vector<8x32xf32> -> vector<8x64xf32>
    %379 = arith.truncf %377 : vector<8x64xf32> to vector<8x64xbf16>
    %cst_63 = arith.constant dense<0.000000e+00> : vector<8x256xf32>
    %380 = tpu.matmul %379, %2, %cst_63 {dimension_numbers = #tpu.dot_dimension_numbers<[1], [0], [0], [1], [0, 0, 1, 1], [], []>} : vector<8x64xbf16>, vector<64x256xbf16>, vector<8x256xf32> -> vector<8x256xf32>
    %381 = vector.extract_strided_slice %6 {offsets = [48, 0], sizes = [8, 128], strides = [1, 1]} : vector<64x256xf32> to vector<8x128xf32>
    %382 = vector.extract_strided_slice %380 {offsets = [0, 0], sizes = [8, 128], strides = [1, 1]} : vector<8x256xf32> to vector<8x128xf32>
    %383 = arith.addf %381, %382 : vector<8x128xf32>
    %384 = vector.extract_strided_slice %378 {offsets = [0, 0], sizes = [8, 32], strides = [1, 1]} : vector<8x64xf32> to vector<8x32xf32>
    %385 = vector.extract_strided_slice %383 {offsets = [0, 0], sizes = [8, 32], strides = [1, 1]} : vector<8x128xf32> to vector<8x32xf32>
    %386 = arith.negf %385 : vector<8x32xf32>
    %387 = math.exp %386 : vector<8x32xf32>
    %cst_64 = arith.constant 1.000000e+00 : f32
    %388 = vector.broadcast %cst_64 : f32 to vector<8x32xf32>
    %389 = arith.addf %388, %387 : vector<8x32xf32>
    %390 = arith.divf %388, %389 : vector<8x32xf32>
    %391 = vector.extract_strided_slice %383 {offsets = [0, 64], sizes = [8, 32], strides = [1, 1]} : vector<8x128xf32> to vector<8x32xf32>
    %392 = math.tanh %391 : vector<8x32xf32>
    %393 = vector.extract_strided_slice %383 {offsets = [0, 96], sizes = [8, 32], strides = [1, 1]} : vector<8x128xf32> to vector<8x32xf32>
    %394 = arith.negf %393 : vector<8x32xf32>
    %395 = math.exp %394 : vector<8x32xf32>
    %cst_65 = arith.constant 1.000000e+00 : f32
    %396 = vector.broadcast %cst_65 : f32 to vector<8x32xf32>
    %397 = arith.addf %396, %395 : vector<8x32xf32>
    %398 = arith.divf %396, %397 : vector<8x32xf32>
    %399 = arith.mulf %390, %392 : vector<8x32xf32>
    %400 = vector.extract_strided_slice %383 {offsets = [0, 32], sizes = [8, 32], strides = [1, 1]} : vector<8x128xf32> to vector<8x32xf32>
    %401 = arith.negf %400 : vector<8x32xf32>
    %402 = math.exp %401 : vector<8x32xf32>
    %cst_66 = arith.constant 1.000000e+00 : f32
    %403 = vector.broadcast %cst_66 : f32 to vector<8x32xf32>
    %404 = arith.addf %403, %402 : vector<8x32xf32>
    %405 = arith.divf %403, %404 : vector<8x32xf32>
    %406 = arith.mulf %405, %384 : vector<8x32xf32>
    %407 = arith.addf %399, %406 : vector<8x32xf32>
    %408 = math.tanh %407 : vector<8x32xf32>
    %409 = arith.mulf %398, %408 : vector<8x32xf32>
    %410 = arith.truncf %409 : vector<8x32xf32> to vector<8x32xbf16>
    %c48_67 = arith.constant 48 : index
    %c0_68 = arith.constant 0 : index
    %411 = vector.load %arg10[%c48_67, %c0_68] : memref<64x64xbf16, #tpu.memory_space<vmem>>, vector<8x32xbf16>
    tpu.vector_store %arg10[%c48_67, %c0_68], %410 {strides = array<i32>} : memref<64x64xbf16, #tpu.memory_space<vmem>>, vector<8x32xbf16>,
    %412 = vector.extract_strided_slice %6 {offsets = [8, 128], sizes = [8, 128], strides = [1, 1]} : vector<64x256xf32> to vector<8x128xf32>
    %413 = vector.extract_strided_slice %380 {offsets = [0, 128], sizes = [8, 128], strides = [1, 1]} : vector<8x256xf32> to vector<8x128xf32>
    %414 = arith.addf %412, %413 : vector<8x128xf32>
    %415 = vector.extract_strided_slice %378 {offsets = [0, 32], sizes = [8, 32], strides = [1, 1]} : vector<8x64xf32> to vector<8x32xf32>
    %416 = vector.extract_strided_slice %414 {offsets = [0, 0], sizes = [8, 32], strides = [1, 1]} : vector<8x128xf32> to vector<8x32xf32>
    %417 = arith.negf %416 : vector<8x32xf32>
    %418 = math.exp %417 : vector<8x32xf32>
    %cst_69 = arith.constant 1.000000e+00 : f32
    %419 = vector.broadcast %cst_69 : f32 to vector<8x32xf32>
    %420 = arith.addf %419, %418 : vector<8x32xf32>
    %421 = arith.divf %419, %420 : vector<8x32xf32>
    %422 = vector.extract_strided_slice %414 {offsets = [0, 64], sizes = [8, 32], strides = [1, 1]} : vector<8x128xf32> to vector<8x32xf32>
    %423 = math.tanh %422 : vector<8x32xf32>
    %424 = vector.extract_strided_slice %414 {offsets = [0, 96], sizes = [8, 32], strides = [1, 1]} : vector<8x128xf32> to vector<8x32xf32>
    %425 = arith.negf %424 : vector<8x32xf32>
    %426 = math.exp %425 : vector<8x32xf32>
    %cst_70 = arith.constant 1.000000e+00 : f32
    %427 = vector.broadcast %cst_70 : f32 to vector<8x32xf32>
    %428 = arith.addf %427, %426 : vector<8x32xf32>
    %429 = arith.divf %427, %428 : vector<8x32xf32>
    %430 = arith.mulf %421, %423 : vector<8x32xf32>
    %431 = vector.extract_strided_slice %414 {offsets = [0, 32], sizes = [8, 32], strides = [1, 1]} : vector<8x128xf32> to vector<8x32xf32>
    %432 = arith.negf %431 : vector<8x32xf32>
    %433 = math.exp %432 : vector<8x32xf32>
    %cst_71 = arith.constant 1.000000e+00 : f32
    %434 = vector.broadcast %cst_71 : f32 to vector<8x32xf32>
    %435 = arith.addf %434, %433 : vector<8x32xf32>
    %436 = arith.divf %434, %435 : vector<8x32xf32>
    %437 = arith.mulf %436, %415 : vector<8x32xf32>
    %438 = arith.addf %430, %437 : vector<8x32xf32>
    %439 = math.tanh %438 : vector<8x32xf32>
    %440 = arith.mulf %429, %439 : vector<8x32xf32>
    %441 = arith.truncf %440 : vector<8x32xf32> to vector<8x32xbf16>
    %c8_72 = arith.constant 8 : index
    %c32_73 = arith.constant 32 : index
    %442 = vector.load %arg10[%c8_72, %c32_73] : memref<64x64xbf16, #tpu.memory_space<vmem>>, vector<8x32xbf16>
    tpu.vector_store %arg10[%c8_72, %c32_73], %441 {strides = array<i32>} : memref<64x64xbf16, #tpu.memory_space<vmem>>, vector<8x32xbf16>,
    %443 = tpu.concatenate %409, %440 in 1 : vector<8x32xf32>, vector<8x32xf32> -> vector<8x64xf32>
    %444 = tpu.concatenate %407, %438 in 1 : vector<8x32xf32>, vector<8x32xf32> -> vector<8x64xf32>
    %445 = arith.truncf %443 : vector<8x64xf32> to vector<8x64xbf16>
    %cst_74 = arith.constant dense<0.000000e+00> : vector<8x256xf32>
    %446 = tpu.matmul %445, %2, %cst_74 {dimension_numbers = #tpu.dot_dimension_numbers<[1], [0], [0], [1], [0, 0, 1, 1], [], []>} : vector<8x64xbf16>, vector<64x256xbf16>, vector<8x256xf32> -> vector<8x256xf32>
    %447 = vector.extract_strided_slice %6 {offsets = [56, 0], sizes = [8, 128], strides = [1, 1]} : vector<64x256xf32> to vector<8x128xf32>
    %448 = vector.extract_strided_slice %446 {offsets = [0, 0], sizes = [8, 128], strides = [1, 1]} : vector<8x256xf32> to vector<8x128xf32>
    %449 = arith.addf %447, %448 : vector<8x128xf32>
    %450 = vector.extract_strided_slice %444 {offsets = [0, 0], sizes = [8, 32], strides = [1, 1]} : vector<8x64xf32> to vector<8x32xf32>
    %451 = vector.extract_strided_slice %449 {offsets = [0, 0], sizes = [8, 32], strides = [1, 1]} : vector<8x128xf32> to vector<8x32xf32>
    %452 = arith.negf %451 : vector<8x32xf32>
    %453 = math.exp %452 : vector<8x32xf32>
    %cst_75 = arith.constant 1.000000e+00 : f32
    %454 = vector.broadcast %cst_75 : f32 to vector<8x32xf32>
    %455 = arith.addf %454, %453 : vector<8x32xf32>
    %456 = arith.divf %454, %455 : vector<8x32xf32>
    %457 = vector.extract_strided_slice %449 {offsets = [0, 64], sizes = [8, 32], strides = [1, 1]} : vector<8x128xf32> to vector<8x32xf32>
    %458 = math.tanh %457 : vector<8x32xf32>
    %459 = vector.extract_strided_slice %449 {offsets = [0, 96], sizes = [8, 32], strides = [1, 1]} : vector<8x128xf32> to vector<8x32xf32>
    %460 = arith.negf %459 : vector<8x32xf32>
    %461 = math.exp %460 : vector<8x32xf32>
    %cst_76 = arith.constant 1.000000e+00 : f32
    %462 = vector.broadcast %cst_76 : f32 to vector<8x32xf32>
    %463 = arith.addf %462, %461 : vector<8x32xf32>
    %464 = arith.divf %462, %463 : vector<8x32xf32>
    %465 = arith.mulf %456, %458 : vector<8x32xf32>
    %466 = vector.extract_strided_slice %449 {offsets = [0, 32], sizes = [8, 32], strides = [1, 1]} : vector<8x128xf32> to vector<8x32xf32>
    %467 = arith.negf %466 : vector<8x32xf32>
    %468 = math.exp %467 : vector<8x32xf32>
    %cst_77 = arith.constant 1.000000e+00 : f32
    %469 = vector.broadcast %cst_77 : f32 to vector<8x32xf32>
    %470 = arith.addf %469, %468 : vector<8x32xf32>
    %471 = arith.divf %469, %470 : vector<8x32xf32>
    %472 = arith.mulf %471, %450 : vector<8x32xf32>
    %473 = arith.addf %465, %472 : vector<8x32xf32>
    %474 = math.tanh %473 : vector<8x32xf32>
    %475 = arith.mulf %464, %474 : vector<8x32xf32>
    %476 = arith.truncf %475 : vector<8x32xf32> to vector<8x32xbf16>
    %c56_78 = arith.constant 56 : index
    %c0_79 = arith.constant 0 : index
    %477 = vector.load %arg10[%c56_78, %c0_79] : memref<64x64xbf16, #tpu.memory_space<vmem>>, vector<8x32xbf16>
    tpu.vector_store %arg10[%c56_78, %c0_79], %476 {strides = array<i32>} : memref<64x64xbf16, #tpu.memory_space<vmem>>, vector<8x32xbf16>,
    %478 = vector.extract_strided_slice %6 {offsets = [0, 128], sizes = [8, 128], strides = [1, 1]} : vector<64x256xf32> to vector<8x128xf32>
    %479 = vector.extract_strided_slice %446 {offsets = [0, 128], sizes = [8, 128], strides = [1, 1]} : vector<8x256xf32> to vector<8x128xf32>
    %480 = arith.addf %478, %479 : vector<8x128xf32>
    %481 = vector.extract_strided_slice %444 {offsets = [0, 32], sizes = [8, 32], strides = [1, 1]} : vector<8x64xf32> to vector<8x32xf32>
    %482 = vector.extract_strided_slice %480 {offsets = [0, 0], sizes = [8, 32], strides = [1, 1]} : vector<8x128xf32> to vector<8x32xf32>
    %483 = arith.negf %482 : vector<8x32xf32>
    %484 = math.exp %483 : vector<8x32xf32>
    %cst_80 = arith.constant 1.000000e+00 : f32
    %485 = vector.broadcast %cst_80 : f32 to vector<8x32xf32>
    %486 = arith.addf %485, %484 : vector<8x32xf32>
    %487 = arith.divf %485, %486 : vector<8x32xf32>
    %488 = vector.extract_strided_slice %480 {offsets = [0, 64], sizes = [8, 32], strides = [1, 1]} : vector<8x128xf32> to vector<8x32xf32>
    %489 = math.tanh %488 : vector<8x32xf32>
    %490 = vector.extract_strided_slice %480 {offsets = [0, 96], sizes = [8, 32], strides = [1, 1]} : vector<8x128xf32> to vector<8x32xf32>
    %491 = arith.negf %490 : vector<8x32xf32>
    %492 = math.exp %491 : vector<8x32xf32>
    %cst_81 = arith.constant 1.000000e+00 : f32
    %493 = vector.broadcast %cst_81 : f32 to vector<8x32xf32>
    %494 = arith.addf %493, %492 : vector<8x32xf32>
    %495 = arith.divf %493, %494 : vector<8x32xf32>
    %496 = arith.mulf %487, %489 : vector<8x32xf32>
    %497 = vector.extract_strided_slice %480 {offsets = [0, 32], sizes = [8, 32], strides = [1, 1]} : vector<8x128xf32> to vector<8x32xf32>
    %498 = arith.negf %497 : vector<8x32xf32>
    %499 = math.exp %498 : vector<8x32xf32>
    %cst_82 = arith.constant 1.000000e+00 : f32
    %500 = vector.broadcast %cst_82 : f32 to vector<8x32xf32>
    %501 = arith.addf %500, %499 : vector<8x32xf32>
    %502 = arith.divf %500, %501 : vector<8x32xf32>
    %503 = arith.mulf %502, %481 : vector<8x32xf32>
    %504 = arith.addf %496, %503 : vector<8x32xf32>
    %505 = math.tanh %504 : vector<8x32xf32>
    %506 = arith.mulf %495, %505 : vector<8x32xf32>
    %507 = arith.truncf %506 : vector<8x32xf32> to vector<8x32xbf16>
    %c0_83 = arith.constant 0 : index
    %c32_84 = arith.constant 32 : index
    %508 = vector.load %arg10[%c0_83, %c32_84] : memref<64x64xbf16, #tpu.memory_space<vmem>>, vector<8x32xbf16>
    tpu.vector_store %arg10[%c0_83, %c32_84], %507 {strides = array<i32>} : memref<64x64xbf16, #tpu.memory_space<vmem>>, vector<8x32xbf16>,
    %c0_85 = arith.constant 0 : index
    %c0_86 = arith.constant 0 : index
    %509 = vector.load %arg10[%c0_85, %c0_86] : memref<64x64xbf16, #tpu.memory_space<vmem>>, vector<64x64xbf16>
    %c0_87 = arith.constant 0 : index
    %c0_88 = arith.constant 0 : index
    %510 = vector.load %arg4[%c0_87, %c0_88] : memref<64x256xbf16, #tpu.memory_space<vmem>>, vector<64x256xbf16>
    %c0_89 = arith.constant 0 : index
    %c0_90 = arith.constant 0 : index
    %511 = vector.load %arg6[%c0_89, %c0_90] : memref<1x256xf32, #tpu.memory_space<vmem>>, vector<1x256xf32>
    %cst_91 = arith.constant dense<0.000000e+00> : vector<64x256xf32>
    %512 = tpu.matmul %509, %510, %cst_91 {dimension_numbers = #tpu.dot_dimension_numbers<[1], [0], [0], [1], [0, 0, 1, 1], [], []>} : vector<64x64xbf16>, vector<64x256xbf16>, vector<64x256xf32> -> vector<64x256xf32>
    %513 = vector.broadcast %511 : vector<1x256xf32> to vector<64x256xf32>
    %514 = arith.addf %512, %513 : vector<64x256xf32>
    %515 = vector.extract_strided_slice %514 {offsets = [56, 128], sizes = [8, 128], strides = [1, 1]} : vector<64x256xf32> to vector<8x128xf32>
    %516 = vector.extract_strided_slice %515 {offsets = [0, 0], sizes = [8, 32], strides = [1, 1]} : vector<8x128xf32> to vector<8x32xf32>
    %517 = arith.negf %516 : vector<8x32xf32>
    %518 = math.exp %517 : vector<8x32xf32>
    %cst_92 = arith.constant 1.000000e+00 : f32
    %519 = vector.broadcast %cst_92 : f32 to vector<8x32xf32>
    %520 = arith.addf %519, %518 : vector<8x32xf32>
    %521 = arith.divf %519, %520 : vector<8x32xf32>
    %522 = vector.extract_strided_slice %515 {offsets = [0, 64], sizes = [8, 32], strides = [1, 1]} : vector<8x128xf32> to vector<8x32xf32>
    %523 = math.tanh %522 : vector<8x32xf32>
    %524 = vector.extract_strided_slice %515 {offsets = [0, 96], sizes = [8, 32], strides = [1, 1]} : vector<8x128xf32> to vector<8x32xf32>
    %525 = arith.negf %524 : vector<8x32xf32>
    %526 = math.exp %525 : vector<8x32xf32>
    %cst_93 = arith.constant 1.000000e+00 : f32
    %527 = vector.broadcast %cst_93 : f32 to vector<8x32xf32>
    %528 = arith.addf %527, %526 : vector<8x32xf32>
    %529 = arith.divf %527, %528 : vector<8x32xf32>
    %530 = arith.mulf %521, %523 : vector<8x32xf32>
    %531 = math.tanh %530 : vector<8x32xf32>
    %532 = arith.mulf %529, %531 : vector<8x32xf32>
    %c0_94 = arith.constant 0 : index
    %c0_95 = arith.constant 0 : index
    %533 = vector.load %arg5[%c0_94, %c0_95] : memref<64x256xbf16, #tpu.memory_space<vmem>>, vector<32x128xbf16>
    %534 = vector.extract_strided_slice %514 {offsets = [0, 0], sizes = [8, 128], strides = [1, 1]} : vector<64x256xf32> to vector<8x128xf32>
    %535 = vector.extract_strided_slice %534 {offsets = [0, 0], sizes = [8, 32], strides = [1, 1]} : vector<8x128xf32> to vector<8x32xf32>
    %536 = arith.negf %535 : vector<8x32xf32>
    %537 = math.exp %536 : vector<8x32xf32>
    %cst_96 = arith.constant 1.000000e+00 : f32
    %538 = vector.broadcast %cst_96 : f32 to vector<8x32xf32>
    %539 = arith.addf %538, %537 : vector<8x32xf32>
    %540 = arith.divf %538, %539 : vector<8x32xf32>
    %541 = vector.extract_strided_slice %534 {offsets = [0, 64], sizes = [8, 32], strides = [1, 1]} : vector<8x128xf32> to vector<8x32xf32>
    %542 = math.tanh %541 : vector<8x32xf32>
    %543 = vector.extract_strided_slice %534 {offsets = [0, 96], sizes = [8, 32], strides = [1, 1]} : vector<8x128xf32> to vector<8x32xf32>
    %544 = arith.negf %543 : vector<8x32xf32>
    %545 = math.exp %544 : vector<8x32xf32>
    %cst_97 = arith.constant 1.000000e+00 : f32
    %546 = vector.broadcast %cst_97 : f32 to vector<8x32xf32>
    %547 = arith.addf %546, %545 : vector<8x32xf32>
    %548 = arith.divf %546, %547 : vector<8x32xf32>
    %549 = arith.mulf %540, %542 : vector<8x32xf32>
    %550 = math.tanh %549 : vector<8x32xf32>
    %551 = arith.mulf %548, %550 : vector<8x32xf32>
    %552 = vector.extract_strided_slice %514 {offsets = [8, 0], sizes = [8, 128], strides = [1, 1]} : vector<64x256xf32> to vector<8x128xf32>
    %553 = arith.truncf %551 : vector<8x32xf32> to vector<8x32xbf16>
    %cst_98 = arith.constant dense<0.000000e+00> : vector<8x128xf32>
    %554 = tpu.matmul %553, %533, %cst_98 {dimension_numbers = #tpu.dot_dimension_numbers<[1], [0], [0], [1], [0, 0, 1, 1], [], []>} : vector<8x32xbf16>, vector<32x128xbf16>, vector<8x128xf32> -> vector<8x128xf32>
    %555 = arith.addf %552, %554 : vector<8x128xf32>
    %556 = vector.extract_strided_slice %555 {offsets = [0, 0], sizes = [8, 32], strides = [1, 1]} : vector<8x128xf32> to vector<8x32xf32>
    %557 = arith.negf %556 : vector<8x32xf32>
    %558 = math.exp %557 : vector<8x32xf32>
    %cst_99 = arith.constant 1.000000e+00 : f32
    %559 = vector.broadcast %cst_99 : f32 to vector<8x32xf32>
    %560 = arith.addf %559, %558 : vector<8x32xf32>
    %561 = arith.divf %559, %560 : vector<8x32xf32>
    %562 = vector.extract_strided_slice %555 {offsets = [0, 64], sizes = [8, 32], strides = [1, 1]} : vector<8x128xf32> to vector<8x32xf32>
    %563 = math.tanh %562 : vector<8x32xf32>
    %564 = vector.extract_strided_slice %555 {offsets = [0, 96], sizes = [8, 32], strides = [1, 1]} : vector<8x128xf32> to vector<8x32xf32>
    %565 = arith.negf %564 : vector<8x32xf32>
    %566 = math.exp %565 : vector<8x32xf32>
    %cst_100 = arith.constant 1.000000e+00 : f32
    %567 = vector.broadcast %cst_100 : f32 to vector<8x32xf32>
    %568 = arith.addf %567, %566 : vector<8x32xf32>
    %569 = arith.divf %567, %568 : vector<8x32xf32>
    %570 = arith.mulf %561, %563 : vector<8x32xf32>
    %571 = vector.extract_strided_slice %555 {offsets = [0, 32], sizes = [8, 32], strides = [1, 1]} : vector<8x128xf32> to vector<8x32xf32>
    %572 = arith.negf %571 : vector<8x32xf32>
    %573 = math.exp %572 : vector<8x32xf32>
    %cst_101 = arith.constant 1.000000e+00 : f32
    %574 = vector.broadcast %cst_101 : f32 to vector<8x32xf32>
    %575 = arith.addf %574, %573 : vector<8x32xf32>
    %576 = arith.divf %574, %575 : vector<8x32xf32>
    %577 = arith.mulf %576, %549 : vector<8x32xf32>
    %578 = arith.addf %570, %577 : vector<8x32xf32>
    %579 = math.tanh %578 : vector<8x32xf32>
    %580 = arith.mulf %569, %579 : vector<8x32xf32>
    %581 = vector.extract_strided_slice %514 {offsets = [16, 0], sizes = [8, 128], strides = [1, 1]} : vector<64x256xf32> to vector<8x128xf32>
    %582 = arith.truncf %580 : vector<8x32xf32> to vector<8x32xbf16>
    %cst_102 = arith.constant dense<0.000000e+00> : vector<8x128xf32>
    %583 = tpu.matmul %582, %533, %cst_102 {dimension_numbers = #tpu.dot_dimension_numbers<[1], [0], [0], [1], [0, 0, 1, 1], [], []>} : vector<8x32xbf16>, vector<32x128xbf16>, vector<8x128xf32> -> vector<8x128xf32>
    %584 = arith.addf %581, %583 : vector<8x128xf32>
    %585 = vector.extract_strided_slice %584 {offsets = [0, 0], sizes = [8, 32], strides = [1, 1]} : vector<8x128xf32> to vector<8x32xf32>
    %586 = arith.negf %585 : vector<8x32xf32>
    %587 = math.exp %586 : vector<8x32xf32>
    %cst_103 = arith.constant 1.000000e+00 : f32
    %588 = vector.broadcast %cst_103 : f32 to vector<8x32xf32>
    %589 = arith.addf %588, %587 : vector<8x32xf32>
    %590 = arith.divf %588, %589 : vector<8x32xf32>
    %591 = vector.extract_strided_slice %584 {offsets = [0, 64], sizes = [8, 32], strides = [1, 1]} : vector<8x128xf32> to vector<8x32xf32>
    %592 = math.tanh %591 : vector<8x32xf32>
    %593 = vector.extract_strided_slice %584 {offsets = [0, 96], sizes = [8, 32], strides = [1, 1]} : vector<8x128xf32> to vector<8x32xf32>
    %594 = arith.negf %593 : vector<8x32xf32>
    %595 = math.exp %594 : vector<8x32xf32>
    %cst_104 = arith.constant 1.000000e+00 : f32
    %596 = vector.broadcast %cst_104 : f32 to vector<8x32xf32>
    %597 = arith.addf %596, %595 : vector<8x32xf32>
    %598 = arith.divf %596, %597 : vector<8x32xf32>
    %599 = arith.mulf %590, %592 : vector<8x32xf32>
    %600 = vector.extract_strided_slice %584 {offsets = [0, 32], sizes = [8, 32], strides = [1, 1]} : vector<8x128xf32> to vector<8x32xf32>
    %601 = arith.negf %600 : vector<8x32xf32>
    %602 = math.exp %601 : vector<8x32xf32>
    %cst_105 = arith.constant 1.000000e+00 : f32
    %603 = vector.broadcast %cst_105 : f32 to vector<8x32xf32>
    %604 = arith.addf %603, %602 : vector<8x32xf32>
    %605 = arith.divf %603, %604 : vector<8x32xf32>
    %606 = arith.mulf %605, %578 : vector<8x32xf32>
    %607 = arith.addf %599, %606 : vector<8x32xf32>
    %608 = math.tanh %607 : vector<8x32xf32>
    %609 = arith.mulf %598, %608 : vector<8x32xf32>
    %610 = vector.extract_strided_slice %514 {offsets = [24, 0], sizes = [8, 128], strides = [1, 1]} : vector<64x256xf32> to vector<8x128xf32>
    %611 = arith.truncf %609 : vector<8x32xf32> to vector<8x32xbf16>
    %cst_106 = arith.constant dense<0.000000e+00> : vector<8x128xf32>
    %612 = tpu.matmul %611, %533, %cst_106 {dimension_numbers = #tpu.dot_dimension_numbers<[1], [0], [0], [1], [0, 0, 1, 1], [], []>} : vector<8x32xbf16>, vector<32x128xbf16>, vector<8x128xf32> -> vector<8x128xf32>
    %613 = arith.addf %610, %612 : vector<8x128xf32>
    %614 = vector.extract_strided_slice %613 {offsets = [0, 0], sizes = [8, 32], strides = [1, 1]} : vector<8x128xf32> to vector<8x32xf32>
    %615 = arith.negf %614 : vector<8x32xf32>
    %616 = math.exp %615 : vector<8x32xf32>
    %cst_107 = arith.constant 1.000000e+00 : f32
    %617 = vector.broadcast %cst_107 : f32 to vector<8x32xf32>
    %618 = arith.addf %617, %616 : vector<8x32xf32>
    %619 = arith.divf %617, %618 : vector<8x32xf32>
    %620 = vector.extract_strided_slice %613 {offsets = [0, 64], sizes = [8, 32], strides = [1, 1]} : vector<8x128xf32> to vector<8x32xf32>
    %621 = math.tanh %620 : vector<8x32xf32>
    %622 = vector.extract_strided_slice %613 {offsets = [0, 96], sizes = [8, 32], strides = [1, 1]} : vector<8x128xf32> to vector<8x32xf32>
    %623 = arith.negf %622 : vector<8x32xf32>
    %624 = math.exp %623 : vector<8x32xf32>
    %cst_108 = arith.constant 1.000000e+00 : f32
    %625 = vector.broadcast %cst_108 : f32 to vector<8x32xf32>
    %626 = arith.addf %625, %624 : vector<8x32xf32>
    %627 = arith.divf %625, %626 : vector<8x32xf32>
    %628 = arith.mulf %619, %621 : vector<8x32xf32>
    %629 = vector.extract_strided_slice %613 {offsets = [0, 32], sizes = [8, 32], strides = [1, 1]} : vector<8x128xf32> to vector<8x32xf32>
    %630 = arith.negf %629 : vector<8x32xf32>
    %631 = math.exp %630 : vector<8x32xf32>
    %cst_109 = arith.constant 1.000000e+00 : f32
    %632 = vector.broadcast %cst_109 : f32 to vector<8x32xf32>
    %633 = arith.addf %632, %631 : vector<8x32xf32>
    %634 = arith.divf %632, %633 : vector<8x32xf32>
    %635 = arith.mulf %634, %607 : vector<8x32xf32>
    %636 = arith.addf %628, %635 : vector<8x32xf32>
    %637 = math.tanh %636 : vector<8x32xf32>
    %638 = arith.mulf %627, %637 : vector<8x32xf32>
    %639 = vector.extract_strided_slice %514 {offsets = [32, 0], sizes = [8, 128], strides = [1, 1]} : vector<64x256xf32> to vector<8x128xf32>
    %640 = arith.truncf %638 : vector<8x32xf32> to vector<8x32xbf16>
    %cst_110 = arith.constant dense<0.000000e+00> : vector<8x128xf32>
    %641 = tpu.matmul %640, %533, %cst_110 {dimension_numbers = #tpu.dot_dimension_numbers<[1], [0], [0], [1], [0, 0, 1, 1], [], []>} : vector<8x32xbf16>, vector<32x128xbf16>, vector<8x128xf32> -> vector<8x128xf32>
    %642 = arith.addf %639, %641 : vector<8x128xf32>
    %643 = vector.extract_strided_slice %642 {offsets = [0, 0], sizes = [8, 32], strides = [1, 1]} : vector<8x128xf32> to vector<8x32xf32>
    %644 = arith.negf %643 : vector<8x32xf32>
    %645 = math.exp %644 : vector<8x32xf32>
    %cst_111 = arith.constant 1.000000e+00 : f32
    %646 = vector.broadcast %cst_111 : f32 to vector<8x32xf32>
    %647 = arith.addf %646, %645 : vector<8x32xf32>
    %648 = arith.divf %646, %647 : vector<8x32xf32>
    %649 = vector.extract_strided_slice %642 {offsets = [0, 64], sizes = [8, 32], strides = [1, 1]} : vector<8x128xf32> to vector<8x32xf32>
    %650 = math.tanh %649 : vector<8x32xf32>
    %651 = vector.extract_strided_slice %642 {offsets = [0, 96], sizes = [8, 32], strides = [1, 1]} : vector<8x128xf32> to vector<8x32xf32>
    %652 = arith.negf %651 : vector<8x32xf32>
    %653 = math.exp %652 : vector<8x32xf32>
    %cst_112 = arith.constant 1.000000e+00 : f32
    %654 = vector.broadcast %cst_112 : f32 to vector<8x32xf32>
    %655 = arith.addf %654, %653 : vector<8x32xf32>
    %656 = arith.divf %654, %655 : vector<8x32xf32>
    %657 = arith.mulf %648, %650 : vector<8x32xf32>
    %658 = vector.extract_strided_slice %642 {offsets = [0, 32], sizes = [8, 32], strides = [1, 1]} : vector<8x128xf32> to vector<8x32xf32>
    %659 = arith.negf %658 : vector<8x32xf32>
    %660 = math.exp %659 : vector<8x32xf32>
    %cst_113 = arith.constant 1.000000e+00 : f32
    %661 = vector.broadcast %cst_113 : f32 to vector<8x32xf32>
    %662 = arith.addf %661, %660 : vector<8x32xf32>
    %663 = arith.divf %661, %662 : vector<8x32xf32>
    %664 = arith.mulf %663, %636 : vector<8x32xf32>
    %665 = arith.addf %657, %664 : vector<8x32xf32>
    %666 = math.tanh %665 : vector<8x32xf32>
    %667 = arith.mulf %656, %666 : vector<8x32xf32>
    %668 = vector.extract_strided_slice %514 {offsets = [40, 0], sizes = [8, 128], strides = [1, 1]} : vector<64x256xf32> to vector<8x128xf32>
    %669 = arith.truncf %667 : vector<8x32xf32> to vector<8x32xbf16>
    %cst_114 = arith.constant dense<0.000000e+00> : vector<8x128xf32>
    %670 = tpu.matmul %669, %533, %cst_114 {dimension_numbers = #tpu.dot_dimension_numbers<[1], [0], [0], [1], [0, 0, 1, 1], [], []>} : vector<8x32xbf16>, vector<32x128xbf16>, vector<8x128xf32> -> vector<8x128xf32>
    %671 = arith.addf %668, %670 : vector<8x128xf32>
    %672 = vector.extract_strided_slice %671 {offsets = [0, 0], sizes = [8, 32], strides = [1, 1]} : vector<8x128xf32> to vector<8x32xf32>
    %673 = arith.negf %672 : vector<8x32xf32>
    %674 = math.exp %673 : vector<8x32xf32>
    %cst_115 = arith.constant 1.000000e+00 : f32
    %675 = vector.broadcast %cst_115 : f32 to vector<8x32xf32>
    %676 = arith.addf %675, %674 : vector<8x32xf32>
    %677 = arith.divf %675, %676 : vector<8x32xf32>
    %678 = vector.extract_strided_slice %671 {offsets = [0, 64], sizes = [8, 32], strides = [1, 1]} : vector<8x128xf32> to vector<8x32xf32>
    %679 = math.tanh %678 : vector<8x32xf32>
    %680 = vector.extract_strided_slice %671 {offsets = [0, 96], sizes = [8, 32], strides = [1, 1]} : vector<8x128xf32> to vector<8x32xf32>
    %681 = arith.negf %680 : vector<8x32xf32>
    %682 = math.exp %681 : vector<8x32xf32>
    %cst_116 = arith.constant 1.000000e+00 : f32
    %683 = vector.broadcast %cst_116 : f32 to vector<8x32xf32>
    %684 = arith.addf %683, %682 : vector<8x32xf32>
    %685 = arith.divf %683, %684 : vector<8x32xf32>
    %686 = arith.mulf %677, %679 : vector<8x32xf32>
    %687 = vector.extract_strided_slice %671 {offsets = [0, 32], sizes = [8, 32], strides = [1, 1]} : vector<8x128xf32> to vector<8x32xf32>
    %688 = arith.negf %687 : vector<8x32xf32>
    %689 = math.exp %688 : vector<8x32xf32>
    %cst_117 = arith.constant 1.000000e+00 : f32
    %690 = vector.broadcast %cst_117 : f32 to vector<8x32xf32>
    %691 = arith.addf %690, %689 : vector<8x32xf32>
    %692 = arith.divf %690, %691 : vector<8x32xf32>
    %693 = arith.mulf %692, %665 : vector<8x32xf32>
    %694 = arith.addf %686, %693 : vector<8x32xf32>
    %695 = math.tanh %694 : vector<8x32xf32>
    %696 = arith.mulf %685, %695 : vector<8x32xf32>
    %697 = vector.extract_strided_slice %514 {offsets = [48, 0], sizes = [8, 128], strides = [1, 1]} : vector<64x256xf32> to vector<8x128xf32>
    %698 = arith.truncf %696 : vector<8x32xf32> to vector<8x32xbf16>
    %cst_118 = arith.constant dense<0.000000e+00> : vector<8x128xf32>
    %699 = tpu.matmul %698, %533, %cst_118 {dimension_numbers = #tpu.dot_dimension_numbers<[1], [0], [0], [1], [0, 0, 1, 1], [], []>} : vector<8x32xbf16>, vector<32x128xbf16>, vector<8x128xf32> -> vector<8x128xf32>
    %700 = arith.addf %697, %699 : vector<8x128xf32>
    %701 = vector.extract_strided_slice %700 {offsets = [0, 0], sizes = [8, 32], strides = [1, 1]} : vector<8x128xf32> to vector<8x32xf32>
    %702 = arith.negf %701 : vector<8x32xf32>
    %703 = math.exp %702 : vector<8x32xf32>
    %cst_119 = arith.constant 1.000000e+00 : f32
    %704 = vector.broadcast %cst_119 : f32 to vector<8x32xf32>
    %705 = arith.addf %704, %703 : vector<8x32xf32>
    %706 = arith.divf %704, %705 : vector<8x32xf32>
    %707 = vector.extract_strided_slice %700 {offsets = [0, 64], sizes = [8, 32], strides = [1, 1]} : vector<8x128xf32> to vector<8x32xf32>
    %708 = math.tanh %707 : vector<8x32xf32>
    %709 = vector.extract_strided_slice %700 {offsets = [0, 96], sizes = [8, 32], strides = [1, 1]} : vector<8x128xf32> to vector<8x32xf32>
    %710 = arith.negf %709 : vector<8x32xf32>
    %711 = math.exp %710 : vector<8x32xf32>
    %cst_120 = arith.constant 1.000000e+00 : f32
    %712 = vector.broadcast %cst_120 : f32 to vector<8x32xf32>
    %713 = arith.addf %712, %711 : vector<8x32xf32>
    %714 = arith.divf %712, %713 : vector<8x32xf32>
    %715 = arith.mulf %706, %708 : vector<8x32xf32>
    %716 = vector.extract_strided_slice %700 {offsets = [0, 32], sizes = [8, 32], strides = [1, 1]} : vector<8x128xf32> to vector<8x32xf32>
    %717 = arith.negf %716 : vector<8x32xf32>
    %718 = math.exp %717 : vector<8x32xf32>
    %cst_121 = arith.constant 1.000000e+00 : f32
    %719 = vector.broadcast %cst_121 : f32 to vector<8x32xf32>
    %720 = arith.addf %719, %718 : vector<8x32xf32>
    %721 = arith.divf %719, %720 : vector<8x32xf32>
    %722 = arith.mulf %721, %694 : vector<8x32xf32>
    %723 = arith.addf %715, %722 : vector<8x32xf32>
    %724 = math.tanh %723 : vector<8x32xf32>
    %725 = arith.mulf %714, %724 : vector<8x32xf32>
    %726 = vector.extract_strided_slice %514 {offsets = [56, 0], sizes = [8, 128], strides = [1, 1]} : vector<64x256xf32> to vector<8x128xf32>
    %727 = arith.truncf %725 : vector<8x32xf32> to vector<8x32xbf16>
    %cst_122 = arith.constant dense<0.000000e+00> : vector<8x128xf32>
    %728 = tpu.matmul %727, %533, %cst_122 {dimension_numbers = #tpu.dot_dimension_numbers<[1], [0], [0], [1], [0, 0, 1, 1], [], []>} : vector<8x32xbf16>, vector<32x128xbf16>, vector<8x128xf32> -> vector<8x128xf32>
    %729 = arith.addf %726, %728 : vector<8x128xf32>
    %730 = vector.extract_strided_slice %729 {offsets = [0, 0], sizes = [8, 32], strides = [1, 1]} : vector<8x128xf32> to vector<8x32xf32>
    %731 = arith.negf %730 : vector<8x32xf32>
    %732 = math.exp %731 : vector<8x32xf32>
    %cst_123 = arith.constant 1.000000e+00 : f32
    %733 = vector.broadcast %cst_123 : f32 to vector<8x32xf32>
    %734 = arith.addf %733, %732 : vector<8x32xf32>
    %735 = arith.divf %733, %734 : vector<8x32xf32>
    %736 = vector.extract_strided_slice %729 {offsets = [0, 64], sizes = [8, 32], strides = [1, 1]} : vector<8x128xf32> to vector<8x32xf32>
    %737 = math.tanh %736 : vector<8x32xf32>
    %738 = vector.extract_strided_slice %729 {offsets = [0, 96], sizes = [8, 32], strides = [1, 1]} : vector<8x128xf32> to vector<8x32xf32>
    %739 = arith.negf %738 : vector<8x32xf32>
    %740 = math.exp %739 : vector<8x32xf32>
    %cst_124 = arith.constant 1.000000e+00 : f32
    %741 = vector.broadcast %cst_124 : f32 to vector<8x32xf32>
    %742 = arith.addf %741, %740 : vector<8x32xf32>
    %743 = arith.divf %741, %742 : vector<8x32xf32>
    %744 = arith.mulf %735, %737 : vector<8x32xf32>
    %745 = vector.extract_strided_slice %729 {offsets = [0, 32], sizes = [8, 32], strides = [1, 1]} : vector<8x128xf32> to vector<8x32xf32>
    %746 = arith.negf %745 : vector<8x32xf32>
    %747 = math.exp %746 : vector<8x32xf32>
    %cst_125 = arith.constant 1.000000e+00 : f32
    %748 = vector.broadcast %cst_125 : f32 to vector<8x32xf32>
    %749 = arith.addf %748, %747 : vector<8x32xf32>
    %750 = arith.divf %748, %749 : vector<8x32xf32>
    %751 = arith.mulf %750, %723 : vector<8x32xf32>
    %752 = arith.addf %744, %751 : vector<8x32xf32>
    %753 = math.tanh %752 : vector<8x32xf32>
    %754 = arith.mulf %743, %753 : vector<8x32xf32>
    %755 = tpu.concatenate %754, %532 in 1 : vector<8x32xf32>, vector<8x32xf32> -> vector<8x64xf32>
    %756 = arith.truncf %755 : vector<8x64xf32> to vector<8x64xbf16>
    %c0_126 = arith.constant 0 : index
    %c0_127 = arith.constant 0 : index
    %757 = vector.load %arg7[%c0_126, %c0_127] : memref<64x128xbf16, #tpu.memory_space<vmem>>, vector<64x128xbf16>
    %cst_128 = arith.constant dense<0.000000e+00> : vector<8x128xf32>
    %758 = tpu.matmul %756, %757, %cst_128 {dimension_numbers = #tpu.dot_dimension_numbers<[1], [0], [0], [1], [0, 0, 1, 1], [], []>} : vector<8x64xbf16>, vector<64x128xbf16>, vector<8x128xf32> -> vector<8x128xf32>
    %c0_129 = arith.constant 0 : index
    %c0_130 = arith.constant 0 : index
    %759 = vector.load %arg8[%c0_129, %c0_130] : memref<1x128xf32, #tpu.memory_space<vmem>>, vector<1x128xf32>
    %760 = vector.broadcast %759 : vector<1x128xf32> to vector<8x128xf32>
    %761 = arith.addf %758, %760 : vector<8x128xf32>
    %c0_131 = arith.constant 0 : index
    %c0_132 = arith.constant 0 : index
    %762 = vector.load %arg9[%c0_131, %c0_132] : memref<8x128xf32, #tpu.memory_space<vmem>>, vector<8x128xf32>
    tpu.vector_store %arg9[%c0_131, %c0_132], %761 {strides = array<i32>} : memref<8x128xf32, #tpu.memory_space<vmem>>, vector<8x128xf32>,
    return
  }
}

</mosaic_0001>

<llo_original>
// kernel: gait_classifier_lstm_forward.1
$region0: #{gait_classifier_lstm_forward.1}
  #allocation0 [shape = 'u32[]', space=smem, size = 0x4, offset = 0x4, fixed_abs, tag = 'smem constant byte address 0x4 - core index']
  #allocation1 [shape = 'u32[144,128]{1,0:T(1,128)}', space=vmem, size = 0x12000, scoped, tag = 'internal scratch']
  #allocation2 [shape = 'bf16[64,64]{1,0:T(16,128)(2,1)}', space=vmem, size = 0x4000, scoped, tag = 'scratch operand']
  %s0 = inlined_call_operand.vmem [shape: bf16[64,128], index: 0, kind: input, shape index: {}]
  %s1 = inlined_call_operand.hbm [shape: bf16[128,256], index: 1, kind: input, shape index: {}]
  %s2 = inlined_call_operand.vmem [shape: bf16[64,256], index: 2, kind: input, shape index: {}]
  %s3 = inlined_call_operand.vmem [shape: f32[1,256], index: 3, kind: input, shape index: {}]
  %s4 = inlined_call_operand.hbm [shape: bf16[64,256], index: 4, kind: input, shape index: {}]
  %s5 = inlined_call_operand.hbm [shape: bf16[64,256], index: 5, kind: input, shape index: {}]
  %s6 = inlined_call_operand.vmem [shape: f32[1,256], index: 6, kind: input, shape index: {}]
  %s7 = inlined_call_operand.hbm [shape: bf16[64,128], index: 7, kind: input, shape index: {}]
  %s8 = inlined_call_operand.vmem [shape: f32[1,128], index: 8, kind: input, shape index: {}]
  %s9 = inlined_call_operand.vmem [shape: f32[8,128], index: 9, kind: output, shape index: {}]
  %s10 = sld [smem:[#allocation0]]
  $region62: #{gait_classifier_lstm_forward.1} parent=0
    _
  %s12 = ssub.s32 1, %s10
  %s13 = scalar_select 0, %s12, %s10
  $region1: #{gait_classifier_lstm_forward.1} parent=0
    #allocation3 [shape = 'u8[65536]{0}', space=vmem, size = 0x10000, scoped, tag = 'input window, operand 1, single buffered']
    #allocation4 [shape = 's32[1]{0}', space=sflag, size = 0x4, scoped, tag = 'scoped memory for gait_classifier_lstm_forward.1']
    #allocation5 [shape = 'u8[32768]{0}', space=vmem, size = 0x8000, scoped, tag = 'input window, operand 4, single buffered']
    #allocation6 [shape = 's32[1]{0}', space=sflag, size = 0x4, scoped, tag = 'scoped memory for gait_classifier_lstm_forward.1']
    #allocation7 [shape = 'u8[32768]{0}', space=vmem, size = 0x8000, scoped, tag = 'input window, operand 5, single buffered']
    #allocation8 [shape = 'u8[16384]{0}', space=vmem, size = 0x4000, scoped, tag = 'input window, operand 7, single buffered']
    #allocation9 [shape = 's32[1]{0}', space=sflag, size = 0x4, scoped, tag = 'scoped memory for gait_classifier_lstm_forward.1']
    %14 = vsyncpa [#allocation4], 0
    %15 = vsyncpa [#allocation6], 0
    %16 = vsyncpa [#allocation9], 0
    // Predicated region
    $region2: #{gait_classifier_lstm_forward.1} parent=1 // pred_check
      _
    $region3: #{gait_classifier_lstm_forward.1} parent=1 // pred_check_branch
      %18 = sbr.rel (0) target = $region5
    $region4: #{gait_classifier_lstm_forward.1} parent=1 // pred_region
      _
    $region5: #{gait_classifier_lstm_forward.1} parent=1 // pred_fallthru
      _
    // Predicated region
    $region6: #{gait_classifier_lstm_forward.1} parent=1 // pred_check
      _
    $region7: #{gait_classifier_lstm_forward.1} parent=1 // pred_check_branch
      %20 = sbr.rel (0) target = $region9
    $region8: #{gait_classifier_lstm_forward.1} parent=1 // pred_region
      %s22 = ssub.s32 2048, 2048
      %23 = vsyncadd [#allocation4], %s22
      %s24 = sshll.u32 [#allocation3], 4
      %s25 = int_to_ptr.vmem [resolvable:$true] %s24
      %30 = dma.hbm_to_vmem [thread:$0]  %s1, 2048, %s25, [#allocation4], 128, 128, 8
    $region9: #{gait_classifier_lstm_forward.1} parent=1 // pred_fallthru
      _
    // Predicated region
    $region10: #{gait_classifier_lstm_forward.1} parent=1 // pred_check
      _
    $region11: #{gait_classifier_lstm_forward.1} parent=1 // pred_check_branch
      %32 = sbr.rel (0) target = $region13
    $region12: #{gait_classifier_lstm_forward.1} parent=1 // pred_region
      _
    $region13: #{gait_classifier_lstm_forward.1} parent=1 // pred_fallthru
      _
    // Predicated region
    $region14: #{gait_classifier_lstm_forward.1} parent=1 // pred_check
      _
    $region15: #{gait_classifier_lstm_forward.1} parent=1 // pred_check_branch
      %34 = sbr.rel (0) target = $region17
    $region16: #{gait_classifier_lstm_forward.1} parent=1 // pred_region
      _
    $region17: #{gait_classifier_lstm_forward.1} parent=1 // pred_fallthru
      _
    // Predicated region
    $region18: #{gait_classifier_lstm_forward.1} parent=1 // pred_check
      _
    $region19: #{gait_classifier_lstm_forward.1} parent=1 // pred_check_branch
      %36 = sbr.rel (0) target = $region21
    $region20: #{gait_classifier_lstm_forward.1} parent=1 // pred_region
      %s38 = ssub.s32 1024, 1024
      %39 = vsyncadd [#allocation6], %s38
      %s40 = sshll.u32 [#allocation5], 4
      %s41 = int_to_ptr.vmem [resolvable:$true] %s40
      %46 = dma.hbm_to_vmem [thread:$0]  %s4, 1024, %s41, [#allocation6], 128, 128, 8
    $region21: #{gait_classifier_lstm_forward.1} parent=1 // pred_fallthru
      _
    // Predicated region
    $region22: #{gait_classifier_lstm_forward.1} parent=1 // pred_check
      _
    $region23: #{gait_classifier_lstm_forward.1} parent=1 // pred_check_branch
      %48 = sbr.rel (0) target = $region25
    $region24: #{gait_classifier_lstm_forward.1} parent=1 // pred_region
      %s50 = ssub.s32 1024, 1024
      %51 = vsyncadd [#allocation6], %s50
      %s52 = sshll.u32 [#allocation7], 4
      %s53 = int_to_ptr.vmem [resolvable:$true] %s52
      %58 = dma.hbm_to_vmem [thread:$0]  %s5, 1024, %s53, [#allocation6], 128, 128, 8
    $region25: #{gait_classifier_lstm_forward.1} parent=1 // pred_fallthru
      _
    // Predicated region
    $region26: #{gait_classifier_lstm_forward.1} parent=1 // pred_check
      _
    $region27: #{gait_classifier_lstm_forward.1} parent=1 // pred_check_branch
      %60 = sbr.rel (0) target = $region29
    $region28: #{gait_classifier_lstm_forward.1} parent=1 // pred_region
      _
    $region29: #{gait_classifier_lstm_forward.1} parent=1 // pred_fallthru
      _
    // Predicated region
    $region30: #{gait_classifier_lstm_forward.1} parent=1 // pred_check
      _
    $region31: #{gait_classifier_lstm_forward.1} parent=1 // pred_check_branch
      %62 = sbr.rel (0) target = $region33
    $region32: #{gait_classifier_lstm_forward.1} parent=1 // pred_region
      %s64 = ssub.s32 512, 512
      %65 = vsyncadd [#allocation9], %s64
      %s66 = sshll.u32 [#allocation8], 4
      %s67 = int_to_ptr.vmem [resolvable:$true] %s66
      %72 = dma.hbm_to_vmem [thread:$0]  %s7, 512, %s67, [#allocation9], 64, 64, 4
    $region33: #{gait_classifier_lstm_forward.1} parent=1 // pred_fallthru
      _
    // Predicated region
    $region34: #{gait_classifier_lstm_forward.1} parent=1 // pred_check
      _
    $region35: #{gait_classifier_lstm_forward.1} parent=1 // pred_check_branch
      %74 = sbr.rel (0) target = $region37
    $region36: #{gait_classifier_lstm_forward.1} parent=1 // pred_region
      _
    $region37: #{gait_classifier_lstm_forward.1} parent=1 // pred_fallthru
      _
    // Predicated region
    $region38: #{gait_classifier_lstm_forward.1} parent=1 // pred_check
      _
    $region39: #{gait_classifier_lstm_forward.1} parent=1 // pred_check_branch
      %76 = sbr.rel (0) target = $region41
    $region40: #{gait_classifier_lstm_forward.1} parent=1 // pred_region
      %77 = dma.done [#allocation4], 2048
    $region41: #{gait_classifier_lstm_forward.1} parent=1 // pred_fallthru
      _
    // Predicated region
    $region42: #{gait_classifier_lstm_forward.1} parent=1 // pred_check
      _
    $region43: #{gait_classifier_lstm_forward.1} parent=1 // pred_check_branch
      %79 = sbr.rel (0) target = $region45
    $region44: #{gait_classifier_lstm_forward.1} parent=1 // pred_region
      %80 = dma.done [#allocation6], 1024
    $region45: #{gait_classifier_lstm_forward.1} parent=1 // pred_fallthru
      _
    // Predicated region
    $region46: #{gait_classifier_lstm_forward.1} parent=1 // pred_check
      _
    $region47: #{gait_classifier_lstm_forward.1} parent=1 // pred_check_branch
      %82 = sbr.rel (0) target = $region49
    $region48: #{gait_classifier_lstm_forward.1} parent=1 // pred_region
      %83 = dma.done [#allocation6], 1024
    $region49: #{gait_classifier_lstm_forward.1} parent=1 // pred_fallthru
      _
    // Predicated region
    $region50: #{gait_classifier_lstm_forward.1} parent=1 // pred_check
      _
    $region51: #{gait_classifier_lstm_forward.1} parent=1 // pred_check_branch
      %85 = sbr.rel (0) target = $region53
    $region52: #{gait_classifier_lstm_forward.1} parent=1 // pred_region
      %86 = dma.done [#allocation9], 512
    $region53: #{gait_classifier_lstm_forward.1} parent=1 // pred_fallthru
      _
    %v88 = vld [vmem:[%s0] sm:$0xf]
    %v89 = vld [vmem:[%s0 + $0x4] sm:$0xf]
    %v90 = vld [vmem:[%s0 + $0x8] sm:$0xf]
    %v91 = vld [vmem:[%s0 + $0xc] sm:$0xf]
    %v92 = vld [vmem:[%s0 + $0x10] sm:$0xf]
    %v93 = vld [vmem:[%s0 + $0x14] sm:$0xf]
    %v94 = vld [vmem:[%s0 + $0x18] sm:$0xf]
    %v95 = vld [vmem:[%s0 + $0x1c] sm:$0xf]
    %v96 = vld [vmem:[#allocation3] sm:$0xff]
    %v97 = vld [vmem:[#allocation3 + $0x8] sm:$0xff]
    %v98 = vld [vmem:[#allocation3 + $0x10] sm:$0xff]
    %v99 = vld [vmem:[#allocation3 + $0x18] sm:$0xff]
    %v100 = vld [vmem:[#allocation3 + $0x20] sm:$0xff]
    %v101 = vld [vmem:[#allocation3 + $0x28] sm:$0xff]
    %v102 = vld [vmem:[#allocation3 + $0x30] sm:$0xff]
    %v103 = vld [vmem:[#allocation3 + $0x38] sm:$0xff]
    %v104 = vld [vmem:[#allocation3 + $0x40] sm:$0xff]
    %v105 = vld [vmem:[#allocation3 + $0x48] sm:$0xff]
    %v106 = vld [vmem:[#allocation3 + $0x50] sm:$0xff]
    %v107 = vld [vmem:[#allocation3 + $0x58] sm:$0xff]
    %v108 = vld [vmem:[#allocation3 + $0x60] sm:$0xff]
    %v109 = vld [vmem:[#allocation3 + $0x68] sm:$0xff]
    %v110 = vld [vmem:[#allocation3 + $0x70] sm:$0xff]
    %v111 = vld [vmem:[#allocation3 + $0x78] sm:$0xff]
    %v112 = vld [vmem:[%s2] sm:$0xff]
    %v113 = vld [vmem:[%s2 + $0x8] sm:$0xff]
    %v114 = vld [vmem:[%s2 + $0x10] sm:$0xff]
    %v115 = vld [vmem:[%s2 + $0x18] sm:$0xff]
    %v116 = vld [vmem:[%s2 + $0x20] sm:$0xff]
    %v117 = vld [vmem:[%s2 + $0x28] sm:$0xff]
    %v118 = vld [vmem:[%s2 + $0x30] sm:$0xff]
    %v119 = vld [vmem:[%s2 + $0x38] sm:$0xff]
    %v120 = vld [vmem:[%s3] sm:$0x3]
    %v122 = vlaneseq
    %v123 = vshrl.u32 %v122, 7
    %v124 = vsub.s32 0, %v123
    %v125 = vrot.slane %v120, %v124
    %v126 = vlaneseq
    %v127 = vshrl.u32 %v126, 7
    %v128 = vsub.s32 1, %v127
    %v129 = vrot.slane %v120, %v128
    %v140 = vunpack.c.l.b16 %v88
    %v141 = vunpack.c.l.b16 %v89
    %v142 = vunpack.c.l.b16 %v90
    %v143 = vunpack.c.l.b16 %v91
    %v144 = vunpack.c.l.b16 %v92
    %v145 = vunpack.c.l.b16 %v93
    %v146 = vunpack.c.l.b16 %v94
    %v147 = vunpack.c.l.b16 %v95
    %v148 = vpack.c.b16 %v141, %v140
    %v149 = vpack.c.b16 %v143, %v142
    %v150 = vpack.c.b16 %v145, %v144
    %v151 = vpack.c.b16 %v147, %v146
    %v172 = vunpack.c.l.b16 %v96
    %v173 = vunpack.c.h.b16 %v96
    %v174 = vunpack.c.l.b16 %v97
    %v175 = vunpack.c.h.b16 %v97
    %v176 = vunpack.c.l.b16 %v98
    %v177 = vunpack.c.h.b16 %v98
    %v178 = vunpack.c.l.b16 %v99
    %v179 = vunpack.c.h.b16 %v99
    %v180 = vunpack.c.l.b16 %v100
    %v181 = vunpack.c.h.b16 %v100
    %v182 = vunpack.c.l.b16 %v101
    %v183 = vunpack.c.h.b16 %v101
    %v184 = vunpack.c.l.b16 %v102
    %v185 = vunpack.c.h.b16 %v102
    %v186 = vunpack.c.l.b16 %v103
    %v187 = vunpack.c.h.b16 %v103
    %v188 = vunpack.c.l.b16 %v104
    %v189 = vunpack.c.h.b16 %v104
    %v190 = vunpack.c.l.b16 %v105
    %v191 = vunpack.c.h.b16 %v105
    %v192 = vunpack.c.l.b16 %v106
    %v193 = vunpack.c.h.b16 %v106
    %v194 = vunpack.c.l.b16 %v107
    %v195 = vunpack.c.h.b16 %v107
    %v196 = vunpack.c.l.b16 %v108
    %v197 = vunpack.c.h.b16 %v108
    %v198 = vunpack.c.l.b16 %v109
    %v199 = vunpack.c.h.b16 %v109
    %v200 = vunpack.c.l.b16 %v110
    %v201 = vunpack.c.h.b16 %v110
    %v202 = vunpack.c.l.b16 %v111
    %v203 = vunpack.c.h.b16 %v111
    %v204 = vpack.c.b16 %v174, %v172
    %v205 = vpack.c.b16 %v175, %v173
    %v206 = vpack.c.b16 %v178, %v176
    %v207 = vpack.c.b16 %v179, %v177
    %v208 = vpack.c.b16 %v182, %v180
    %v209 = vpack.c.b16 %v183, %v181
    %v210 = vpack.c.b16 %v186, %v184
    %v211 = vpack.c.b16 %v187, %v185
    %v212 = vpack.c.b16 %v190, %v188
    %v213 = vpack.c.b16 %v191, %v189
    %v214 = vpack.c.b16 %v194, %v192
    %v215 = vpack.c.b16 %v195, %v193
    %v216 = vpack.c.b16 %v198, %v196
    %v217 = vpack.c.b16 %v199, %v197
    %v218 = vpack.c.b16 %v202, %v200
    %v219 = vpack.c.b16 %v203, %v201
    %236 = vmatprep.subr.bf16.mxu0 %v205
    %237 = vmatpush1.bf16.msra.mxu0 %v204
    %238 = vmatprep.subr.bf16.mxu0 %v207
    %239 = vmatpush1.bf16.msra.mxu0 %v206
    %240 = vmatprep.subr.bf16.mxu0 %v209
    %241 = vmatpush1.bf16.msra.mxu0 %v208
    %242 = vmatprep.subr.bf16.mxu0 %v211
    %243 = vmatpush1.bf16.msra.mxu0 %v210
    %244 = vmatprep.subr.bf16.mxu0 %v213
    %245 = vmatpush1.bf16.msra.mxu0 %v212
    %246 = vmatprep.subr.bf16.mxu0 %v215
    %247 = vmatpush1.bf16.msra.mxu0 %v214
    %248 = vmatprep.subr.bf16.mxu0 %v217
    %249 = vmatpush1.bf16.msra.mxu0 %v216
    %250 = vmatprep.subr.bf16.mxu0 %v219
    %251 = vmatpush1.bf16.msra.mxu0 %v218
    %252 = vmatprep.subr.bf16.mxu0 0
    %253 = vmatpush1.bf16.msra.mxu0 0
    %254 = vmatprep.subr.bf16.mxu0 0
    %255 = vmatpush1.bf16.msra.mxu0 0
    %256 = vmatprep.subr.bf16.mxu0 0
    %257 = vmatpush1.bf16.msra.mxu0 0
    %258 = vmatprep.subr.bf16.mxu0 0
    %259 = vmatpush1.bf16.msra.mxu0 0
    %260 = vmatprep.subr.bf16.mxu0 0
    %261 = vmatpush1.bf16.msra.mxu0 0
    %262 = vmatprep.subr.bf16.mxu0 0
    %263 = vmatpush1.bf16.msra.mxu0 0
    %264 = vmatprep.subr.bf16.mxu0 0
    %265 = vmatpush1.bf16.msra.mxu0 0
    %266 = vmatprep.subr.bf16.mxu0 0
    %267 = vmatpush1.bf16.msra.mxu0 0
    %268 = vmatprep.mubr.bf16.mxu0 0
    %269 = vmatmul.mubr.bf16.gmra.mrb[0].mxu0 %v148
    %v270 = vpop.f32.mrb[0].mxu0
    %v271 = vadd.f32 %v125, %v270
    %v272 = vpop.f32.mrb[0].mxu0
    %v273 = vadd.f32 %v129, %v272
    %v274 = vpop.f32.mrb[0].mxu0
    %v275 = vadd.f32 %v125, %v274
    %v276 = vpop.f32.mrb[0].mxu0
    %v277 = vadd.f32 %v129, %v276
    %278 = vmatprep.mubr.bf16.mxu0 0
    %279 = vmatmul.mubr.bf16.gmra.mrb[0].mxu0 %v149
    %v280 = vpop.f32.mrb[0].mxu0
    %v281 = vadd.f32 %v125, %v280
    %v282 = vpop.f32.mrb[0].mxu0
    %v283 = vadd.f32 %v129, %v282
    %v284 = vpop.f32.mrb[0].mxu0
    %v285 = vadd.f32 %v125, %v284
    %v286 = vpop.f32.mrb[0].mxu0
    %v287 = vadd.f32 %v129, %v286
    %288 = vmatprep.mubr.bf16.mxu0 0
    %289 = vmatmul.mubr.bf16.gmra.mrb[0].mxu0 %v150
    %v290 = vpop.f32.mrb[0].mxu0
    %v291 = vadd.f32 %v125, %v290
    %v292 = vpop.f32.mrb[0].mxu0
    %v293 = vadd.f32 %v129, %v292
    %v294 = vpop.f32.mrb[0].mxu0
    %v295 = vadd.f32 %v125, %v294
    %v296 = vpop.f32.mrb[0].mxu0
    %v297 = vadd.f32 %v129, %v296
    %298 = vmatprep.mubr.bf16.mxu0 0
    %299 = vmatmul.mubr.bf16.gmra.mrb[0].mxu0 %v151
    %v300 = vpop.f32.mrb[0].mxu0
    %v301 = vadd.f32 %v125, %v300
    %v302 = vpop.f32.mrb[0].mxu0
    %v303 = vadd.f32 %v129, %v302
    %v304 = vpop.f32.mrb[0].mxu0
    %v305 = vadd.f32 %v125, %v304
    %v306 = vpop.f32.mrb[0].mxu0
    %v307 = vadd.f32 %v129, %v306
    %308 = vdwg.mxu0
    %v309 = vxor.u32 %v271, 2147483648
    %v310 = vmul.f32 %v309, 1.442695
    %v311 = vpow.pop %v310
    %v312 = vadd.f32 %v311, 1.0
    %v313 = vrcp.pop %v312
    %v314 = vmul.f32 1.0, %v313
    %v315 = vtanh.pop %v271
    %317 = vrot.lane.b32.xlu0 %v315, 64
    %v318 = vpop.permute.xlu0 %317
    %v320 = vmul.f32 %v314, %v318
    %v321 = vtanh.pop %v320
    %323 = vrot.lane.b32.xlu0 %v321, 96
    %v324 = vpop.permute.xlu0 %323
    %v326 = vmul.f32 %v314, %v324
    %v327 = vpack.c.bf16 %v326, %v326
    %329 = vrot.lane.b32.xlu0 %v327, 32
    %v330 = vpop.permute.xlu0 %329
    %vm332 = vcmask 257024
    %333 = vst.msk [vmem:[#allocation2] sm:$0xf] %vm332, %v330
    %v334 = vxor.u32 %v307, 2147483648
    %v335 = vmul.f32 %v334, 1.442695
    %v336 = vpow.pop %v335
    %v337 = vadd.f32 %v336, 1.0
    %v338 = vrcp.pop %v337
    %v339 = vmul.f32 1.0, %v338
    %v340 = vtanh.pop %v307
    %342 = vrot.lane.b32.xlu0 %v340, 64
    %v343 = vpop.permute.xlu0 %342
    %v345 = vmul.f32 %v339, %v343
    %v346 = vtanh.pop %v345
    %348 = vrot.lane.b32.xlu0 %v346, 96
    %v349 = vpop.permute.xlu0 %348
    %v351 = vmul.f32 %v339, %v349
    %v352 = vpack.c.bf16 %v351, %v351
    %v354 = vrot.slane %v352, 4
    %355 = vrot.lane.b32.xlu0 %v354, 64
    %v356 = vpop.permute.xlu0 %355
    %vm358 = vcmask 523524
    %359 = vst.msk [vmem:[#allocation2 + $0x18] sm:$0xf0] %vm358, %v356
    %361 = vrot.lane.b32.xlu0 %v326, 32
    %v362 = vpop.permute.xlu0 %361
    %365 = vrot.lane.b32.xlu0 %v351, 64
    %v366 = vpop.permute.xlu0 %365
    %vm368 = vcmask 261120
    %v369 = vsel %vm368, %v362, %v366
    %371 = vrot.lane.b32.xlu0 %v345, 32
    %v372 = vpop.permute.xlu0 %371
    %v374 = vsel %vm368, %v320, %v372
    %v375 = vpack.c.bf16 %v369, %v369
    %v384 = vunpack.c.l.b16 %v112
    %v385 = vunpack.c.h.b16 %v112
    %v386 = vunpack.c.l.b16 %v113
    %v387 = vunpack.c.h.b16 %v113
    %v388 = vunpack.c.l.b16 %v114
    %v389 = vunpack.c.h.b16 %v114
    %v390 = vunpack.c.l.b16 %v115
    %v391 = vunpack.c.h.b16 %v115
    %v392 = vunpack.c.l.b16 %v116
    %v393 = vunpack.c.h.b16 %v116
    %v394 = vunpack.c.l.b16 %v117
    %v395 = vunpack.c.h.b16 %v117
    %v396 = vunpack.c.l.b16 %v118
    %v397 = vunpack.c.h.b16 %v118
    %v398 = vunpack.c.l.b16 %v119
    %v399 = vunpack.c.h.b16 %v119
    %v400 = vpack.c.b16 %v386, %v384
    %v401 = vpack.c.b16 %v387, %v385
    %v402 = vpack.c.b16 %v390, %v388
    %v403 = vpack.c.b16 %v391, %v389
    %v404 = vpack.c.b16 %v394, %v392
    %v405 = vpack.c.b16 %v395, %v393
    %v406 = vpack.c.b16 %v398, %v396
    %v407 = vpack.c.b16 %v399, %v397
    %vm416 = vcmask 523264
    %v418 = vsel %vm416, %v375, 0
    %420 = vmatprep.subr.bf16.mxu0 %v401
    %421 = vmatpush1.bf16.msra.mxu0 %v400
    %422 = vmatprep.subr.bf16.mxu0 %v403
    %423 = vmatpush1.bf16.msra.mxu0 %v402
    %424 = vmatprep.subr.bf16.mxu0 %v405
    %425 = vmatpush1.bf16.msra.mxu0 %v404
    %426 = vmatprep.subr.bf16.mxu0 %v407
    %427 = vmatpush1.bf16.msra.mxu0 %v406
    %428 = vmatprep.subr.bf16.mxu0 0
    %429 = vmatpush1.bf16.msra.mxu0 0
    %430 = vmatprep.subr.bf16.mxu0 0
    %431 = vmatpush1.bf16.msra.mxu0 0
    %432 = vmatprep.subr.bf16.mxu0 0
    %433 = vmatpush1.bf16.msra.mxu0 0
    %434 = vmatprep.subr.bf16.mxu0 0
    %435 = vmatpush1.bf16.msra.mxu0 0
    %436 = vmatprep.subr.bf16.mxu0 0
    %437 = vmatpush1.bf16.msra.mxu0 0
    %438 = vmatprep.subr.bf16.mxu0 0
    %439 = vmatpush1.bf16.msra.mxu0 0
    %440 = vmatprep.subr.bf16.mxu0 0
    %441 = vmatpush1.bf16.msra.mxu0 0
    %442 = vmatprep.subr.bf16.mxu0 0
    %443 = vmatpush1.bf16.msra.mxu0 0
    %444 = vmatprep.subr.bf16.mxu0 0
    %445 = vmatpush1.bf16.msra.mxu0 0
    %446 = vmatprep.subr.bf16.mxu0 0
    %447 = vmatpush1.bf16.msra.mxu0 0
    %448 = vmatprep.subr.bf16.mxu0 0
    %449 = vmatpush1.bf16.msra.mxu0 0
    %450 = vmatprep.subr.bf16.mxu0 0
    %451 = vmatpush1.bf16.msra.mxu0 0
    %452 = vmatprep.mubr.bf16.mxu0 0
    %453 = vmatmul.mubr.bf16.gmra.mrb[0].mxu0 %v418
    %v454 = vpop.f32.mrb[0].mxu0
    %v455 = vadd.f32 0.0, %v454
    %v456 = vpop.f32.mrb[0].mxu0
    %v457 = vadd.f32 0.0, %v456
    %v458 = vpop.f32.mrb[0].mxu0
    %v459 = vpop.f32.mrb[0].mxu0
    %460 = vdwg.mxu0
    %v461 = vadd.f32 %v275, %v455
    %v462 = vxor.u32 %v461, 2147483648
    %v463 = vmul.f32 %v462, 1.442695
    %v464 = vpow.pop %v463
    %v465 = vadd.f32 %v464, 1.0
    %v466 = vrcp.pop %v465
    %v467 = vmul.f32 1.0, %v466
    %v468 = vtanh.pop %v461
    %470 = vrot.lane.b32.xlu0 %v468, 64
    %v471 = vpop.permute.xlu0 %470
    %v473 = vmul.f32 %v467, %v471
    %475 = vrot.lane.b32.xlu0 %v374, 32
    %v476 = vpop.permute.xlu0 %475
    %v478 = vmul.f32 %v467, %v476
    %480 = vrot.lane.b32.xlu0 %v478, 96
    %v481 = vpop.permute.xlu0 %480
    %v483 = vadd.f32 %v473, %v481
    %v484 = vtanh.pop %v483
    %486 = vrot.lane.b32.xlu0 %v484, 96
    %v487 = vpop.permute.xlu0 %486
    %v489 = vmul.f32 %v467, %v487
    %v490 = vpack.c.bf16 %v489, %v489
    %v492 = vrot.slane %v490, 4
    %493 = vrot.lane.b32.xlu0 %v492, 32
    %v494 = vpop.permute.xlu0 %493
    %vm496 = vcmask 261124
    %497 = vst.msk [vmem:[#allocation2] sm:$0xf0] %vm496, %v494
    %v498 = vadd.f32 %v303, %v457
    %v499 = vxor.u32 %v498, 2147483648
    %v500 = vmul.f32 %v499, 1.442695
    %v501 = vpow.pop %v500
    %v502 = vadd.f32 %v501, 1.0
    %v503 = vrcp.pop %v502
    %v504 = vmul.f32 1.0, %v503
    %v505 = vtanh.pop %v498
    %507 = vrot.lane.b32.xlu0 %v505, 64
    %v508 = vpop.permute.xlu0 %507
    %v510 = vmul.f32 %v504, %v508
    %v511 = vmul.f32 %v504, %v374
    %513 = vrot.lane.b32.xlu0 %v511, 96
    %v514 = vpop.permute.xlu0 %513
    %v516 = vadd.f32 %v510, %v514
    %v517 = vtanh.pop %v516
    %519 = vrot.lane.b32.xlu0 %v517, 96
    %v520 = vpop.permute.xlu0 %519
    %v522 = vmul.f32 %v504, %v520
    %v523 = vpack.c.bf16 %v522, %v522
    %525 = vrot.lane.b32.xlu0 %v523, 64
    %v526 = vpop.permute.xlu0 %525
    %vm528 = vcmask 519424
    %529 = vst.msk [vmem:[#allocation2 + $0x18] sm:$0xf] %vm528, %v526
    %531 = vrot.lane.b32.xlu0 %v489, 32
    %v532 = vpop.permute.xlu0 %531
    %535 = vrot.lane.b32.xlu0 %v522, 64
    %v536 = vpop.permute.xlu0 %535
    %v538 = vsel %vm368, %v532, %v536
    %540 = vrot.lane.b32.xlu0 %v516, 32
    %v541 = vpop.permute.xlu0 %540
    %v543 = vsel %vm368, %v483, %v541
    %v544 = vpack.c.bf16 %v538, %v538
    %v546 = vsel %vm416, %v544, 0
    %548 = vmatprep.subr.bf16.mxu0 %v401
    %549 = vmatpush1.bf16.msra.mxu0 %v400
    %550 = vmatprep.subr.bf16.mxu0 %v403
    %551 = vmatpush1.bf16.msra.mxu0 %v402
    %552 = vmatprep.subr.bf16.mxu0 %v405
    %553 = vmatpush1.bf16.msra.mxu0 %v404
    %554 = vmatprep.subr.bf16.mxu0 %v407
    %555 = vmatpush1.bf16.msra.mxu0 %v406
    %556 = vmatprep.subr.bf16.mxu0 0
    %557 = vmatpush1.bf16.msra.mxu0 0
    %558 = vmatprep.subr.bf16.mxu0 0
    %559 = vmatpush1.bf16.msra.mxu0 0
    %560 = vmatprep.subr.bf16.mxu0 0
    %561 = vmatpush1.bf16.msra.mxu0 0
    %562 = vmatprep.subr.bf16.mxu0 0
    %563 = vmatpush1.bf16.msra.mxu0 0
    %564 = vmatprep.subr.bf16.mxu0 0
    %565 = vmatpush1.bf16.msra.mxu0 0
    %566 = vmatprep.subr.bf16.mxu0 0
    %567 = vmatpush1.bf16.msra.mxu0 0
    %568 = vmatprep.subr.bf16.mxu0 0
    %569 = vmatpush1.bf16.msra.mxu0 0
    %570 = vmatprep.subr.bf16.mxu0 0
    %571 = vmatpush1.bf16.msra.mxu0 0
    %572 = vmatprep.subr.bf16.mxu0 0
    %573 = vmatpush1.bf16.msra.mxu0 0
    %574 = vmatprep.subr.bf16.mxu0 0
    %575 = vmatpush1.bf16.msra.mxu0 0
    %576 = vmatprep.subr.bf16.mxu0 0
    %577 = vmatpush1.bf16.msra.mxu0 0
    %578 = vmatprep.subr.bf16.mxu0 0
    %579 = vmatpush1.bf16.msra.mxu0 0
    %580 = vmatprep.mubr.bf16.mxu0 0
    %581 = vmatmul.mubr.bf16.gmra.mrb[0].mxu0 %v546
    %v582 = vpop.f32.mrb[0].mxu0
    %v583 = vadd.f32 0.0, %v582
    %v584 = vpop.f32.mrb[0].mxu0
    %v585 = vadd.f32 0.0, %v584
    %v586 = vpop.f32.mrb[0].mxu0
    %v587 = vpop.f32.mrb[0].mxu0
    %588 = vdwg.mxu0
    %v589 = vadd.f32 %v281, %v583
    %v590 = vxor.u32 %v589, 2147483648
    %v591 = vmul.f32 %v590, 1.442695
    %v592 = vpow.pop %v591
    %v593 = vadd.f32 %v592, 1.0
    %v594 = vrcp.pop %v593
    %v595 = vmul.f32 1.0, %v594
    %v596 = vtanh.pop %v589
    %598 = vrot.lane.b32.xlu0 %v596, 64
    %v599 = vpop.permute.xlu0 %598
    %v601 = vmul.f32 %v595, %v599
    %603 = vrot.lane.b32.xlu0 %v543, 32
    %v604 = vpop.permute.xlu0 %603
    %v606 = vmul.f32 %v595, %v604
    %608 = vrot.lane.b32.xlu0 %v606, 96
    %v609 = vpop.permute.xlu0 %608
    %v611 = vadd.f32 %v601, %v609
    %v612 = vtanh.pop %v611
    %614 = vrot.lane.b32.xlu0 %v612, 96
    %v615 = vpop.permute.xlu0 %614
    %v617 = vmul.f32 %v595, %v615
    %v618 = vpack.c.bf16 %v617, %v617
    %620 = vrot.lane.b32.xlu0 %v618, 32
    %v621 = vpop.permute.xlu0 %620
    %623 = vst.msk [vmem:[#allocation2 + $0x8] sm:$0xf] %vm332, %v621
    %v624 = vadd.f32 %v297, %v585
    %v625 = vxor.u32 %v624, 2147483648
    %v626 = vmul.f32 %v625, 1.442695
    %v627 = vpow.pop %v626
    %v628 = vadd.f32 %v627, 1.0
    %v629 = vrcp.pop %v628
    %v630 = vmul.f32 1.0, %v629
    %v631 = vtanh.pop %v624
    %633 = vrot.lane.b32.xlu0 %v631, 64
    %v634 = vpop.permute.xlu0 %633
    %v636 = vmul.f32 %v630, %v634
    %v637 = vmul.f32 %v630, %v543
    %639 = vrot.lane.b32.xlu0 %v637, 96
    %v640 = vpop.permute.xlu0 %639
    %v642 = vadd.f32 %v636, %v640
    %v643 = vtanh.pop %v642
    %645 = vrot.lane.b32.xlu0 %v643, 96
    %v646 = vpop.permute.xlu0 %645
    %v648 = vmul.f32 %v630, %v646
    %v649 = vpack.c.bf16 %v648, %v648
    %v651 = vrot.slane %v649, 4
    %652 = vrot.lane.b32.xlu0 %v651, 64
    %v653 = vpop.permute.xlu0 %652
    %655 = vst.msk [vmem:[#allocation2 + $0x10] sm:$0xf0] %vm358, %v653
    %657 = vrot.lane.b32.xlu0 %v617, 32
    %v658 = vpop.permute.xlu0 %657
    %661 = vrot.lane.b32.xlu0 %v648, 64
    %v662 = vpop.permute.xlu0 %661
    %v664 = vsel %vm368, %v658, %v662
    %666 = vrot.lane.b32.xlu0 %v642, 32
    %v667 = vpop.permute.xlu0 %666
    %v669 = vsel %vm368, %v611, %v667
    %v670 = vpack.c.bf16 %v664, %v664
    %v672 = vsel %vm416, %v670, 0
    %674 = vmatprep.subr.bf16.mxu0 %v401
    %675 = vmatpush1.bf16.msra.mxu0 %v400
    %676 = vmatprep.subr.bf16.mxu0 %v403
    %677 = vmatpush1.bf16.msra.mxu0 %v402
    %678 = vmatprep.subr.bf16.mxu0 %v405
    %679 = vmatpush1.bf16.msra.mxu0 %v404
    %680 = vmatprep.subr.bf16.mxu0 %v407
    %681 = vmatpush1.bf16.msra.mxu0 %v406
    %682 = vmatprep.subr.bf16.mxu0 0
    %683 = vmatpush1.bf16.msra.mxu0 0
    %684 = vmatprep.subr.bf16.mxu0 0
    %685 = vmatpush1.bf16.msra.mxu0 0
    %686 = vmatprep.subr.bf16.mxu0 0
    %687 = vmatpush1.bf16.msra.mxu0 0
    %688 = vmatprep.subr.bf16.mxu0 0
    %689 = vmatpush1.bf16.msra.mxu0 0
    %690 = vmatprep.subr.bf16.mxu0 0
    %691 = vmatpush1.bf16.msra.mxu0 0
    %692 = vmatprep.subr.bf16.mxu0 0
    %693 = vmatpush1.bf16.msra.mxu0 0
    %694 = vmatprep.subr.bf16.mxu0 0
    %695 = vmatpush1.bf16.msra.mxu0 0
    %696 = vmatprep.subr.bf16.mxu0 0
    %697 = vmatpush1.bf16.msra.mxu0 0
    %698 = vmatprep.subr.bf16.mxu0 0
    %699 = vmatpush1.bf16.msra.mxu0 0
    %700 = vmatprep.subr.bf16.mxu0 0
    %701 = vmatpush1.bf16.msra.mxu0 0
    %702 = vmatprep.subr.bf16.mxu0 0
    %703 = vmatpush1.bf16.msra.mxu0 0
    %704 = vmatprep.subr.bf16.mxu0 0
    %705 = vmatpush1.bf16.msra.mxu0 0
    %706 = vmatprep.mubr.bf16.mxu0 0
    %707 = vmatmul.mubr.bf16.gmra.mrb[0].mxu0 %v672
    %v708 = vpop.f32.mrb[0].mxu0
    %v709 = vadd.f32 0.0, %v708
    %v710 = vpop.f32.mrb[0].mxu0
    %v711 = vadd.f32 0.0, %v710
    %v712 = vpop.f32.mrb[0].mxu0
    %v713 = vpop.f32.mrb[0].mxu0
    %714 = vdwg.mxu0
    %v715 = vadd.f32 %v285, %v709
    %v716 = vxor.u32 %v715, 2147483648
    %v717 = vmul.f32 %v716, 1.442695
    %v718 = vpow.pop %v717
    %v719 = vadd.f32 %v718, 1.0
    %v720 = vrcp.pop %v719
    %v721 = vmul.f32 1.0, %v720
    %v722 = vtanh.pop %v715
    %724 = vrot.lane.b32.xlu0 %v722, 64
    %v725 = vpop.permute.xlu0 %724
    %v727 = vmul.f32 %v721, %v725
    %729 = vrot.lane.b32.xlu0 %v669, 32
    %v730 = vpop.permute.xlu0 %729
    %v732 = vmul.f32 %v721, %v730
    %734 = vrot.lane.b32.xlu0 %v732, 96
    %v735 = vpop.permute.xlu0 %734
    %v737 = vadd.f32 %v727, %v735
    %v738 = vtanh.pop %v737
    %740 = vrot.lane.b32.xlu0 %v738, 96
    %v741 = vpop.permute.xlu0 %740
    %v743 = vmul.f32 %v721, %v741
    %v744 = vpack.c.bf16 %v743, %v743
    %v746 = vrot.slane %v744, 4
    %747 = vrot.lane.b32.xlu0 %v746, 32
    %v748 = vpop.permute.xlu0 %747
    %750 = vst.msk [vmem:[#allocation2 + $0x8] sm:$0xf0] %vm496, %v748
    %v751 = vadd.f32 %v293, %v711
    %v752 = vxor.u32 %v751, 2147483648
    %v753 = vmul.f32 %v752, 1.442695
    %v754 = vpow.pop %v753
    %v755 = vadd.f32 %v754, 1.0
    %v756 = vrcp.pop %v755
    %v757 = vmul.f32 1.0, %v756
    %v758 = vtanh.pop %v751
    %760 = vrot.lane.b32.xlu0 %v758, 64
    %v761 = vpop.permute.xlu0 %760
    %v763 = vmul.f32 %v757, %v761
    %v764 = vmul.f32 %v757, %v669
    %766 = vrot.lane.b32.xlu0 %v764, 96
    %v767 = vpop.permute.xlu0 %766
    %v769 = vadd.f32 %v763, %v767
    %v770 = vtanh.pop %v769
    %772 = vrot.lane.b32.xlu0 %v770, 96
    %v773 = vpop.permute.xlu0 %772
    %v775 = vmul.f32 %v757, %v773
    %v776 = vpack.c.bf16 %v775, %v775
    %778 = vrot.lane.b32.xlu0 %v776, 64
    %v779 = vpop.permute.xlu0 %778
    %781 = vst.msk [vmem:[#allocation2 + $0x10] sm:$0xf] %vm528, %v779
    %783 = vrot.lane.b32.xlu0 %v743, 32
    %v784 = vpop.permute.xlu0 %783
    %787 = vrot.lane.b32.xlu0 %v775, 64
    %v788 = vpop.permute.xlu0 %787
    %v790 = vsel %vm368, %v784, %v788
    %792 = vrot.lane.b32.xlu0 %v769, 32
    %v793 = vpop.permute.xlu0 %792
    %v795 = vsel %vm368, %v737, %v793
    %v796 = vpack.c.bf16 %v790, %v790
    %v798 = vsel %vm416, %v796, 0
    %800 = vmatprep.subr.bf16.mxu0 %v401
    %801 = vmatpush1.bf16.msra.mxu0 %v400
    %802 = vmatprep.subr.bf16.mxu0 %v403
    %803 = vmatpush1.bf16.msra.mxu0 %v402
    %804 = vmatprep.subr.bf16.mxu0 %v405
    %805 = vmatpush1.bf16.msra.mxu0 %v404
    %806 = vmatprep.subr.bf16.mxu0 %v407
    %807 = vmatpush1.bf16.msra.mxu0 %v406
    %808 = vmatprep.subr.bf16.mxu0 0
    %809 = vmatpush1.bf16.msra.mxu0 0
    %810 = vmatprep.subr.bf16.mxu0 0
    %811 = vmatpush1.bf16.msra.mxu0 0
    %812 = vmatprep.subr.bf16.mxu0 0
    %813 = vmatpush1.bf16.msra.mxu0 0
    %814 = vmatprep.subr.bf16.mxu0 0
    %815 = vmatpush1.bf16.msra.mxu0 0
    %816 = vmatprep.subr.bf16.mxu0 0
    %817 = vmatpush1.bf16.msra.mxu0 0
    %818 = vmatprep.subr.bf16.mxu0 0
    %819 = vmatpush1.bf16.msra.mxu0 0
    %820 = vmatprep.subr.bf16.mxu0 0
    %821 = vmatpush1.bf16.msra.mxu0 0
    %822 = vmatprep.subr.bf16.mxu0 0
    %823 = vmatpush1.bf16.msra.mxu0 0
    %824 = vmatprep.subr.bf16.mxu0 0
    %825 = vmatpush1.bf16.msra.mxu0 0
    %826 = vmatprep.subr.bf16.mxu0 0
    %827 = vmatpush1.bf16.msra.mxu0 0
    %828 = vmatprep.subr.bf16.mxu0 0
    %829 = vmatpush1.bf16.msra.mxu0 0
    %830 = vmatprep.subr.bf16.mxu0 0
    %831 = vmatpush1.bf16.msra.mxu0 0
    %832 = vmatprep.mubr.bf16.mxu0 0
    %833 = vmatmul.mubr.bf16.gmra.mrb[0].mxu0 %v798
    %v834 = vpop.f32.mrb[0].mxu0
    %v835 = vadd.f32 0.0, %v834
    %v836 = vpop.f32.mrb[0].mxu0
    %v837 = vadd.f32 0.0, %v836
    %v838 = vpop.f32.mrb[0].mxu0
    %v839 = vpop.f32.mrb[0].mxu0
    %840 = vdwg.mxu0
    %v841 = vadd.f32 %v291, %v835
    %v842 = vxor.u32 %v841, 2147483648
    %v843 = vmul.f32 %v842, 1.442695
    %v844 = vpow.pop %v843
    %v845 = vadd.f32 %v844, 1.0
    %v846 = vrcp.pop %v845
    %v847 = vmul.f32 1.0, %v846
    %v848 = vtanh.pop %v841
    %850 = vrot.lane.b32.xlu0 %v848, 64
    %v851 = vpop.permute.xlu0 %850
    %v853 = vmul.f32 %v847, %v851
    %855 = vrot.lane.b32.xlu0 %v795, 32
    %v856 = vpop.permute.xlu0 %855
    %v858 = vmul.f32 %v847, %v856
    %860 = vrot.lane.b32.xlu0 %v858, 96
    %v861 = vpop.permute.xlu0 %860
    %v863 = vadd.f32 %v853, %v861
    %v864 = vtanh.pop %v863
    %866 = vrot.lane.b32.xlu0 %v864, 96
    %v867 = vpop.permute.xlu0 %866
    %v869 = vmul.f32 %v847, %v867
    %v870 = vpack.c.bf16 %v869, %v869
    %872 = vrot.lane.b32.xlu0 %v870, 32
    %v873 = vpop.permute.xlu0 %872
    %875 = vst.msk [vmem:[#allocation2 + $0x10] sm:$0xf] %vm332, %v873
    %v876 = vadd.f32 %v287, %v837
    %v877 = vxor.u32 %v876, 2147483648
    %v878 = vmul.f32 %v877, 1.442695
    %v879 = vpow.pop %v878
    %v880 = vadd.f32 %v879, 1.0
    %v881 = vrcp.pop %v880
    %v882 = vmul.f32 1.0, %v881
    %v883 = vtanh.pop %v876
    %885 = vrot.lane.b32.xlu0 %v883, 64
    %v886 = vpop.permute.xlu0 %885
    %v888 = vmul.f32 %v882, %v886
    %v889 = vmul.f32 %v882, %v795
    %891 = vrot.lane.b32.xlu0 %v889, 96
    %v892 = vpop.permute.xlu0 %891
    %v894 = vadd.f32 %v888, %v892
    %v895 = vtanh.pop %v894
    %897 = vrot.lane.b32.xlu0 %v895, 96
    %v898 = vpop.permute.xlu0 %897
    %v900 = vmul.f32 %v882, %v898
    %v901 = vpack.c.bf16 %v900, %v900
    %v903 = vrot.slane %v901, 4
    %904 = vrot.lane.b32.xlu0 %v903, 64
    %v905 = vpop.permute.xlu0 %904
    %907 = vst.msk [vmem:[#allocation2 + $0x8] sm:$0xf0] %vm358, %v905
    %909 = vrot.lane.b32.xlu0 %v869, 32
    %v910 = vpop.permute.xlu0 %909
    %913 = vrot.lane.b32.xlu0 %v900, 64
    %v914 = vpop.permute.xlu0 %913
    %v916 = vsel %vm368, %v910, %v914
    %918 = vrot.lane.b32.xlu0 %v894, 32
    %v919 = vpop.permute.xlu0 %918
    %v921 = vsel %vm368, %v863, %v919
    %v922 = vpack.c.bf16 %v916, %v916
    %v924 = vsel %vm416, %v922, 0
    %926 = vmatprep.subr.bf16.mxu0 %v401
    %927 = vmatpush1.bf16.msra.mxu0 %v400
    %928 = vmatprep.subr.bf16.mxu0 %v403
    %929 = vmatpush1.bf16.msra.mxu0 %v402
    %930 = vmatprep.subr.bf16.mxu0 %v405
    %931 = vmatpush1.bf16.msra.mxu0 %v404
    %932 = vmatprep.subr.bf16.mxu0 %v407
    %933 = vmatpush1.bf16.msra.mxu0 %v406
    %934 = vmatprep.subr.bf16.mxu0 0
    %935 = vmatpush1.bf16.msra.mxu0 0
    %936 = vmatprep.subr.bf16.mxu0 0
    %937 = vmatpush1.bf16.msra.mxu0 0
    %938 = vmatprep.subr.bf16.mxu0 0
    %939 = vmatpush1.bf16.msra.mxu0 0
    %940 = vmatprep.subr.bf16.mxu0 0
    %941 = vmatpush1.bf16.msra.mxu0 0
    %942 = vmatprep.subr.bf16.mxu0 0
    %943 = vmatpush1.bf16.msra.mxu0 0
    %944 = vmatprep.subr.bf16.mxu0 0
    %945 = vmatpush1.bf16.msra.mxu0 0
    %946 = vmatprep.subr.bf16.mxu0 0
    %947 = vmatpush1.bf16.msra.mxu0 0
    %948 = vmatprep.subr.bf16.mxu0 0
    %949 = vmatpush1.bf16.msra.mxu0 0
    %950 = vmatprep.subr.bf16.mxu0 0
    %951 = vmatpush1.bf16.msra.mxu0 0
    %952 = vmatprep.subr.bf16.mxu0 0
    %953 = vmatpush1.bf16.msra.mxu0 0
    %954 = vmatprep.subr.bf16.mxu0 0
    %955 = vmatpush1.bf16.msra.mxu0 0
    %956 = vmatprep.subr.bf16.mxu0 0
    %957 = vmatpush1.bf16.msra.mxu0 0
    %958 = vmatprep.mubr.bf16.mxu0 0
    %959 = vmatmul.mubr.bf16.gmra.mrb[0].mxu0 %v924
    %v960 = vpop.f32.mrb[0].mxu0
    %v961 = vadd.f32 0.0, %v960
    %v962 = vpop.f32.mrb[0].mxu0
    %v963 = vadd.f32 0.0, %v962
    %v964 = vpop.f32.mrb[0].mxu0
    %v965 = vpop.f32.mrb[0].mxu0
    %966 = vdwg.mxu0
    %v967 = vadd.f32 %v295, %v961
    %v968 = vxor.u32 %v967, 2147483648
    %v969 = vmul.f32 %v968, 1.442695
    %v970 = vpow.pop %v969
    %v971 = vadd.f32 %v970, 1.0
    %v972 = vrcp.pop %v971
    %v973 = vmul.f32 1.0, %v972
    %v974 = vtanh.pop %v967
    %976 = vrot.lane.b32.xlu0 %v974, 64
    %v977 = vpop.permute.xlu0 %976
    %v979 = vmul.f32 %v973, %v977
    %981 = vrot.lane.b32.xlu0 %v921, 32
    %v982 = vpop.permute.xlu0 %981
    %v984 = vmul.f32 %v973, %v982
    %986 = vrot.lane.b32.xlu0 %v984, 96
    %v987 = vpop.permute.xlu0 %986
    %v989 = vadd.f32 %v979, %v987
    %v990 = vtanh.pop %v989
    %992 = vrot.lane.b32.xlu0 %v990, 96
    %v993 = vpop.permute.xlu0 %992
    %v995 = vmul.f32 %v973, %v993
    %v996 = vpack.c.bf16 %v995, %v995
    %v998 = vrot.slane %v996, 4
    %999 = vrot.lane.b32.xlu0 %v998, 32
    %v1000 = vpop.permute.xlu0 %999
    %1002 = vst.msk [vmem:[#allocation2 + $0x10] sm:$0xf0] %vm496, %v1000
    %v1003 = vadd.f32 %v283, %v963
    %v1004 = vxor.u32 %v1003, 2147483648
    %v1005 = vmul.f32 %v1004, 1.442695
    %v1006 = vpow.pop %v1005
    %v1007 = vadd.f32 %v1006, 1.0
    %v1008 = vrcp.pop %v1007
    %v1009 = vmul.f32 1.0, %v1008
    %v1010 = vtanh.pop %v1003
    %1012 = vrot.lane.b32.xlu0 %v1010, 64
    %v1013 = vpop.permute.xlu0 %1012
    %v1015 = vmul.f32 %v1009, %v1013
    %v1016 = vmul.f32 %v1009, %v921
    %1018 = vrot.lane.b32.xlu0 %v1016, 96
    %v1019 = vpop.permute.xlu0 %1018
    %v1021 = vadd.f32 %v1015, %v1019
    %v1022 = vtanh.pop %v1021
    %1024 = vrot.lane.b32.xlu0 %v1022, 96
    %v1025 = vpop.permute.xlu0 %1024
    %v1027 = vmul.f32 %v1009, %v1025
    %v1028 = vpack.c.bf16 %v1027, %v1027
    %1030 = vrot.lane.b32.xlu0 %v1028, 64
    %v1031 = vpop.permute.xlu0 %1030
    %1033 = vst.msk [vmem:[#allocation2 + $0x8] sm:$0xf] %vm528, %v1031
    %1035 = vrot.lane.b32.xlu0 %v995, 32
    %v1036 = vpop.permute.xlu0 %1035
    %1039 = vrot.lane.b32.xlu0 %v1027, 64
    %v1040 = vpop.permute.xlu0 %1039
    %v1042 = vsel %vm368, %v1036, %v1040
    %1044 = vrot.lane.b32.xlu0 %v1021, 32
    %v1045 = vpop.permute.xlu0 %1044
    %v1047 = vsel %vm368, %v989, %v1045
    %v1048 = vpack.c.bf16 %v1042, %v1042
    %v1050 = vsel %vm416, %v1048, 0
    %1052 = vmatprep.subr.bf16.mxu0 %v401
    %1053 = vmatpush1.bf16.msra.mxu0 %v400
    %1054 = vmatprep.subr.bf16.mxu0 %v403
    %1055 = vmatpush1.bf16.msra.mxu0 %v402
    %1056 = vmatprep.subr.bf16.mxu0 %v405
    %1057 = vmatpush1.bf16.msra.mxu0 %v404
    %1058 = vmatprep.subr.bf16.mxu0 %v407
    %1059 = vmatpush1.bf16.msra.mxu0 %v406
    %1060 = vmatprep.subr.bf16.mxu0 0
    %1061 = vmatpush1.bf16.msra.mxu0 0
    %1062 = vmatprep.subr.bf16.mxu0 0
    %1063 = vmatpush1.bf16.msra.mxu0 0
    %1064 = vmatprep.subr.bf16.mxu0 0
    %1065 = vmatpush1.bf16.msra.mxu0 0
    %1066 = vmatprep.subr.bf16.mxu0 0
    %1067 = vmatpush1.bf16.msra.mxu0 0
    %1068 = vmatprep.subr.bf16.mxu0 0
    %1069 = vmatpush1.bf16.msra.mxu0 0
    %1070 = vmatprep.subr.bf16.mxu0 0
    %1071 = vmatpush1.bf16.msra.mxu0 0
    %1072 = vmatprep.subr.bf16.mxu0 0
    %1073 = vmatpush1.bf16.msra.mxu0 0
    %1074 = vmatprep.subr.bf16.mxu0 0
    %1075 = vmatpush1.bf16.msra.mxu0 0
    %1076 = vmatprep.subr.bf16.mxu0 0
    %1077 = vmatpush1.bf16.msra.mxu0 0
    %1078 = vmatprep.subr.bf16.mxu0 0
    %1079 = vmatpush1.bf16.msra.mxu0 0
    %1080 = vmatprep.subr.bf16.mxu0 0
    %1081 = vmatpush1.bf16.msra.mxu0 0
    %1082 = vmatprep.subr.bf16.mxu0 0
    %1083 = vmatpush1.bf16.msra.mxu0 0
    %1084 = vmatprep.mubr.bf16.mxu0 0
    %1085 = vmatmul.mubr.bf16.gmra.mrb[0].mxu0 %v1050
    %v1086 = vpop.f32.mrb[0].mxu0
    %v1087 = vadd.f32 0.0, %v1086
    %v1088 = vpop.f32.mrb[0].mxu0
    %v1089 = vadd.f32 0.0, %v1088
    %v1090 = vpop.f32.mrb[0].mxu0
    %v1091 = vpop.f32.mrb[0].mxu0
    %1092 = vdwg.mxu0
    %v1093 = vadd.f32 %v301, %v1087
    %v1094 = vxor.u32 %v1093, 2147483648
    %v1095 = vmul.f32 %v1094, 1.442695
    %v1096 = vpow.pop %v1095
    %v1097 = vadd.f32 %v1096, 1.0
    %v1098 = vrcp.pop %v1097
    %v1099 = vmul.f32 1.0, %v1098
    %v1100 = vtanh.pop %v1093
    %1102 = vrot.lane.b32.xlu0 %v1100, 64
    %v1103 = vpop.permute.xlu0 %1102
    %v1105 = vmul.f32 %v1099, %v1103
    %1107 = vrot.lane.b32.xlu0 %v1047, 32
    %v1108 = vpop.permute.xlu0 %1107
    %v1110 = vmul.f32 %v1099, %v1108
    %1112 = vrot.lane.b32.xlu0 %v1110, 96
    %v1113 = vpop.permute.xlu0 %1112
    %v1115 = vadd.f32 %v1105, %v1113
    %v1116 = vtanh.pop %v1115
    %1118 = vrot.lane.b32.xlu0 %v1116, 96
    %v1119 = vpop.permute.xlu0 %1118
    %v1121 = vmul.f32 %v1099, %v1119
    %v1122 = vpack.c.bf16 %v1121, %v1121
    %1124 = vrot.lane.b32.xlu0 %v1122, 32
    %v1125 = vpop.permute.xlu0 %1124
    %1127 = vst.msk [vmem:[#allocation2 + $0x18] sm:$0xf] %vm332, %v1125
    %v1128 = vadd.f32 %v277, %v1089
    %v1129 = vxor.u32 %v1128, 2147483648
    %v1130 = vmul.f32 %v1129, 1.442695
    %v1131 = vpow.pop %v1130
    %v1132 = vadd.f32 %v1131, 1.0
    %v1133 = vrcp.pop %v1132
    %v1134 = vmul.f32 1.0, %v1133
    %v1135 = vtanh.pop %v1128
    %1137 = vrot.lane.b32.xlu0 %v1135, 64
    %v1138 = vpop.permute.xlu0 %1137
    %v1140 = vmul.f32 %v1134, %v1138
    %v1141 = vmul.f32 %v1134, %v1047
    %1143 = vrot.lane.b32.xlu0 %v1141, 96
    %v1144 = vpop.permute.xlu0 %1143
    %v1146 = vadd.f32 %v1140, %v1144
    %v1147 = vtanh.pop %v1146
    %1149 = vrot.lane.b32.xlu0 %v1147, 96
    %v1150 = vpop.permute.xlu0 %1149
    %v1152 = vmul.f32 %v1134, %v1150
    %v1153 = vpack.c.bf16 %v1152, %v1152
    %v1155 = vrot.slane %v1153, 4
    %1156 = vrot.lane.b32.xlu0 %v1155, 64
    %v1157 = vpop.permute.xlu0 %1156
    %1159 = vst.msk [vmem:[#allocation2] sm:$0xf0] %vm358, %v1157
    %1161 = vrot.lane.b32.xlu0 %v1121, 32
    %v1162 = vpop.permute.xlu0 %1161
    %1165 = vrot.lane.b32.xlu0 %v1152, 64
    %v1166 = vpop.permute.xlu0 %1165
    %v1168 = vsel %vm368, %v1162, %v1166
    %1170 = vrot.lane.b32.xlu0 %v1146, 32
    %v1171 = vpop.permute.xlu0 %1170
    %v1173 = vsel %vm368, %v1115, %v1171
    %v1174 = vpack.c.bf16 %v1168, %v1168
    %v1176 = vsel %vm416, %v1174, 0
    %1178 = vmatprep.subr.bf16.mxu0 %v401
    %1179 = vmatpush1.bf16.msra.mxu0 %v400
    %1180 = vmatprep.subr.bf16.mxu0 %v403
    %1181 = vmatpush1.bf16.msra.mxu0 %v402
    %1182 = vmatprep.subr.bf16.mxu0 %v405
    %1183 = vmatpush1.bf16.msra.mxu0 %v404
    %1184 = vmatprep.subr.bf16.mxu0 %v407
    %1185 = vmatpush1.bf16.msra.mxu0 %v406
    %1186 = vmatprep.subr.bf16.mxu0 0
    %1187 = vmatpush1.bf16.msra.mxu0 0
    %1188 = vmatprep.subr.bf16.mxu0 0
    %1189 = vmatpush1.bf16.msra.mxu0 0
    %1190 = vmatprep.subr.bf16.mxu0 0
    %1191 = vmatpush1.bf16.msra.mxu0 0
    %1192 = vmatprep.subr.bf16.mxu0 0
    %1193 = vmatpush1.bf16.msra.mxu0 0
    %1194 = vmatprep.subr.bf16.mxu0 0
    %1195 = vmatpush1.bf16.msra.mxu0 0
    %1196 = vmatprep.subr.bf16.mxu0 0
    %1197 = vmatpush1.bf16.msra.mxu0 0
    %1198 = vmatprep.subr.bf16.mxu0 0
    %1199 = vmatpush1.bf16.msra.mxu0 0
    %1200 = vmatprep.subr.bf16.mxu0 0
    %1201 = vmatpush1.bf16.msra.mxu0 0
    %1202 = vmatprep.subr.bf16.mxu0 0
    %1203 = vmatpush1.bf16.msra.mxu0 0
    %1204 = vmatprep.subr.bf16.mxu0 0
    %1205 = vmatpush1.bf16.msra.mxu0 0
    %1206 = vmatprep.subr.bf16.mxu0 0
    %1207 = vmatpush1.bf16.msra.mxu0 0
    %1208 = vmatprep.subr.bf16.mxu0 0
    %1209 = vmatpush1.bf16.msra.mxu0 0
    %1210 = vmatprep.mubr.bf16.mxu0 0
    %1211 = vmatmul.mubr.bf16.gmra.mrb[0].mxu0 %v1176
    %v1212 = vpop.f32.mrb[0].mxu0
    %v1213 = vadd.f32 0.0, %v1212
    %v1214 = vpop.f32.mrb[0].mxu0
    %v1215 = vadd.f32 0.0, %v1214
    %v1216 = vpop.f32.mrb[0].mxu0
    %v1217 = vpop.f32.mrb[0].mxu0
    %1218 = vdwg.mxu0
    %v1219 = vadd.f32 %v305, %v1213
    %v1220 = vxor.u32 %v1219, 2147483648
    %v1221 = vmul.f32 %v1220, 1.442695
    %v1222 = vpow.pop %v1221
    %v1223 = vadd.f32 %v1222, 1.0
    %v1224 = vrcp.pop %v1223
    %v1225 = vmul.f32 1.0, %v1224
    %v1226 = vtanh.pop %v1219
    %1228 = vrot.lane.b32.xlu0 %v1226, 64
    %v1229 = vpop.permute.xlu0 %1228
    %v1231 = vmul.f32 %v1225, %v1229
    %1233 = vrot.lane.b32.xlu0 %v1173, 32
    %v1234 = vpop.permute.xlu0 %1233
    %v1236 = vmul.f32 %v1225, %v1234
    %1238 = vrot.lane.b32.xlu0 %v1236, 96
    %v1239 = vpop.permute.xlu0 %1238
    %v1241 = vadd.f32 %v1231, %v1239
    %v1242 = vtanh.pop %v1241
    %1244 = vrot.lane.b32.xlu0 %v1242, 96
    %v1245 = vpop.permute.xlu0 %1244
    %v1247 = vmul.f32 %v1225, %v1245
    %v1248 = vpack.c.bf16 %v1247, %v1247
    %v1250 = vrot.slane %v1248, 4
    %1251 = vrot.lane.b32.xlu0 %v1250, 32
    %v1252 = vpop.permute.xlu0 %1251
    %1254 = vst.msk [vmem:[#allocation2 + $0x18] sm:$0xf0] %vm496, %v1252
    %v1255 = vadd.f32 %v273, %v1215
    %v1256 = vxor.u32 %v1255, 2147483648
    %v1257 = vmul.f32 %v1256, 1.442695
    %v1258 = vpow.pop %v1257
    %v1259 = vadd.f32 %v1258, 1.0
    %v1260 = vrcp.pop %v1259
    %v1261 = vmul.f32 1.0, %v1260
    %v1262 = vtanh.pop %v1255
    %1264 = vrot.lane.b32.xlu0 %v1262, 64
    %v1265 = vpop.permute.xlu0 %1264
    %v1267 = vmul.f32 %v1261, %v1265
    %v1268 = vmul.f32 %v1261, %v1173
    %1270 = vrot.lane.b32.xlu0 %v1268, 96
    %v1271 = vpop.permute.xlu0 %1270
    %v1273 = vadd.f32 %v1267, %v1271
    %v1274 = vtanh.pop %v1273
    %1276 = vrot.lane.b32.xlu0 %v1274, 96
    %v1277 = vpop.permute.xlu0 %1276
    %v1279 = vmul.f32 %v1261, %v1277
    %v1280 = vpack.c.bf16 %v1279, %v1279
    %1282 = vrot.lane.b32.xlu0 %v1280, 64
    %v1283 = vpop.permute.xlu0 %1282
    %1285 = vst.msk [vmem:[#allocation2] sm:$0xf] %vm528, %v1283
    %v1286 = vld [vmem:[#allocation2] sm:$0xff]
    %v1287 = vld [vmem:[#allocation2 + $0x8] sm:$0xff]
    %v1288 = vld [vmem:[#allocation2 + $0x10] sm:$0xff]
    %v1289 = vld [vmem:[#allocation2 + $0x18] sm:$0xff]
    %v1290 = vld [vmem:[#allocation5] sm:$0xff]
    %v1291 = vld [vmem:[#allocation5 + $0x8] sm:$0xff]
    %v1292 = vld [vmem:[#allocation5 + $0x10] sm:$0xff]
    %v1293 = vld [vmem:[#allocation5 + $0x18] sm:$0xff]
    %v1294 = vld [vmem:[#allocation5 + $0x20] sm:$0xff]
    %v1295 = vld [vmem:[#allocation5 + $0x28] sm:$0xff]
    %v1296 = vld [vmem:[#allocation5 + $0x30] sm:$0xff]
    %v1297 = vld [vmem:[#allocation5 + $0x38] sm:$0xff]
    %v1298 = vld [vmem:[%s6] sm:$0x3]
    %v1300 = vlaneseq
    %v1301 = vshrl.u32 %v1300, 7
    %v1302 = vsub.s32 0, %v1301
    %v1303 = vrot.slane %v1298, %v1302
    %v1304 = vlaneseq
    %v1305 = vshrl.u32 %v1304, 7
    %v1306 = vsub.s32 1, %v1305
    %v1307 = vrot.slane %v1298, %v1306
    %v1318 = vunpack.c.l.b16 %v1290
    %v1319 = vunpack.c.h.b16 %v1290
    %v1320 = vunpack.c.l.b16 %v1291
    %v1321 = vunpack.c.h.b16 %v1291
    %v1322 = vunpack.c.l.b16 %v1292
    %v1323 = vunpack.c.h.b16 %v1292
    %v1324 = vunpack.c.l.b16 %v1293
    %v1325 = vunpack.c.h.b16 %v1293
    %v1326 = vunpack.c.l.b16 %v1294
    %v1327 = vunpack.c.h.b16 %v1294
    %v1328 = vunpack.c.l.b16 %v1295
    %v1329 = vunpack.c.h.b16 %v1295
    %v1330 = vunpack.c.l.b16 %v1296
    %v1331 = vunpack.c.h.b16 %v1296
    %v1332 = vunpack.c.l.b16 %v1297
    %v1333 = vunpack.c.h.b16 %v1297
    %v1334 = vpack.c.b16 %v1320, %v1318
    %v1335 = vpack.c.b16 %v1321, %v1319
    %v1336 = vpack.c.b16 %v1324, %v1322
    %v1337 = vpack.c.b16 %v1325, %v1323
    %v1338 = vpack.c.b16 %v1328, %v1326
    %v1339 = vpack.c.b16 %v1329, %v1327
    %v1340 = vpack.c.b16 %v1332, %v1330
    %v1341 = vpack.c.b16 %v1333, %v1331
    %v1351 = vsel %vm416, %v1286, 0
    %v1354 = vsel %vm416, %v1287, 0
    %v1357 = vsel %vm416, %v1288, 0
    %v1360 = vsel %vm416, %v1289, 0
    %1362 = vmatprep.subr.bf16.mxu0 %v1335
    %1363 = vmatpush1.bf16.msra.mxu0 %v1334
    %1364 = vmatprep.subr.bf16.mxu0 %v1337
    %1365 = vmatpush1.bf16.msra.mxu0 %v1336
    %1366 = vmatprep.subr.bf16.mxu0 %v1339
    %1367 = vmatpush1.bf16.msra.mxu0 %v1338
    %1368 = vmatprep.subr.bf16.mxu0 %v1341
    %1369 = vmatpush1.bf16.msra.mxu0 %v1340
    %1370 = vmatprep.subr.bf16.mxu0 0
    %1371 = vmatpush1.bf16.msra.mxu0 0
    %1372 = vmatprep.subr.bf16.mxu0 0
    %1373 = vmatpush1.bf16.msra.mxu0 0
    %1374 = vmatprep.subr.bf16.mxu0 0
    %1375 = vmatpush1.bf16.msra.mxu0 0
    %1376 = vmatprep.subr.bf16.mxu0 0
    %1377 = vmatpush1.bf16.msra.mxu0 0
    %1378 = vmatprep.subr.bf16.mxu0 0
    %1379 = vmatpush1.bf16.msra.mxu0 0
    %1380 = vmatprep.subr.bf16.mxu0 0
    %1381 = vmatpush1.bf16.msra.mxu0 0
    %1382 = vmatprep.subr.bf16.mxu0 0
    %1383 = vmatpush1.bf16.msra.mxu0 0
    %1384 = vmatprep.subr.bf16.mxu0 0
    %1385 = vmatpush1.bf16.msra.mxu0 0
    %1386 = vmatprep.subr.bf16.mxu0 0
    %1387 = vmatpush1.bf16.msra.mxu0 0
    %1388 = vmatprep.subr.bf16.mxu0 0
    %1389 = vmatpush1.bf16.msra.mxu0 0
    %1390 = vmatprep.subr.bf16.mxu0 0
    %1391 = vmatpush1.bf16.msra.mxu0 0
    %1392 = vmatprep.subr.bf16.mxu0 0
    %1393 = vmatpush1.bf16.msra.mxu0 0
    %1394 = vmatprep.mubr.bf16.mxu0 0
    %1395 = vmatmul.mubr.bf16.gmra.mrb[0].mxu0 %v1351
    %v1396 = vpop.f32.mrb[0].mxu0
    %v1397 = vadd.f32 %v1303, %v1396
    %v1398 = vpop.f32.mrb[0].mxu0
    %v1399 = vpop.f32.mrb[0].mxu0
    %v1400 = vadd.f32 %v1303, %v1399
    %v1401 = vpop.f32.mrb[0].mxu0
    %1402 = vmatprep.mubr.bf16.mxu0 0
    %1403 = vmatmul.mubr.bf16.gmra.mrb[0].mxu0 %v1354
    %v1404 = vpop.f32.mrb[0].mxu0
    %v1405 = vadd.f32 %v1303, %v1404
    %v1406 = vpop.f32.mrb[0].mxu0
    %v1407 = vpop.f32.mrb[0].mxu0
    %v1408 = vadd.f32 %v1303, %v1407
    %v1409 = vpop.f32.mrb[0].mxu0
    %1410 = vmatprep.mubr.bf16.mxu0 0
    %1411 = vmatmul.mubr.bf16.gmra.mrb[0].mxu0 %v1357
    %v1412 = vpop.f32.mrb[0].mxu0
    %v1413 = vadd.f32 %v1303, %v1412
    %v1414 = vpop.f32.mrb[0].mxu0
    %v1415 = vpop.f32.mrb[0].mxu0
    %v1416 = vadd.f32 %v1303, %v1415
    %v1417 = vpop.f32.mrb[0].mxu0
    %1418 = vmatprep.mubr.bf16.mxu0 0
    %1419 = vmatmul.mubr.bf16.gmra.mrb[0].mxu0 %v1360
    %v1420 = vpop.f32.mrb[0].mxu0
    %v1421 = vadd.f32 %v1303, %v1420
    %v1422 = vpop.f32.mrb[0].mxu0
    %v1423 = vpop.f32.mrb[0].mxu0
    %v1424 = vadd.f32 %v1303, %v1423
    %v1425 = vpop.f32.mrb[0].mxu0
    %v1426 = vadd.f32 %v1307, %v1425
    %1427 = vdwg.mxu0
    %v1428 = vxor.u32 %v1426, 2147483648
    %v1429 = vmul.f32 %v1428, 1.442695
    %v1430 = vpow.pop %v1429
    %v1431 = vadd.f32 %v1430, 1.0
    %v1432 = vrcp.pop %v1431
    %v1433 = vmul.f32 1.0, %v1432
    %v1434 = vtanh.pop %v1426
    %1436 = vrot.lane.b32.xlu0 %v1434, 64
    %v1437 = vpop.permute.xlu0 %1436
    %v1439 = vmul.f32 %v1433, %v1437
    %v1440 = vtanh.pop %v1439
    %1442 = vrot.lane.b32.xlu0 %v1440, 96
    %v1443 = vpop.permute.xlu0 %1442
    %v1445 = vmul.f32 %v1433, %v1443
    %v1446 = vld [vmem:[#allocation7] sm:$0xf]
    %v1447 = vld [vmem:[#allocation7 + $0x8] sm:$0xf]
    %v1448 = vld [vmem:[#allocation7 + $0x10] sm:$0xf]
    %v1449 = vld [vmem:[#allocation7 + $0x18] sm:$0xf]
    %v1450 = vxor.u32 %v1397, 2147483648
    %v1451 = vmul.f32 %v1450, 1.442695
    %v1452 = vpow.pop %v1451
    %v1453 = vadd.f32 %v1452, 1.0
    %v1454 = vrcp.pop %v1453
    %v1455 = vmul.f32 1.0, %v1454
    %v1456 = vtanh.pop %v1397
    %1458 = vrot.lane.b32.xlu0 %v1456, 64
    %v1459 = vpop.permute.xlu0 %1458
    %v1461 = vmul.f32 %v1455, %v1459
    %v1462 = vtanh.pop %v1461
    %1464 = vrot.lane.b32.xlu0 %v1462, 96
    %v1465 = vpop.permute.xlu0 %1464
    %v1467 = vmul.f32 %v1455, %v1465
    %v1468 = vpack.c.bf16 %v1467, %v1467
    %1470 = vrot.lane.b32.xlu0 %v1468, 32
    %v1471 = vpop.permute.xlu0 %1470
    %v1476 = vunpack.c.l.b16 %v1446
    %v1477 = vunpack.c.l.b16 %v1447
    %v1478 = vunpack.c.l.b16 %v1448
    %v1479 = vunpack.c.l.b16 %v1449
    %v1480 = vpack.c.b16 %v1477, %v1476
    %v1481 = vpack.c.b16 %v1479, %v1478
    %v1485 = vsel %vm368, %v1471, 0
    %1487 = vmatprep.subr.bf16.mxu0 0
    %1488 = vmatpush1.bf16.msra.mxu0 %v1480
    %1489 = vmatprep.subr.bf16.mxu0 0
    %1490 = vmatpush1.bf16.msra.mxu0 %v1481
    %1491 = vmatprep.subr.bf16.mxu0 0
    %1492 = vmatpush1.bf16.msra.mxu0 0
    %1493 = vmatprep.subr.bf16.mxu0 0
    %1494 = vmatpush1.bf16.msra.mxu0 0
    %1495 = vmatprep.subr.bf16.mxu0 0
    %1496 = vmatpush1.bf16.msra.mxu0 0
    %1497 = vmatprep.subr.bf16.mxu0 0
    %1498 = vmatpush1.bf16.msra.mxu0 0
    %1499 = vmatprep.subr.bf16.mxu0 0
    %1500 = vmatpush1.bf16.msra.mxu0 0
    %1501 = vmatprep.subr.bf16.mxu0 0
    %1502 = vmatpush1.bf16.msra.mxu0 0
    %1503 = vmatprep.subr.bf16.mxu0 0
    %1504 = vmatpush1.bf16.msra.mxu0 0
    %1505 = vmatprep.subr.bf16.mxu0 0
    %1506 = vmatpush1.bf16.msra.mxu0 0
    %1507 = vmatprep.subr.bf16.mxu0 0
    %1508 = vmatpush1.bf16.msra.mxu0 0
    %1509 = vmatprep.subr.bf16.mxu0 0
    %1510 = vmatpush1.bf16.msra.mxu0 0
    %1511 = vmatprep.subr.bf16.mxu0 0
    %1512 = vmatpush1.bf16.msra.mxu0 0
    %1513 = vmatprep.subr.bf16.mxu0 0
    %1514 = vmatpush1.bf16.msra.mxu0 0
    %1515 = vmatprep.subr.bf16.mxu0 0
    %1516 = vmatpush1.bf16.msra.mxu0 0
    %1517 = vmatprep.subr.bf16.mxu0 0
    %1518 = vmatpush1.bf16.msra.mxu0 0
    %1519 = vmatprep.mubr.bf16.mxu0 0
    %1520 = vmatmul.mubr.bf16.gmra.mrb[0].mxu0 %v1485
    %v1521 = vpop.f32.mrb[0].mxu0
    %v1522 = vadd.f32 0.0, %v1521
    %v1523 = vpop.f32.mrb[0].mxu0
    %v1524 = vpop.f32.mrb[0].mxu0
    %v1525 = vpop.f32.mrb[0].mxu0
    %1526 = vdwg.mxu0
    %v1527 = vadd.f32 %v1400, %v1522
    %v1528 = vxor.u32 %v1527, 2147483648
    %v1529 = vmul.f32 %v1528, 1.442695
    %v1530 = vpow.pop %v1529
    %v1531 = vadd.f32 %v1530, 1.0
    %v1532 = vrcp.pop %v1531
    %v1533 = vmul.f32 1.0, %v1532
    %v1534 = vtanh.pop %v1527
    %1536 = vrot.lane.b32.xlu0 %v1534, 64
    %v1537 = vpop.permute.xlu0 %1536
    %v1539 = vmul.f32 %v1533, %v1537
    %1541 = vrot.lane.b32.xlu0 %v1461, 32
    %v1542 = vpop.permute.xlu0 %1541
    %v1544 = vmul.f32 %v1533, %v1542
    %1546 = vrot.lane.b32.xlu0 %v1544, 96
    %v1547 = vpop.permute.xlu0 %1546
    %v1549 = vadd.f32 %v1539, %v1547
    %v1550 = vtanh.pop %v1549
    %1552 = vrot.lane.b32.xlu0 %v1550, 96
    %v1553 = vpop.permute.xlu0 %1552
    %v1555 = vmul.f32 %v1533, %v1553
    %v1556 = vpack.c.bf16 %v1555, %v1555
    %1558 = vrot.lane.b32.xlu0 %v1556, 32
    %v1559 = vpop.permute.xlu0 %1558
    %v1561 = vsel %vm368, %v1559, 0
    %1563 = vmatprep.subr.bf16.mxu0 0
    %1564 = vmatpush1.bf16.msra.mxu0 %v1480
    %1565 = vmatprep.subr.bf16.mxu0 0
    %1566 = vmatpush1.bf16.msra.mxu0 %v1481
    %1567 = vmatprep.subr.bf16.mxu0 0
    %1568 = vmatpush1.bf16.msra.mxu0 0
    %1569 = vmatprep.subr.bf16.mxu0 0
    %1570 = vmatpush1.bf16.msra.mxu0 0
    %1571 = vmatprep.subr.bf16.mxu0 0
    %1572 = vmatpush1.bf16.msra.mxu0 0
    %1573 = vmatprep.subr.bf16.mxu0 0
    %1574 = vmatpush1.bf16.msra.mxu0 0
    %1575 = vmatprep.subr.bf16.mxu0 0
    %1576 = vmatpush1.bf16.msra.mxu0 0
    %1577 = vmatprep.subr.bf16.mxu0 0
    %1578 = vmatpush1.bf16.msra.mxu0 0
    %1579 = vmatprep.subr.bf16.mxu0 0
    %1580 = vmatpush1.bf16.msra.mxu0 0
    %1581 = vmatprep.subr.bf16.mxu0 0
    %1582 = vmatpush1.bf16.msra.mxu0 0
    %1583 = vmatprep.subr.bf16.mxu0 0
    %1584 = vmatpush1.bf16.msra.mxu0 0
    %1585 = vmatprep.subr.bf16.mxu0 0
    %1586 = vmatpush1.bf16.msra.mxu0 0
    %1587 = vmatprep.subr.bf16.mxu0 0
    %1588 = vmatpush1.bf16.msra.mxu0 0
    %1589 = vmatprep.subr.bf16.mxu0 0
    %1590 = vmatpush1.bf16.msra.mxu0 0
    %1591 = vmatprep.subr.bf16.mxu0 0
    %1592 = vmatpush1.bf16.msra.mxu0 0
    %1593 = vmatprep.subr.bf16.mxu0 0
    %1594 = vmatpush1.bf16.msra.mxu0 0
    %1595 = vmatprep.mubr.bf16.mxu0 0
    %1596 = vmatmul.mubr.bf16.gmra.mrb[0].mxu0 %v1561
    %v1597 = vpop.f32.mrb[0].mxu0
    %v1598 = vadd.f32 0.0, %v1597
    %v1599 = vpop.f32.mrb[0].mxu0
    %v1600 = vpop.f32.mrb[0].mxu0
    %v1601 = vpop.f32.mrb[0].mxu0
    %1602 = vdwg.mxu0
    %v1603 = vadd.f32 %v1405, %v1598
    %v1604 = vxor.u32 %v1603, 2147483648
    %v1605 = vmul.f32 %v1604, 1.442695
    %v1606 = vpow.pop %v1605
    %v1607 = vadd.f32 %v1606, 1.0
    %v1608 = vrcp.pop %v1607
    %v1609 = vmul.f32 1.0, %v1608
    %v1610 = vtanh.pop %v1603
    %1612 = vrot.lane.b32.xlu0 %v1610, 64
    %v1613 = vpop.permute.xlu0 %1612
    %v1615 = vmul.f32 %v1609, %v1613
    %1617 = vrot.lane.b32.xlu0 %v1549, 32
    %v1618 = vpop.permute.xlu0 %1617
    %v1620 = vmul.f32 %v1609, %v1618
    %1622 = vrot.lane.b32.xlu0 %v1620, 96
    %v1623 = vpop.permute.xlu0 %1622
    %v1625 = vadd.f32 %v1615, %v1623
    %v1626 = vtanh.pop %v1625
    %1628 = vrot.lane.b32.xlu0 %v1626, 96
    %v1629 = vpop.permute.xlu0 %1628
    %v1631 = vmul.f32 %v1609, %v1629
    %v1632 = vpack.c.bf16 %v1631, %v1631
    %1634 = vrot.lane.b32.xlu0 %v1632, 32
    %v1635 = vpop.permute.xlu0 %1634
    %v1637 = vsel %vm368, %v1635, 0
    %1639 = vmatprep.subr.bf16.mxu0 0
    %1640 = vmatpush1.bf16.msra.mxu0 %v1480
    %1641 = vmatprep.subr.bf16.mxu0 0
    %1642 = vmatpush1.bf16.msra.mxu0 %v1481
    %1643 = vmatprep.subr.bf16.mxu0 0
    %1644 = vmatpush1.bf16.msra.mxu0 0
    %1645 = vmatprep.subr.bf16.mxu0 0
    %1646 = vmatpush1.bf16.msra.mxu0 0
    %1647 = vmatprep.subr.bf16.mxu0 0
    %1648 = vmatpush1.bf16.msra.mxu0 0
    %1649 = vmatprep.subr.bf16.mxu0 0
    %1650 = vmatpush1.bf16.msra.mxu0 0
    %1651 = vmatprep.subr.bf16.mxu0 0
    %1652 = vmatpush1.bf16.msra.mxu0 0
    %1653 = vmatprep.subr.bf16.mxu0 0
    %1654 = vmatpush1.bf16.msra.mxu0 0
    %1655 = vmatprep.subr.bf16.mxu0 0
    %1656 = vmatpush1.bf16.msra.mxu0 0
    %1657 = vmatprep.subr.bf16.mxu0 0
    %1658 = vmatpush1.bf16.msra.mxu0 0
    %1659 = vmatprep.subr.bf16.mxu0 0
    %1660 = vmatpush1.bf16.msra.mxu0 0
    %1661 = vmatprep.subr.bf16.mxu0 0
    %1662 = vmatpush1.bf16.msra.mxu0 0
    %1663 = vmatprep.subr.bf16.mxu0 0
    %1664 = vmatpush1.bf16.msra.mxu0 0
    %1665 = vmatprep.subr.bf16.mxu0 0
    %1666 = vmatpush1.bf16.msra.mxu0 0
    %1667 = vmatprep.subr.bf16.mxu0 0
    %1668 = vmatpush1.bf16.msra.mxu0 0
    %1669 = vmatprep.subr.bf16.mxu0 0
    %1670 = vmatpush1.bf16.msra.mxu0 0
    %1671 = vmatprep.mubr.bf16.mxu0 0
    %1672 = vmatmul.mubr.bf16.gmra.mrb[0].mxu0 %v1637
    %v1673 = vpop.f32.mrb[0].mxu0
    %v1674 = vadd.f32 0.0, %v1673
    %v1675 = vpop.f32.mrb[0].mxu0
    %v1676 = vpop.f32.mrb[0].mxu0
    %v1677 = vpop.f32.mrb[0].mxu0
    %1678 = vdwg.mxu0
    %v1679 = vadd.f32 %v1408, %v1674
    %v1680 = vxor.u32 %v1679, 2147483648
    %v1681 = vmul.f32 %v1680, 1.442695
    %v1682 = vpow.pop %v1681
    %v1683 = vadd.f32 %v1682, 1.0
    %v1684 = vrcp.pop %v1683
    %v1685 = vmul.f32 1.0, %v1684
    %v1686 = vtanh.pop %v1679
    %1688 = vrot.lane.b32.xlu0 %v1686, 64
    %v1689 = vpop.permute.xlu0 %1688
    %v1691 = vmul.f32 %v1685, %v1689
    %1693 = vrot.lane.b32.xlu0 %v1625, 32
    %v1694 = vpop.permute.xlu0 %1693
    %v1696 = vmul.f32 %v1685, %v1694
    %1698 = vrot.lane.b32.xlu0 %v1696, 96
    %v1699 = vpop.permute.xlu0 %1698
    %v1701 = vadd.f32 %v1691, %v1699
    %v1702 = vtanh.pop %v1701
    %1704 = vrot.lane.b32.xlu0 %v1702, 96
    %v1705 = vpop.permute.xlu0 %1704
    %v1707 = vmul.f32 %v1685, %v1705
    %v1708 = vpack.c.bf16 %v1707, %v1707
    %1710 = vrot.lane.b32.xlu0 %v1708, 32
    %v1711 = vpop.permute.xlu0 %1710
    %v1713 = vsel %vm368, %v1711, 0
    %1715 = vmatprep.subr.bf16.mxu0 0
    %1716 = vmatpush1.bf16.msra.mxu0 %v1480
    %1717 = vmatprep.subr.bf16.mxu0 0
    %1718 = vmatpush1.bf16.msra.mxu0 %v1481
    %1719 = vmatprep.subr.bf16.mxu0 0
    %1720 = vmatpush1.bf16.msra.mxu0 0
    %1721 = vmatprep.subr.bf16.mxu0 0
    %1722 = vmatpush1.bf16.msra.mxu0 0
    %1723 = vmatprep.subr.bf16.mxu0 0
    %1724 = vmatpush1.bf16.msra.mxu0 0
    %1725 = vmatprep.subr.bf16.mxu0 0
    %1726 = vmatpush1.bf16.msra.mxu0 0
    %1727 = vmatprep.subr.bf16.mxu0 0
    %1728 = vmatpush1.bf16.msra.mxu0 0
    %1729 = vmatprep.subr.bf16.mxu0 0
    %1730 = vmatpush1.bf16.msra.mxu0 0
    %1731 = vmatprep.subr.bf16.mxu0 0
    %1732 = vmatpush1.bf16.msra.mxu0 0
    %1733 = vmatprep.subr.bf16.mxu0 0
    %1734 = vmatpush1.bf16.msra.mxu0 0
    %1735 = vmatprep.subr.bf16.mxu0 0
    %1736 = vmatpush1.bf16.msra.mxu0 0
    %1737 = vmatprep.subr.bf16.mxu0 0
    %1738 = vmatpush1.bf16.msra.mxu0 0
    %1739 = vmatprep.subr.bf16.mxu0 0
    %1740 = vmatpush1.bf16.msra.mxu0 0
    %1741 = vmatprep.subr.bf16.mxu0 0
    %1742 = vmatpush1.bf16.msra.mxu0 0
    %1743 = vmatprep.subr.bf16.mxu0 0
    %1744 = vmatpush1.bf16.msra.mxu0 0
    %1745 = vmatprep.subr.bf16.mxu0 0
    %1746 = vmatpush1.bf16.msra.mxu0 0
    %1747 = vmatprep.mubr.bf16.mxu0 0
    %1748 = vmatmul.mubr.bf16.gmra.mrb[0].mxu0 %v1713
    %v1749 = vpop.f32.mrb[0].mxu0
    %v1750 = vadd.f32 0.0, %v1749
    %v1751 = vpop.f32.mrb[0].mxu0
    %v1752 = vpop.f32.mrb[0].mxu0
    %v1753 = vpop.f32.mrb[0].mxu0
    %1754 = vdwg.mxu0
    %v1755 = vadd.f32 %v1413, %v1750
    %v1756 = vxor.u32 %v1755, 2147483648
    %v1757 = vmul.f32 %v1756, 1.442695
    %v1758 = vpow.pop %v1757
    %v1759 = vadd.f32 %v1758, 1.0
    %v1760 = vrcp.pop %v1759
    %v1761 = vmul.f32 1.0, %v1760
    %v1762 = vtanh.pop %v1755
    %1764 = vrot.lane.b32.xlu0 %v1762, 64
    %v1765 = vpop.permute.xlu0 %1764
    %v1767 = vmul.f32 %v1761, %v1765
    %1769 = vrot.lane.b32.xlu0 %v1701, 32
    %v1770 = vpop.permute.xlu0 %1769
    %v1772 = vmul.f32 %v1761, %v1770
    %1774 = vrot.lane.b32.xlu0 %v1772, 96
    %v1775 = vpop.permute.xlu0 %1774
    %v1777 = vadd.f32 %v1767, %v1775
    %v1778 = vtanh.pop %v1777
    %1780 = vrot.lane.b32.xlu0 %v1778, 96
    %v1781 = vpop.permute.xlu0 %1780
    %v1783 = vmul.f32 %v1761, %v1781
    %v1784 = vpack.c.bf16 %v1783, %v1783
    %1786 = vrot.lane.b32.xlu0 %v1784, 32
    %v1787 = vpop.permute.xlu0 %1786
    %v1789 = vsel %vm368, %v1787, 0
    %1791 = vmatprep.subr.bf16.mxu0 0
    %1792 = vmatpush1.bf16.msra.mxu0 %v1480
    %1793 = vmatprep.subr.bf16.mxu0 0
    %1794 = vmatpush1.bf16.msra.mxu0 %v1481
    %1795 = vmatprep.subr.bf16.mxu0 0
    %1796 = vmatpush1.bf16.msra.mxu0 0
    %1797 = vmatprep.subr.bf16.mxu0 0
    %1798 = vmatpush1.bf16.msra.mxu0 0
    %1799 = vmatprep.subr.bf16.mxu0 0
    %1800 = vmatpush1.bf16.msra.mxu0 0
    %1801 = vmatprep.subr.bf16.mxu0 0
    %1802 = vmatpush1.bf16.msra.mxu0 0
    %1803 = vmatprep.subr.bf16.mxu0 0
    %1804 = vmatpush1.bf16.msra.mxu0 0
    %1805 = vmatprep.subr.bf16.mxu0 0
    %1806 = vmatpush1.bf16.msra.mxu0 0
    %1807 = vmatprep.subr.bf16.mxu0 0
    %1808 = vmatpush1.bf16.msra.mxu0 0
    %1809 = vmatprep.subr.bf16.mxu0 0
    %1810 = vmatpush1.bf16.msra.mxu0 0
    %1811 = vmatprep.subr.bf16.mxu0 0
    %1812 = vmatpush1.bf16.msra.mxu0 0
    %1813 = vmatprep.subr.bf16.mxu0 0
    %1814 = vmatpush1.bf16.msra.mxu0 0
    %1815 = vmatprep.subr.bf16.mxu0 0
    %1816 = vmatpush1.bf16.msra.mxu0 0
    %1817 = vmatprep.subr.bf16.mxu0 0
    %1818 = vmatpush1.bf16.msra.mxu0 0
    %1819 = vmatprep.subr.bf16.mxu0 0
    %1820 = vmatpush1.bf16.msra.mxu0 0
    %1821 = vmatprep.subr.bf16.mxu0 0
    %1822 = vmatpush1.bf16.msra.mxu0 0
    %1823 = vmatprep.mubr.bf16.mxu0 0
    %1824 = vmatmul.mubr.bf16.gmra.mrb[0].mxu0 %v1789
    %v1825 = vpop.f32.mrb[0].mxu0
    %v1826 = vadd.f32 0.0, %v1825
    %v1827 = vpop.f32.mrb[0].mxu0
    %v1828 = vpop.f32.mrb[0].mxu0
    %v1829 = vpop.f32.mrb[0].mxu0
    %1830 = vdwg.mxu0
    %v1831 = vadd.f32 %v1416, %v1826
    %v1832 = vxor.u32 %v1831, 2147483648
    %v1833 = vmul.f32 %v1832, 1.442695
    %v1834 = vpow.pop %v1833
    %v1835 = vadd.f32 %v1834, 1.0
    %v1836 = vrcp.pop %v1835
    %v1837 = vmul.f32 1.0, %v1836
    %v1838 = vtanh.pop %v1831
    %1840 = vrot.lane.b32.xlu0 %v1838, 64
    %v1841 = vpop.permute.xlu0 %1840
    %v1843 = vmul.f32 %v1837, %v1841
    %1845 = vrot.lane.b32.xlu0 %v1777, 32
    %v1846 = vpop.permute.xlu0 %1845
    %v1848 = vmul.f32 %v1837, %v1846
    %1850 = vrot.lane.b32.xlu0 %v1848, 96
    %v1851 = vpop.permute.xlu0 %1850
    %v1853 = vadd.f32 %v1843, %v1851
    %v1854 = vtanh.pop %v1853
    %1856 = vrot.lane.b32.xlu0 %v1854, 96
    %v1857 = vpop.permute.xlu0 %1856
    %v1859 = vmul.f32 %v1837, %v1857
    %v1860 = vpack.c.bf16 %v1859, %v1859
    %1862 = vrot.lane.b32.xlu0 %v1860, 32
    %v1863 = vpop.permute.xlu0 %1862
    %v1865 = vsel %vm368, %v1863, 0
    %1867 = vmatprep.subr.bf16.mxu0 0
    %1868 = vmatpush1.bf16.msra.mxu0 %v1480
    %1869 = vmatprep.subr.bf16.mxu0 0
    %1870 = vmatpush1.bf16.msra.mxu0 %v1481
    %1871 = vmatprep.subr.bf16.mxu0 0
    %1872 = vmatpush1.bf16.msra.mxu0 0
    %1873 = vmatprep.subr.bf16.mxu0 0
    %1874 = vmatpush1.bf16.msra.mxu0 0
    %1875 = vmatprep.subr.bf16.mxu0 0
    %1876 = vmatpush1.bf16.msra.mxu0 0
    %1877 = vmatprep.subr.bf16.mxu0 0
    %1878 = vmatpush1.bf16.msra.mxu0 0
    %1879 = vmatprep.subr.bf16.mxu0 0
    %1880 = vmatpush1.bf16.msra.mxu0 0
    %1881 = vmatprep.subr.bf16.mxu0 0
    %1882 = vmatpush1.bf16.msra.mxu0 0
    %1883 = vmatprep.subr.bf16.mxu0 0
    %1884 = vmatpush1.bf16.msra.mxu0 0
    %1885 = vmatprep.subr.bf16.mxu0 0
    %1886 = vmatpush1.bf16.msra.mxu0 0
    %1887 = vmatprep.subr.bf16.mxu0 0
    %1888 = vmatpush1.bf16.msra.mxu0 0
    %1889 = vmatprep.subr.bf16.mxu0 0
    %1890 = vmatpush1.bf16.msra.mxu0 0
    %1891 = vmatprep.subr.bf16.mxu0 0
    %1892 = vmatpush1.bf16.msra.mxu0 0
    %1893 = vmatprep.subr.bf16.mxu0 0
    %1894 = vmatpush1.bf16.msra.mxu0 0
    %1895 = vmatprep.subr.bf16.mxu0 0
    %1896 = vmatpush1.bf16.msra.mxu0 0
    %1897 = vmatprep.subr.bf16.mxu0 0
    %1898 = vmatpush1.bf16.msra.mxu0 0
    %1899 = vmatprep.mubr.bf16.mxu0 0
    %1900 = vmatmul.mubr.bf16.gmra.mrb[0].mxu0 %v1865
    %v1901 = vpop.f32.mrb[0].mxu0
    %v1902 = vadd.f32 0.0, %v1901
    %v1903 = vpop.f32.mrb[0].mxu0
    %v1904 = vpop.f32.mrb[0].mxu0
    %v1905 = vpop.f32.mrb[0].mxu0
    %1906 = vdwg.mxu0
    %v1907 = vadd.f32 %v1421, %v1902
    %v1908 = vxor.u32 %v1907, 2147483648
    %v1909 = vmul.f32 %v1908, 1.442695
    %v1910 = vpow.pop %v1909
    %v1911 = vadd.f32 %v1910, 1.0
    %v1912 = vrcp.pop %v1911
    %v1913 = vmul.f32 1.0, %v1912
    %v1914 = vtanh.pop %v1907
    %1916 = vrot.lane.b32.xlu0 %v1914, 64
    %v1917 = vpop.permute.xlu0 %1916
    %v1919 = vmul.f32 %v1913, %v1917
    %1921 = vrot.lane.b32.xlu0 %v1853, 32
    %v1922 = vpop.permute.xlu0 %1921
    %v1924 = vmul.f32 %v1913, %v1922
    %1926 = vrot.lane.b32.xlu0 %v1924, 96
    %v1927 = vpop.permute.xlu0 %1926
    %v1929 = vadd.f32 %v1919, %v1927
    %v1930 = vtanh.pop %v1929
    %1932 = vrot.lane.b32.xlu0 %v1930, 96
    %v1933 = vpop.permute.xlu0 %1932
    %v1935 = vmul.f32 %v1913, %v1933
    %v1936 = vpack.c.bf16 %v1935, %v1935
    %1938 = vrot.lane.b32.xlu0 %v1936, 32
    %v1939 = vpop.permute.xlu0 %1938
    %v1941 = vsel %vm368, %v1939, 0
    %1943 = vmatprep.subr.bf16.mxu0 0
    %1944 = vmatpush1.bf16.msra.mxu0 %v1480
    %1945 = vmatprep.subr.bf16.mxu0 0
    %1946 = vmatpush1.bf16.msra.mxu0 %v1481
    %1947 = vmatprep.subr.bf16.mxu0 0
    %1948 = vmatpush1.bf16.msra.mxu0 0
    %1949 = vmatprep.subr.bf16.mxu0 0
    %1950 = vmatpush1.bf16.msra.mxu0 0
    %1951 = vmatprep.subr.bf16.mxu0 0
    %1952 = vmatpush1.bf16.msra.mxu0 0
    %1953 = vmatprep.subr.bf16.mxu0 0
    %1954 = vmatpush1.bf16.msra.mxu0 0
    %1955 = vmatprep.subr.bf16.mxu0 0
    %1956 = vmatpush1.bf16.msra.mxu0 0
    %1957 = vmatprep.subr.bf16.mxu0 0
    %1958 = vmatpush1.bf16.msra.mxu0 0
    %1959 = vmatprep.subr.bf16.mxu0 0
    %1960 = vmatpush1.bf16.msra.mxu0 0
    %1961 = vmatprep.subr.bf16.mxu0 0
    %1962 = vmatpush1.bf16.msra.mxu0 0
    %1963 = vmatprep.subr.bf16.mxu0 0
    %1964 = vmatpush1.bf16.msra.mxu0 0
    %1965 = vmatprep.subr.bf16.mxu0 0
    %1966 = vmatpush1.bf16.msra.mxu0 0
    %1967 = vmatprep.subr.bf16.mxu0 0
    %1968 = vmatpush1.bf16.msra.mxu0 0
    %1969 = vmatprep.subr.bf16.mxu0 0
    %1970 = vmatpush1.bf16.msra.mxu0 0
    %1971 = vmatprep.subr.bf16.mxu0 0
    %1972 = vmatpush1.bf16.msra.mxu0 0
    %1973 = vmatprep.subr.bf16.mxu0 0
    %1974 = vmatpush1.bf16.msra.mxu0 0
    %1975 = vmatprep.mubr.bf16.mxu0 0
    %1976 = vmatmul.mubr.bf16.gmra.mrb[0].mxu0 %v1941
    %v1977 = vpop.f32.mrb[0].mxu0
    %v1978 = vadd.f32 0.0, %v1977
    %v1979 = vpop.f32.mrb[0].mxu0
    %v1980 = vpop.f32.mrb[0].mxu0
    %v1981 = vpop.f32.mrb[0].mxu0
    %1982 = vdwg.mxu0
    %v1983 = vadd.f32 %v1424, %v1978
    %v1984 = vxor.u32 %v1983, 2147483648
    %v1985 = vmul.f32 %v1984, 1.442695
    %v1986 = vpow.pop %v1985
    %v1987 = vadd.f32 %v1986, 1.0
    %v1988 = vrcp.pop %v1987
    %v1989 = vmul.f32 1.0, %v1988
    %v1990 = vtanh.pop %v1983
    %1992 = vrot.lane.b32.xlu0 %v1990, 64
    %v1993 = vpop.permute.xlu0 %1992
    %v1995 = vmul.f32 %v1989, %v1993
    %1997 = vrot.lane.b32.xlu0 %v1929, 32
    %v1998 = vpop.permute.xlu0 %1997
    %v2000 = vmul.f32 %v1989, %v1998
    %2002 = vrot.lane.b32.xlu0 %v2000, 96
    %v2003 = vpop.permute.xlu0 %2002
    %v2005 = vadd.f32 %v1995, %v2003
    %v2006 = vtanh.pop %v2005
    %2008 = vrot.lane.b32.xlu0 %v2006, 96
    %v2009 = vpop.permute.xlu0 %2008
    %v2011 = vmul.f32 %v1989, %v2009
    %2013 = vrot.lane.b32.xlu0 %v2011, 32
    %v2014 = vpop.permute.xlu0 %2013
    %2017 = vrot.lane.b32.xlu0 %v1445, 64
    %v2018 = vpop.permute.xlu0 %2017
    %v2020 = vsel %vm368, %v2014, %v2018
    %v2021 = vpack.c.bf16 %v2020, %v2020
    %v2022 = vld [vmem:[#allocation8] sm:$0xf]
    %v2023 = vld [vmem:[#allocation8 + $0x4] sm:$0xf]
    %v2024 = vld [vmem:[#allocation8 + $0x8] sm:$0xf]
    %v2025 = vld [vmem:[#allocation8 + $0xc] sm:$0xf]
    %v2026 = vld [vmem:[#allocation8 + $0x10] sm:$0xf]
    %v2027 = vld [vmem:[#allocation8 + $0x14] sm:$0xf]
    %v2028 = vld [vmem:[#allocation8 + $0x18] sm:$0xf]
    %v2029 = vld [vmem:[#allocation8 + $0x1c] sm:$0xf]
    %v2030 = vld [vmem:[%s8] sm:$0x1]
    %v2032 = vlaneseq
    %v2033 = vshrl.u32 %v2032, 7
    %v2034 = vsub.s32 0, %v2033
    %v2035 = vrot.slane %v2030, %v2034
    %v2045 = vunpack.c.l.b16 %v2022
    %v2046 = vunpack.c.l.b16 %v2023
    %v2047 = vunpack.c.l.b16 %v2024
    %v2048 = vunpack.c.l.b16 %v2025
    %v2049 = vunpack.c.l.b16 %v2026
    %v2050 = vunpack.c.l.b16 %v2027
    %v2051 = vunpack.c.l.b16 %v2028
    %v2052 = vunpack.c.l.b16 %v2029
    %v2053 = vpack.c.b16 %v2046, %v2045
    %v2054 = vpack.c.b16 %v2048, %v2047
    %v2055 = vpack.c.b16 %v2050, %v2049
    %v2056 = vpack.c.b16 %v2052, %v2051
    %v2062 = vsel %vm416, %v2021, 0
    %2064 = vmatprep.subr.bf16.mxu0 0
    %2065 = vmatpush1.bf16.msra.mxu0 %v2053
    %2066 = vmatprep.subr.bf16.mxu0 0
    %2067 = vmatpush1.bf16.msra.mxu0 %v2054
    %2068 = vmatprep.subr.bf16.mxu0 0
    %2069 = vmatpush1.bf16.msra.mxu0 %v2055
    %2070 = vmatprep.subr.bf16.mxu0 0
    %2071 = vmatpush1.bf16.msra.mxu0 %v2056
    %2072 = vmatprep.subr.bf16.mxu0 0
    %2073 = vmatpush1.bf16.msra.mxu0 0
    %2074 = vmatprep.subr.bf16.mxu0 0
    %2075 = vmatpush1.bf16.msra.mxu0 0
    %2076 = vmatprep.subr.bf16.mxu0 0
    %2077 = vmatpush1.bf16.msra.mxu0 0
    %2078 = vmatprep.subr.bf16.mxu0 0
    %2079 = vmatpush1.bf16.msra.mxu0 0
    %2080 = vmatprep.subr.bf16.mxu0 0
    %2081 = vmatpush1.bf16.msra.mxu0 0
    %2082 = vmatprep.subr.bf16.mxu0 0
    %2083 = vmatpush1.bf16.msra.mxu0 0
    %2084 = vmatprep.subr.bf16.mxu0 0
    %2085 = vmatpush1.bf16.msra.mxu0 0
    %2086 = vmatprep.subr.bf16.mxu0 0
    %2087 = vmatpush1.bf16.msra.mxu0 0
    %2088 = vmatprep.subr.bf16.mxu0 0
    %2089 = vmatpush1.bf16.msra.mxu0 0
    %2090 = vmatprep.subr.bf16.mxu0 0
    %2091 = vmatpush1.bf16.msra.mxu0 0
    %2092 = vmatprep.subr.bf16.mxu0 0
    %2093 = vmatpush1.bf16.msra.mxu0 0
    %2094 = vmatprep.subr.bf16.mxu0 0
    %2095 = vmatpush1.bf16.msra.mxu0 0
    %2096 = vmatprep.mubr.bf16.mxu0 0
    %2097 = vmatmul.mubr.bf16.gmra.mrb[0].mxu0 %v2062
    %v2098 = vpop.f32.mrb[0].mxu0
    %v2099 = vadd.f32 %v2035, %v2098
    %v2100 = vpop.f32.mrb[0].mxu0
    %v2101 = vpop.f32.mrb[0].mxu0
    %v2102 = vpop.f32.mrb[0].mxu0
    %2103 = vdwg.mxu0
    %2104 = vst [vmem:[%s9] sm:$0xff] %v2099
    // Predicated region
    $region54: #{gait_classifier_lstm_forward.1} parent=1 // pred_check
      _
    $region55: #{gait_classifier_lstm_forward.1} parent=1 // pred_check_branch
      %2106 = sbr.rel (0) target = $region57
    $region56: #{gait_classifier_lstm_forward.1} parent=1 // pred_region
      _
    $region57: #{gait_classifier_lstm_forward.1} parent=1 // pred_fallthru
      _
    // Predicated region
    $region58: #{gait_classifier_lstm_forward.1} parent=1 // pred_check
      _
    $region59: #{gait_classifier_lstm_forward.1} parent=1 // pred_check_branch
      %2108 = sbr.rel (0) target = $region61
    $region60: #{gait_classifier_lstm_forward.1} parent=1 // pred_region
      _
    $region61: #{gait_classifier_lstm_forward.1} parent=1 // pred_fallthru
      _
    %2109 = vsyncpa [#allocation4], 1
    %2110 = vsyncpa [#allocation6], 1
    %2111 = vsyncpa [#allocation9], 1

</llo_original>
